<compile_context>
chip_gen: v5e
topology: v5e:2x2
jax: 0.10.0
libtpu: 0.0.40
codegen_flags: <defaults>
</compile_context>

<pallas_src>
import functools

import jax
import jax.numpy as jnp
from jax.experimental import pallas as pl
from jax.experimental.pallas import tpu as pltpu


# ----------------------------------------------------------------------------
# helpers
# ----------------------------------------------------------------------------
def _round_up(n, m):
    return ((n + m - 1) // m) * m


def _pick_batch_tile(B):
    # Prefer 128-row tiles (fills MXU rows) while keeping >=2 grid steps.
    for tb in (128, 256, 64, 32, 16, 8):
        if B % tb == 0:
            return tb
    return B


def _pad_lanes(a, width):
    """Zero-pad the last (lane) axis of a 2-D array up to `width`."""
    pad = width - a.shape[-1]
    if pad == 0:
        return a
    return jnp.concatenate(
        [a, jnp.zeros((a.shape[0], pad), a.dtype)], axis=-1)


# ----------------------------------------------------------------------------
# Kernel 1: batch-invariant beta = softmax(topic_emb @ word_emb.T, dim=1)
# ----------------------------------------------------------------------------
def _beta_kernel(topic_ref, word_ref, beta_ref):
    logits = jax.lax.dot_general(
        topic_ref[...], word_ref[...],
        (((1,), (1,)), ((), ())),
        preferred_element_type=jnp.float32,
    )                                                     # (K, V) f32
    l_max = jnp.max(logits, axis=1, keepdims=True)
    el = jnp.exp(logits - l_max)
    inv = pl.reciprocal(jnp.sum(el, axis=1, keepdims=True), approx=False)
    beta_ref[...] = (el * inv).astype(beta_ref.dtype)


# ----------------------------------------------------------------------------
# Kernel 2: batch-gridded encoder + theta + recon-NLL + KLD + doc embeddings
# ----------------------------------------------------------------------------
def _etm_batch_kernel(
    K, D,                 # static
    x_ref,                # (TB, V)   f32 bag-of-words tile
    w1_ref, b1_ref,       # (V, E1) bf16, (1, E1) f32
    w2_ref, b2_ref,       # (E1, E1) bf16, (1, E1) f32
    wml_ref, bml_ref,     # (E1, 2K) bf16 fused fc21|fc22, (1, 2K) f32
    topic_ref,            # (K, D) bf16
    beta_ref,             # (K, V) bf16 (precomputed)
    eps_ref,              # (TB, K) f32 reparameterization noise
    loss_ref,             # (TB, 128) f32 out: per-sample loss (lane-broadcast)
    theta_ref,            # (TB, KPAD) f32 out: theta zero-padded to 128 lanes
    docemb_ref,           # (TB, DPAD) f32 out: theta @ topic_emb zero-padded
):
    f32 = jnp.float32
    bf16 = jnp.bfloat16
    x = x_ref[...]                                        # (TB, V) f32
    TB = x.shape[0]

    # norm_x = x / x.sum(1, keepdim=True), guarding all-zero documents.
    rowsum = jnp.sum(x, axis=1, keepdims=True)
    rowsum = jnp.where(rowsum > 0.0, rowsum, 1.0)
    norm_x = (x * pl.reciprocal(rowsum, approx=False)).astype(bf16)

    # encoder1: Linear -> ReLU -> Linear -> ReLU -> Dropout(0.0) (no-op)
    h1 = jnp.dot(norm_x, w1_ref[...], preferred_element_type=f32) + b1_ref[...]
    h1 = jnp.maximum(h1, 0.0).astype(bf16)
    h2 = jnp.dot(h1, w2_ref[...], preferred_element_type=f32) + b2_ref[...]
    h2 = jnp.maximum(h2, 0.0).astype(bf16)

    # fused fc21 | fc22
    mulv = jnp.dot(h2, wml_ref[...], preferred_element_type=f32) + bml_ref[...]
    mu = mulv[:, :K]
    logvar = mulv[:, K:2 * K]

    # reparameterize (training): z = mu + eps * exp(0.5 * logvar)
    std = jnp.exp(0.5 * logvar)
    z = mu + eps_ref[...] * std

    # theta = softmax(z, dim=-1)   (exact normalization)
    z_max = jnp.max(z, axis=-1, keepdims=True)
    ez = jnp.exp(z - z_max)
    inv = pl.reciprocal(jnp.sum(ez, axis=-1, keepdims=True), approx=False)
    theta = ez * inv                                      # (TB, K) f32
    theta_bf = theta.astype(bf16)

    # recon_x = theta @ beta   -> (TB, V)
    recon_x = jnp.dot(theta_bf, beta_ref[...], preferred_element_type=f32)

    # recon_loss = -(x * log(recon_x + 1e-12)).sum(1)
    recon_loss = -jnp.sum(x * jnp.log(recon_x + 1e-12), axis=1, keepdims=True)
    # KLD = -0.5 * (1 + logvar - mu^2 - exp(logvar)).sum(1); exp(logvar)=std^2
    kld = -0.5 * jnp.sum(1.0 + logvar - mu * mu - std * std,
                         axis=1, keepdims=True)
    per_loss = recon_loss + kld                           # (TB, 1)

    # doc_embeddings = theta @ topic_embeddings
    doc_emb = jnp.dot(theta_bf, topic_ref[...], preferred_element_type=f32)

    # Lane-dense stores (full-width vst, no masked partial stores).
    loss_ref[...] = jnp.broadcast_to(per_loss, (TB, loss_ref.shape[-1]))
    theta_ref[...] = _pad_lanes(theta, theta_ref.shape[-1])
    docemb_ref[...] = _pad_lanes(doc_emb, docemb_ref.shape[-1])


# ----------------------------------------------------------------------------
# Wrapper around the two pallas_calls
# ----------------------------------------------------------------------------
def etm_forward_core(x, params, eps):
    """Returns (per_sample_loss (B,), theta (B,K), doc_embeddings (B,D))."""
    B, V = x.shape
    E1 = params["w1"].shape[1]
    K = params["w21"].shape[1]
    D = params["topic_emb"].shape[1]
    KPAD = _round_up(K, 128)
    DPAD = _round_up(D, 128)

    f32 = jnp.float32
    bf16 = jnp.bfloat16

    # bf16 MXU operands (halves weight VMEM residency / HBM traffic).
    topic_bf = params["topic_emb"].astype(bf16)
    word_bf = params["word_emb"].astype(bf16)
    w1 = params["w1"].astype(bf16)
    w2 = params["w2"].astype(bf16)
    wml = jnp.concatenate([params["w21"], params["w22"]], axis=1).astype(bf16)
    b1 = params["b1"].reshape(1, E1).astype(f32)
    b2 = params["b2"].reshape(1, E1).astype(f32)
    bml = jnp.concatenate([params["b21"], params["b22"]]).reshape(1, 2 * K)
    bml = bml.astype(f32)

    vmem = pl.BlockSpec(memory_space=pltpu.MemorySpace.VMEM)

    # ---- beta computed once (batch-invariant) --------------------------------
    beta = pl.pallas_call(
        _beta_kernel,
        out_shape=jax.ShapeDtypeStruct((K, V), bf16),
        in_specs=[vmem, vmem],
        out_specs=vmem,
    )(topic_bf, word_bf)

    # ---- batch-gridded main kernel -------------------------------------------
    TB = _pick_batch_tile(B)
    grid = (B // TB,)

    def tile_map(i):
        return (i, 0)

    def whole_map(i):
        return (0, 0)

    in_specs = [
        pl.BlockSpec((TB, V), tile_map),        # x (per-tile, pipelined)
        pl.BlockSpec((V, E1), whole_map),       # w1 (resident)
        pl.BlockSpec((1, E1), whole_map),       # b1
        pl.BlockSpec((E1, E1), whole_map),      # w2
        pl.BlockSpec((1, E1), whole_map),       # b2
        pl.BlockSpec((E1, 2 * K), whole_map),   # fused fc21|fc22 weight
        pl.BlockSpec((1, 2 * K), whole_map),    # fused bias
        pl.BlockSpec((K, D), whole_map),        # topic embeddings
        pl.BlockSpec((K, V), whole_map),        # beta
        pl.BlockSpec((TB, K), tile_map),        # eps (per-tile)
    ]
    out_specs = (
        pl.BlockSpec((TB, 128), tile_map),      # loss slab (lane-broadcast)
        pl.BlockSpec((TB, KPAD), tile_map),     # theta (lane-padded)
        pl.BlockSpec((TB, DPAD), tile_map),     # doc embeddings (lane-padded)
    )
    out_shape = (
        jax.ShapeDtypeStruct((B, 128), f32),
        jax.ShapeDtypeStruct((B, KPAD), f32),
        jax.ShapeDtypeStruct((B, DPAD), f32),
    )

    # VMEM budget from the actual tile footprint (x2 for double buffering).
    resident_bytes = ((V * E1 + E1 * E1 + E1 * 2 * K + K * D + K * V) * 2
                      + (2 * E1 + 2 * K) * 4)
    per_tile_bytes = TB * (V + K + 128 + KPAD + DPAD) * 4
    vmem_limit = int(min(64 * 1024 * 1024,
                         max(16 * 1024 * 1024,
                             2 * (resident_bytes + per_tile_bytes) + (4 << 20))))

    flops = 2 * B * (V * E1 + E1 * E1 + E1 * 2 * K + K * V + K * D)
    transcendentals = B * (V + 4 * K)
    bytes_accessed = (B * V * 4 + B * K * 4
                      + B * (128 + KPAD + DPAD) * 4
                      + resident_bytes)

    kernel = functools.partial(_etm_batch_kernel, K, D)
    loss_pad, theta_pad, doc_pad = pl.pallas_call(
        kernel,
        out_shape=out_shape,
        grid_spec=pltpu.PrefetchScalarGridSpec(
            num_scalar_prefetch=0,
            grid=grid,
            in_specs=in_specs,
            out_specs=out_specs,
        ),
        compiler_params=pltpu.CompilerParams(
            dimension_semantics=("parallel",),
            vmem_limit_bytes=vmem_limit,
        ),
        cost_estimate=pl.CostEstimate(
            flops=int(flops),
            transcendentals=int(transcendentals),
            bytes_accessed=int(bytes_accessed),
        ),
    )(x, w1, b1, w2, b2, wml, bml, topic_bf, beta, eps)

    return loss_pad[:, 0], theta_pad[:, :K], doc_pad[:, :D]


# ----------------------------------------------------------------------------
# Sinkhorn divergence (geomloss SamplesLoss('sinkhorn', p=2, blur=0.05)) — glue
# ----------------------------------------------------------------------------
# TODO(synk): geomloss uses epsilon-scaling with symmetric debiased potentials;
# this is a fixed-length annealed log-domain approximation (values will differ
# numerically from the PyTorch reference).
def _pairwise_half_sq(xs, ys):
    # 0.5 * ||x - y||^2 via one matmul (no (n, m, d) broadcast).
    x2 = jnp.sum(xs * xs, axis=1, keepdims=True)
    y2 = jnp.sum(ys * ys, axis=1, keepdims=True)
    xy = jnp.dot(xs, ys.T)
    return 0.5 * jnp.maximum(x2 + y2.T - 2.0 * xy, 0.0)


def _sinkhorn_dual_cost(a_w, xs, b_w, ys, eps, iters=40):
    cost = _pairwise_half_sq(xs, ys)
    log_a = jnp.log(a_w)[:, None]
    log_b = jnp.log(b_w)[None, :]
    eps_start = jnp.maximum(jnp.max(cost), eps)

    def body(t, fg):
        f, g = fg
        frac = t.astype(jnp.float32) / (iters - 1)
        eps_t = eps_start * (eps / eps_start) ** frac      # anneal -> target
        g = -eps_t * jax.nn.logsumexp(
            log_a + (f[:, None] - cost) / eps_t, axis=0)
        f = -eps_t * jax.nn.logsumexp(
            log_b + (g[None, :] - cost) / eps_t, axis=1)
        return (f, g)

    f0 = jnp.zeros((xs.shape[0],), jnp.float32)
    g0 = jnp.zeros((ys.shape[0],), jnp.float32)
    f, g = jax.lax.fori_loop(0, iters, body, (f0, g0))
    return jnp.sum(a_w * f) + jnp.sum(b_w * g)


def sinkhorn_divergence(xs, ys, blur=0.05, p=2):
    n, m = xs.shape[0], ys.shape[0]
    a_w = jnp.full((n,), 1.0 / n, jnp.float32)
    b_w = jnp.full((m,), 1.0 / m, jnp.float32)
    eps = blur ** p
    ot_xy = _sinkhorn_dual_cost(a_w, xs, b_w, ys, eps)
    ot_xx = _sinkhorn_dual_cost(a_w, xs, a_w, xs, eps)
    ot_yy = _sinkhorn_dual_cost(b_w, ys, b_w, ys, eps)
    return ot_xy - 0.5 * ot_xx - 0.5 * ot_yy


# ----------------------------------------------------------------------------
# Full ETM.forward (training mode: eps noise supplied by caller)
# ----------------------------------------------------------------------------
@functools.partial(jax.jit, static_argnames=("avg_loss",))
def etm_forward(x, params, eps, avg_loss=True,
                weight_ot_doc_cluster=1.0, weight_ot_topic_cluster=1.0):
    per_loss, theta, doc_emb = etm_forward_core(x, params, eps)
    recon_loss = jnp.mean(per_loss) if avg_loss else per_loss

    ot_doc = sinkhorn_divergence(doc_emb, params["cluster_emb"])
    ot_topic = sinkhorn_divergence(params["topic_emb"], params["cluster_emb"])

    total = (recon_loss
             + weight_ot_doc_cluster * ot_doc
             + weight_ot_topic_cluster * ot_topic)
    return {
        "loss": total,
        "recon_loss": recon_loss,
        "ot_loss_doc_cluster": ot_doc,
        "ot_loss_topic_cluster": ot_topic,
        "theta": theta,
    }


# ----------------------------------------------------------------------------
# Deterministic parameter construction (synthetic, no checkpoint)
# ----------------------------------------------------------------------------
def init_params(key, vocab_size, embed_size, num_topics, en_units, num_clusters):
    ks = jax.random.split(key, 10)
    n = jax.random.normal
    f32 = jnp.float32
    return {
        "word_emb": n(ks[0], (vocab_size, embed_size), f32),
        "topic_emb": n(ks[1], (num_topics, embed_size), f32),
        "cluster_emb": n(ks[2], (num_clusters, embed_size), f32),
        # Linear weights stored as (in, out): y = x @ W + b  ==  x @ W_pt.T + b
        "w1": n(ks[3], (vocab_size, en_units), f32) * 0.05,
        "b1": n(ks[4], (en_units,), f32) * 0.01,
        "w2": n(ks[5], (en_units, en_units), f32) * 0.05,
        "b2": n(ks[6], (en_units,), f32) * 0.01,
        "w21": n(ks[7], (en_units, num_topics), f32) * 0.05,
        "b21": jnp.zeros((num_topics,), f32),
        "w22": n(ks[8], (en_units, num_topics), f32) * 0.05,
        "b22": jnp.zeros((num_topics,), f32),
    }


if __name__ == "__main__":
    # Batch chosen >=128 so the MXU rows are filled and the batch grid has
    # multiple steps; other dims stay small / TPU-friendly.
    B, V, E1, K, D, C = 256, 256, 128, 32, 64, 16

    key = jax.random.PRNGKey(0)
    k_param, k_x, k_eps = jax.random.split(key, 3)

    params = init_params(k_param, vocab_size=V, embed_size=D,
                         num_topics=K, en_units=E1, num_clusters=C)

    # Bag-of-words counts (non-negative), float32.
    x = jax.random.poisson(k_x, 1.0, (B, V)).astype(jnp.float32)
    # Reparameterization noise (training mode), drawn deterministically.
    eps = jax.random.normal(k_eps, (B, K), jnp.float32)

    out = etm_forward(x, params, eps, avg_loss=True)
    jax.block_until_ready(out)

    for v in out.values():
        assert jnp.all(jnp.isfinite(v)), "non-finite output"
    print("KERNEL_OK")
</pallas_src>

<mosaic_0001>
module attributes {stable_mosaic.version = 11 : i64} {
  func.func @_beta_kernel(%arg0: memref<32x64xbf16, #tpu.memory_space<vmem>>, %arg1: memref<256x64xbf16, #tpu.memory_space<vmem>>, %arg2: memref<32x256xbf16, #tpu.memory_space<vmem>>) attributes {dimension_semantics = [], scalar_prefetch = 0 : i64, scratch_operands = 0 : i64, tpu.core_type = #tpu.core_type<tc>} {
    %c0 = arith.constant 0 : index
    %c0_0 = arith.constant 0 : index
    %0 = vector.load %arg0[%c0, %c0_0] : memref<32x64xbf16, #tpu.memory_space<vmem>>, vector<32x64xbf16>
    %c0_1 = arith.constant 0 : index
    %c0_2 = arith.constant 0 : index
    %1 = vector.load %arg1[%c0_1, %c0_2] : memref<256x64xbf16, #tpu.memory_space<vmem>>, vector<256x64xbf16>
    %cst = arith.constant dense<0.000000e+00> : vector<32x256xf32>
    %2 = tpu.matmul %0, %1, %cst {dimension_numbers = #tpu.dot_dimension_numbers<[1], [1], [0], [0], [0, 0, 1, 0], [], []>} : vector<32x64xbf16>, vector<256x64xbf16>, vector<32x256xf32> -> vector<32x256xf32>
    %cst_3 = arith.constant dense<0xFF800000> : vector<32xf32>
    %3 = vector.multi_reduction <maximumf>, %2, %cst_3 [1] : vector<32x256xf32> to vector<32xf32>
    %4 = vector.shape_cast %3 : vector<32xf32> to vector<32x1xf32>
    %5 = vector.broadcast %4 : vector<32x1xf32> to vector<32x256xf32>
    %6 = arith.subf %2, %5 : vector<32x256xf32>
    %7 = math.exp %6 : vector<32x256xf32>
    %cst_4 = arith.constant dense<0.000000e+00> : vector<32xf32>
    %8 = vector.multi_reduction <add>, %7, %cst_4 [1] : vector<32x256xf32> to vector<32xf32>
    %9 = vector.shape_cast %8 : vector<32xf32> to vector<32x1xf32>
    %10 = tpu.reciprocal %9 : vector<32x1xf32> -> vector<32x1xf32>
    %11 = vector.broadcast %10 : vector<32x1xf32> to vector<32x256xf32>
    %12 = arith.mulf %7, %11 : vector<32x256xf32>
    %13 = arith.truncf %12 : vector<32x256xf32> to vector<32x256xbf16>
    %c0_5 = arith.constant 0 : index
    %c0_6 = arith.constant 0 : index
    %14 = vector.load %arg2[%c0_5, %c0_6] : memref<32x256xbf16, #tpu.memory_space<vmem>>, vector<32x256xbf16>
    tpu.vector_store %arg2[%c0_5, %c0_6], %13 {strides = array<i32>} : memref<32x256xbf16, #tpu.memory_space<vmem>>, vector<32x256xbf16>,
    return
  }
}

module attributes {stable_mosaic.version = 11 : i64} {
  func.func @_etm_batch_kernel(%arg0: i32, %arg1: memref<128x256xf32, #tpu.memory_space<vmem>>, %arg2: memref<256x128xbf16, #tpu.memory_space<vmem>>, %arg3: memref<1x128xf32, #tpu.memory_space<vmem>>, %arg4: memref<128x128xbf16, #tpu.memory_space<vmem>>, %arg5: memref<1x128xf32, #tpu.memory_space<vmem>>, %arg6: memref<128x64xbf16, #tpu.memory_space<vmem>>, %arg7: memref<1x64xf32, #tpu.memory_space<vmem>>, %arg8: memref<32x64xbf16, #tpu.memory_space<vmem>>, %arg9: memref<32x256xbf16, #tpu.memory_space<vmem>>, %arg10: memref<128x32xf32, #tpu.memory_space<vmem>>, %arg11: memref<128x128xf32, #tpu.memory_space<vmem>>, %arg12: memref<128x128xf32, #tpu.memory_space<vmem>>, %arg13: memref<128x128xf32, #tpu.memory_space<vmem>>) attributes {dimension_semantics = [#tpu.dimension_semantics<parallel>], iteration_bounds = array<i64: 2>, scalar_prefetch = 0 : i64, scratch_operands = 0 : i64, tpu.core_type = #tpu.core_type<tc>, window_params = [{transform_indices = @transform_0, window_bounds = array<i64: 128, 256>}, {pipeline_mode = #tpu.pipeline_mode<synchronous>, transform_indices = @transform_1, window_bounds = array<i64: 256, 128>}, {pipeline_mode = #tpu.pipeline_mode<synchronous>, transform_indices = @transform_2, window_bounds = array<i64: 1, 128>}, {pipeline_mode = #tpu.pipeline_mode<synchronous>, transform_indices = @transform_3, window_bounds = array<i64: 128, 128>}, {pipeline_mode = #tpu.pipeline_mode<synchronous>, transform_indices = @transform_4, window_bounds = array<i64: 1, 128>}, {pipeline_mode = #tpu.pipeline_mode<synchronous>, transform_indices = @transform_5, window_bounds = array<i64: 128, 64>}, {pipeline_mode = #tpu.pipeline_mode<synchronous>, transform_indices = @transform_6, window_bounds = array<i64: 1, 64>}, {pipeline_mode = #tpu.pipeline_mode<synchronous>, transform_indices = @transform_7, window_bounds = array<i64: 32, 64>}, {pipeline_mode = #tpu.pipeline_mode<synchronous>, transform_indices = @transform_8, window_bounds = array<i64: 32, 256>}, {transform_indices = @transform_9, window_bounds = array<i64: 128, 32>}, {transform_indices = @transform_10, window_bounds = array<i64: 128, 128>}, {transform_indices = @transform_11, window_bounds = array<i64: 128, 128>}, {transform_indices = @transform_12, window_bounds = array<i64: 128, 128>}]} {
    %c0 = arith.constant 0 : index
    %c0_0 = arith.constant 0 : index
    %0 = vector.load %arg1[%c0, %c0_0] : memref<128x256xf32, #tpu.memory_space<vmem>>, vector<128x256xf32>
    %cst = arith.constant dense<0.000000e+00> : vector<128xf32>
    %1 = vector.multi_reduction <add>, %0, %cst [1] : vector<128x256xf32> to vector<128xf32>
    %2 = vector.shape_cast %1 : vector<128xf32> to vector<128x1xf32>
    %cst_1 = arith.constant 0.000000e+00 : f32
    %3 = vector.broadcast %cst_1 : f32 to vector<128x1xf32>
    %4 = arith.cmpf ogt, %2, %3 : vector<128x1xf32>
    %cst_2 = arith.constant 1.000000e+00 : f32
    %5 = vector.broadcast %cst_2 : f32 to vector<128x1xf32>
    %6 = arith.select %4, %2, %5 : vector<128x1xi1>, vector<128x1xf32>
    %7 = tpu.reciprocal %6 : vector<128x1xf32> -> vector<128x1xf32>
    %8 = vector.broadcast %7 : vector<128x1xf32> to vector<128x256xf32>
    %9 = arith.mulf %0, %8 : vector<128x256xf32>
    %10 = arith.truncf %9 : vector<128x256xf32> to vector<128x256xbf16>
    %c0_3 = arith.constant 0 : index
    %c0_4 = arith.constant 0 : index
    %11 = vector.load %arg2[%c0_3, %c0_4] : memref<256x128xbf16, #tpu.memory_space<vmem>>, vector<256x128xbf16>
    %cst_5 = arith.constant dense<0.000000e+00> : vector<128x128xf32>
    %12 = tpu.matmul %10, %11, %cst_5 {dimension_numbers = #tpu.dot_dimension_numbers<[1], [0], [0], [1], [0, 0, 1, 1], [], []>} : vector<128x256xbf16>, vector<256x128xbf16>, vector<128x128xf32> -> vector<128x128xf32>
    %c0_6 = arith.constant 0 : index
    %c0_7 = arith.constant 0 : index
    %13 = vector.load %arg3[%c0_6, %c0_7] : memref<1x128xf32, #tpu.memory_space<vmem>>, vector<1x128xf32>
    %14 = vector.broadcast %13 : vector<1x128xf32> to vector<128x128xf32>
    %15 = arith.addf %12, %14 : vector<128x128xf32>
    %cst_8 = arith.constant 0.000000e+00 : f32
    %16 = vector.broadcast %cst_8 : f32 to vector<128x128xf32>
    %17 = arith.maximumf %15, %16 : vector<128x128xf32>
    %18 = arith.truncf %17 : vector<128x128xf32> to vector<128x128xbf16>
    %c0_9 = arith.constant 0 : index
    %c0_10 = arith.constant 0 : index
    %19 = vector.load %arg4[%c0_9, %c0_10] : memref<128x128xbf16, #tpu.memory_space<vmem>>, vector<128x128xbf16>
    %cst_11 = arith.constant dense<0.000000e+00> : vector<128x128xf32>
    %20 = tpu.matmul %18, %19, %cst_11 {dimension_numbers = #tpu.dot_dimension_numbers<[1], [0], [0], [1], [0, 0, 1, 1], [], []>} : vector<128x128xbf16>, vector<128x128xbf16>, vector<128x128xf32> -> vector<128x128xf32>
    %c0_12 = arith.constant 0 : index
    %c0_13 = arith.constant 0 : index
    %21 = vector.load %arg5[%c0_12, %c0_13] : memref<1x128xf32, #tpu.memory_space<vmem>>, vector<1x128xf32>
    %22 = vector.broadcast %21 : vector<1x128xf32> to vector<128x128xf32>
    %23 = arith.addf %20, %22 : vector<128x128xf32>
    %cst_14 = arith.constant 0.000000e+00 : f32
    %24 = vector.broadcast %cst_14 : f32 to vector<128x128xf32>
    %25 = arith.maximumf %23, %24 : vector<128x128xf32>
    %26 = arith.truncf %25 : vector<128x128xf32> to vector<128x128xbf16>
    %c0_15 = arith.constant 0 : index
    %c0_16 = arith.constant 0 : index
    %27 = vector.load %arg6[%c0_15, %c0_16] : memref<128x64xbf16, #tpu.memory_space<vmem>>, vector<128x64xbf16>
    %cst_17 = arith.constant dense<0.000000e+00> : vector<128x64xf32>
    %28 = tpu.matmul %26, %27, %cst_17 {dimension_numbers = #tpu.dot_dimension_numbers<[1], [0], [0], [1], [0, 0, 1, 1], [], []>} : vector<128x128xbf16>, vector<128x64xbf16>, vector<128x64xf32> -> vector<128x64xf32>
    %c0_18 = arith.constant 0 : index
    %c0_19 = arith.constant 0 : index
    %29 = vector.load %arg7[%c0_18, %c0_19] : memref<1x64xf32, #tpu.memory_space<vmem>>, vector<1x64xf32>
    %30 = vector.broadcast %29 : vector<1x64xf32> to vector<128x64xf32>
    %31 = arith.addf %28, %30 : vector<128x64xf32>
    %32 = vector.extract_strided_slice %31 {offsets = [0, 0], sizes = [128, 32], strides = [1, 1]} : vector<128x64xf32> to vector<128x32xf32>
    %33 = vector.extract_strided_slice %31 {offsets = [0, 32], sizes = [128, 32], strides = [1, 1]} : vector<128x64xf32> to vector<128x32xf32>
    %cst_20 = arith.constant 5.000000e-01 : f32
    %34 = vector.broadcast %cst_20 : f32 to vector<128x32xf32>
    %35 = arith.mulf %34, %33 : vector<128x32xf32>
    %36 = math.exp %35 : vector<128x32xf32>
    %c0_21 = arith.constant 0 : index
    %c0_22 = arith.constant 0 : index
    %37 = vector.load %arg10[%c0_21, %c0_22] : memref<128x32xf32, #tpu.memory_space<vmem>>, vector<128x32xf32>
    %38 = arith.mulf %37, %36 : vector<128x32xf32>
    %39 = arith.addf %32, %38 : vector<128x32xf32>
    %cst_23 = arith.constant dense<0xFF800000> : vector<128xf32>
    %40 = vector.multi_reduction <maximumf>, %39, %cst_23 [1] : vector<128x32xf32> to vector<128xf32>
    %41 = vector.shape_cast %40 : vector<128xf32> to vector<128x1xf32>
    %42 = vector.broadcast %41 : vector<128x1xf32> to vector<128x32xf32>
    %43 = arith.subf %39, %42 : vector<128x32xf32>
    %44 = math.exp %43 : vector<128x32xf32>
    %cst_24 = arith.constant dense<0.000000e+00> : vector<128xf32>
    %45 = vector.multi_reduction <add>, %44, %cst_24 [1] : vector<128x32xf32> to vector<128xf32>
    %46 = vector.shape_cast %45 : vector<128xf32> to vector<128x1xf32>
    %47 = tpu.reciprocal %46 : vector<128x1xf32> -> vector<128x1xf32>
    %48 = vector.broadcast %47 : vector<128x1xf32> to vector<128x32xf32>
    %49 = arith.mulf %44, %48 : vector<128x32xf32>
    %50 = arith.truncf %49 : vector<128x32xf32> to vector<128x32xbf16>
    %c0_25 = arith.constant 0 : index
    %c0_26 = arith.constant 0 : index
    %51 = vector.load %arg9[%c0_25, %c0_26] : memref<32x256xbf16, #tpu.memory_space<vmem>>, vector<32x256xbf16>
    %cst_27 = arith.constant dense<0.000000e+00> : vector<128x256xf32>
    %52 = tpu.matmul %50, %51, %cst_27 {dimension_numbers = #tpu.dot_dimension_numbers<[1], [0], [0], [1], [0, 0, 1, 1], [], []>} : vector<128x32xbf16>, vector<32x256xbf16>, vector<128x256xf32> -> vector<128x256xf32>
    %cst_28 = arith.constant 9.99999996E-13 : f32
    %53 = vector.broadcast %cst_28 : f32 to vector<128x256xf32>
    %54 = arith.addf %52, %53 : vector<128x256xf32>
    %55 = math.log %54 : vector<128x256xf32>
    %56 = arith.mulf %0, %55 : vector<128x256xf32>
    %cst_29 = arith.constant dense<0.000000e+00> : vector<128xf32>
    %57 = vector.multi_reduction <add>, %56, %cst_29 [1] : vector<128x256xf32> to vector<128xf32>
    %58 = vector.shape_cast %57 : vector<128xf32> to vector<128x1xf32>
    %cst_30 = arith.constant 0.000000e+00 : f32
    %59 = vector.broadcast %cst_30 : f32 to vector<128x1xf32>
    %60 = arith.subf %59, %58 : vector<128x1xf32>
    %cst_31 = arith.constant 1.000000e+00 : f32
    %61 = vector.broadcast %cst_31 : f32 to vector<128x32xf32>
    %62 = arith.addf %61, %33 : vector<128x32xf32>
    %63 = arith.mulf %32, %32 : vector<128x32xf32>
    %64 = arith.subf %62, %63 : vector<128x32xf32>
    %65 = arith.mulf %36, %36 : vector<128x32xf32>
    %66 = arith.subf %64, %65 : vector<128x32xf32>
    %cst_32 = arith.constant dense<0.000000e+00> : vector<128xf32>
    %67 = vector.multi_reduction <add>, %66, %cst_32 [1] : vector<128x32xf32> to vector<128xf32>
    %68 = vector.shape_cast %67 : vector<128xf32> to vector<128x1xf32>
    %cst_33 = arith.constant -5.000000e-01 : f32
    %69 = vector.broadcast %cst_33 : f32 to vector<128x1xf32>
    %70 = arith.mulf %69, %68 : vector<128x1xf32>
    %71 = arith.addf %60, %70 : vector<128x1xf32>
    %c0_34 = arith.constant 0 : index
    %c0_35 = arith.constant 0 : index
    %72 = vector.load %arg8[%c0_34, %c0_35] : memref<32x64xbf16, #tpu.memory_space<vmem>>, vector<32x64xbf16>
    %cst_36 = arith.constant dense<0.000000e+00> : vector<128x64xf32>
    %73 = tpu.matmul %50, %72, %cst_36 {dimension_numbers = #tpu.dot_dimension_numbers<[1], [0], [0], [1], [0, 0, 1, 1], [], []>} : vector<128x32xbf16>, vector<32x64xbf16>, vector<128x64xf32> -> vector<128x64xf32>
    %74 = vector.shape_cast %71 : vector<128x1xf32> to vector<128x1xf32>
    %75 = vector.broadcast %74 : vector<128x1xf32> to vector<128x128xf32>
    %c0_37 = arith.constant 0 : index
    %c0_38 = arith.constant 0 : index
    %76 = vector.load %arg11[%c0_37, %c0_38] : memref<128x128xf32, #tpu.memory_space<vmem>>, vector<128x128xf32>
    tpu.vector_store %arg11[%c0_37, %c0_38], %75 {strides = array<i32>} : memref<128x128xf32, #tpu.memory_space<vmem>>, vector<128x128xf32>,
    %cst_39 = arith.constant 0.000000e+00 : f32
    %77 = vector.broadcast %cst_39 : f32 to vector<128x96xf32>
    %78 = tpu.concatenate %49, %77 in 1 : vector<128x32xf32>, vector<128x96xf32> -> vector<128x128xf32>
    %c0_40 = arith.constant 0 : index
    %c0_41 = arith.constant 0 : index
    %79 = vector.load %arg12[%c0_40, %c0_41] : memref<128x128xf32, #tpu.memory_space<vmem>>, vector<128x128xf32>
    tpu.vector_store %arg12[%c0_40, %c0_41], %78 {strides = array<i32>} : memref<128x128xf32, #tpu.memory_space<vmem>>, vector<128x128xf32>,
    %cst_42 = arith.constant 0.000000e+00 : f32
    %80 = vector.broadcast %cst_42 : f32 to vector<128x64xf32>
    %81 = tpu.concatenate %73, %80 in 1 : vector<128x64xf32>, vector<128x64xf32> -> vector<128x128xf32>
    %c0_43 = arith.constant 0 : index
    %c0_44 = arith.constant 0 : index
    %82 = vector.load %arg13[%c0_43, %c0_44] : memref<128x128xf32, #tpu.memory_space<vmem>>, vector<128x128xf32>
    tpu.vector_store %arg13[%c0_43, %c0_44], %81 {strides = array<i32>} : memref<128x128xf32, #tpu.memory_space<vmem>>, vector<128x128xf32>,
    return
  }
  func.func @transform_0(%arg0: i32) -> (i32, i32) {
    %c0_i32 = arith.constant 0 : i32
    %c0_i32_0 = arith.constant 0 : i32
    return %arg0, %c0_i32 : i32, i32
  }
  func.func @transform_1(%arg0: i32) -> (i32, i32) {
    %c0_i32 = arith.constant 0 : i32
    %c0_i32_0 = arith.constant 0 : i32
    %c0_i32_1 = arith.constant 0 : i32
    return %c0_i32, %c0_i32_0 : i32, i32
  }
  func.func @transform_2(%arg0: i32) -> (i32, i32) {
    %c0_i32 = arith.constant 0 : i32
    %c0_i32_0 = arith.constant 0 : i32
    %c0_i32_1 = arith.constant 0 : i32
    return %c0_i32, %c0_i32_0 : i32, i32
  }
  func.func @transform_3(%arg0: i32) -> (i32, i32) {
    %c0_i32 = arith.constant 0 : i32
    %c0_i32_0 = arith.constant 0 : i32
    %c0_i32_1 = arith.constant 0 : i32
    return %c0_i32, %c0_i32_0 : i32, i32
  }
  func.func @transform_4(%arg0: i32) -> (i32, i32) {
    %c0_i32 = arith.constant 0 : i32
    %c0_i32_0 = arith.constant 0 : i32
    %c0_i32_1 = arith.constant 0 : i32
    return %c0_i32, %c0_i32_0 : i32, i32
  }
  func.func @transform_5(%arg0: i32) -> (i32, i32) {
    %c0_i32 = arith.constant 0 : i32
    %c0_i32_0 = arith.constant 0 : i32
    %c0_i32_1 = arith.constant 0 : i32
    return %c0_i32, %c0_i32_0 : i32, i32
  }
  func.func @transform_6(%arg0: i32) -> (i32, i32) {
    %c0_i32 = arith.constant 0 : i32
    %c0_i32_0 = arith.constant 0 : i32
    %c0_i32_1 = arith.constant 0 : i32
    return %c0_i32, %c0_i32_0 : i32, i32
  }
  func.func @transform_7(%arg0: i32) -> (i32, i32) {
    %c0_i32 = arith.constant 0 : i32
    %c0_i32_0 = arith.constant 0 : i32
    %c0_i32_1 = arith.constant 0 : i32
    return %c0_i32, %c0_i32_0 : i32, i32
  }
  func.func @transform_8(%arg0: i32) -> (i32, i32) {
    %c0_i32 = arith.constant 0 : i32
    %c0_i32_0 = arith.constant 0 : i32
    %c0_i32_1 = arith.constant 0 : i32
    return %c0_i32, %c0_i32_0 : i32, i32
  }
  func.func @transform_9(%arg0: i32) -> (i32, i32) {
    %c0_i32 = arith.constant 0 : i32
    %c0_i32_0 = arith.constant 0 : i32
    return %arg0, %c0_i32 : i32, i32
  }
  func.func @transform_10(%arg0: i32) -> (i32, i32) {
    %c0_i32 = arith.constant 0 : i32
    %c0_i32_0 = arith.constant 0 : i32
    return %arg0, %c0_i32 : i32, i32
  }
  func.func @transform_11(%arg0: i32) -> (i32, i32) {
    %c0_i32 = arith.constant 0 : i32
    %c0_i32_0 = arith.constant 0 : i32
    return %arg0, %c0_i32 : i32, i32
  }
  func.func @transform_12(%arg0: i32) -> (i32, i32) {
    %c0_i32 = arith.constant 0 : i32
    %c0_i32_0 = arith.constant 0 : i32
    return %arg0, %c0_i32 : i32, i32
  }
}

</mosaic_0001>

<llo_original>
// kernel: custom-call
$region0: #{custom-call}
  %s0 = inlined_call_operand.vmem [shape: f32[256], index: 0, kind: output, shape index: {}]

// kernel: etm_forward.2
$region0: #{etm_forward.2}
  #allocation0 [shape = 'u32[]', space=smem, size = 0x4, offset = 0x4, fixed_abs, tag = 'smem constant byte address 0x4 - core index']
  #allocation1 [shape = 'u32[72,128]{1,0:T(1,128)}', space=vmem, size = 0x9000, scoped, tag = 'internal scratch']
  %s0 = inlined_call_operand.vmem [shape: bf16[32,64], index: 0, kind: input, shape index: {}]
  %s1 = inlined_call_operand.vmem [shape: bf16[256,64], index: 1, kind: input, shape index: {}]
  %s2 = inlined_call_operand.vmem [shape: bf16[32,256], index: 2, kind: output, shape index: {}]
  %s3 = sld [smem:[#allocation0]]
  $region18: #{etm_forward.2} parent=0
    _
  %s5 = ssub.s32 1, %s3
  %s6 = scalar_select 0, %s5, %s3
  // Predicated region
  $region2: #{etm_forward.2} parent=0 // pred_check
    _
  $region3: #{etm_forward.2} parent=0 // pred_check_branch
    %8 = sbr.rel (0) target = $region5
  $region4: #{etm_forward.2} parent=0 // pred_region
    _
  $region5: #{etm_forward.2} parent=0 // pred_fallthru
    _
  // Predicated region
  $region6: #{etm_forward.2} parent=0 // pred_check
    _
  $region7: #{etm_forward.2} parent=0 // pred_check_branch
    %10 = sbr.rel (0) target = $region9
  $region8: #{etm_forward.2} parent=0 // pred_region
    _
  $region9: #{etm_forward.2} parent=0 // pred_fallthru
    _
  %v11 = vld [vmem:[%s0] sm:$0xf]
  %v12 = vld [vmem:[%s0 + $0x4] sm:$0xf]
  %v13 = vld [vmem:[%s0 + $0x8] sm:$0xf]
  %v14 = vld [vmem:[%s0 + $0xc] sm:$0xf]
  %v15 = vld [vmem:[%s1] sm:$0xf]
  %v16 = vld [vmem:[%s1 + $0x4] sm:$0xf]
  %v17 = vld [vmem:[%s1 + $0x8] sm:$0xf]
  %v18 = vld [vmem:[%s1 + $0xc] sm:$0xf]
  %v19 = vld [vmem:[%s1 + $0x10] sm:$0xf]
  %v20 = vld [vmem:[%s1 + $0x14] sm:$0xf]
  %v21 = vld [vmem:[%s1 + $0x18] sm:$0xf]
  %v22 = vld [vmem:[%s1 + $0x1c] sm:$0xf]
  %v23 = vld [vmem:[%s1 + $0x20] sm:$0xf]
  %v24 = vld [vmem:[%s1 + $0x24] sm:$0xf]
  %v25 = vld [vmem:[%s1 + $0x28] sm:$0xf]
  %v26 = vld [vmem:[%s1 + $0x2c] sm:$0xf]
  %v27 = vld [vmem:[%s1 + $0x30] sm:$0xf]
  %v28 = vld [vmem:[%s1 + $0x34] sm:$0xf]
  %v29 = vld [vmem:[%s1 + $0x38] sm:$0xf]
  %v30 = vld [vmem:[%s1 + $0x3c] sm:$0xf]
  %v31 = vld [vmem:[%s1 + $0x40] sm:$0xf]
  %v32 = vld [vmem:[%s1 + $0x44] sm:$0xf]
  %v33 = vld [vmem:[%s1 + $0x48] sm:$0xf]
  %v34 = vld [vmem:[%s1 + $0x4c] sm:$0xf]
  %v35 = vld [vmem:[%s1 + $0x50] sm:$0xf]
  %v36 = vld [vmem:[%s1 + $0x54] sm:$0xf]
  %v37 = vld [vmem:[%s1 + $0x58] sm:$0xf]
  %v38 = vld [vmem:[%s1 + $0x5c] sm:$0xf]
  %v39 = vld [vmem:[%s1 + $0x60] sm:$0xf]
  %v40 = vld [vmem:[%s1 + $0x64] sm:$0xf]
  %v41 = vld [vmem:[%s1 + $0x68] sm:$0xf]
  %v42 = vld [vmem:[%s1 + $0x6c] sm:$0xf]
  %v43 = vld [vmem:[%s1 + $0x70] sm:$0xf]
  %v44 = vld [vmem:[%s1 + $0x74] sm:$0xf]
  %v45 = vld [vmem:[%s1 + $0x78] sm:$0xf]
  %v46 = vld [vmem:[%s1 + $0x7c] sm:$0xf]
  %v51 = vunpack.c.l.b16 %v11
  %v52 = vunpack.c.l.b16 %v12
  %v53 = vunpack.c.l.b16 %v13
  %v54 = vunpack.c.l.b16 %v14
  %v55 = vpack.c.b16 %v52, %v51
  %v56 = vpack.c.b16 %v54, %v53
  %v89 = vunpack.c.l.b16 %v15
  %v90 = vunpack.c.l.b16 %v16
  %v91 = vunpack.c.l.b16 %v17
  %v92 = vunpack.c.l.b16 %v18
  %v93 = vunpack.c.l.b16 %v19
  %v94 = vunpack.c.l.b16 %v20
  %v95 = vunpack.c.l.b16 %v21
  %v96 = vunpack.c.l.b16 %v22
  %v97 = vunpack.c.l.b16 %v23
  %v98 = vunpack.c.l.b16 %v24
  %v99 = vunpack.c.l.b16 %v25
  %v100 = vunpack.c.l.b16 %v26
  %v101 = vunpack.c.l.b16 %v27
  %v102 = vunpack.c.l.b16 %v28
  %v103 = vunpack.c.l.b16 %v29
  %v104 = vunpack.c.l.b16 %v30
  %v105 = vunpack.c.l.b16 %v31
  %v106 = vunpack.c.l.b16 %v32
  %v107 = vunpack.c.l.b16 %v33
  %v108 = vunpack.c.l.b16 %v34
  %v109 = vunpack.c.l.b16 %v35
  %v110 = vunpack.c.l.b16 %v36
  %v111 = vunpack.c.l.b16 %v37
  %v112 = vunpack.c.l.b16 %v38
  %v113 = vunpack.c.l.b16 %v39
  %v114 = vunpack.c.l.b16 %v40
  %v115 = vunpack.c.l.b16 %v41
  %v116 = vunpack.c.l.b16 %v42
  %v117 = vunpack.c.l.b16 %v43
  %v118 = vunpack.c.l.b16 %v44
  %v119 = vunpack.c.l.b16 %v45
  %v120 = vunpack.c.l.b16 %v46
  %v121 = vpack.c.b16 %v90, %v89
  %v122 = vpack.c.b16 %v92, %v91
  %v123 = vpack.c.b16 %v94, %v93
  %v124 = vpack.c.b16 %v96, %v95
  %v125 = vpack.c.b16 %v98, %v97
  %v126 = vpack.c.b16 %v100, %v99
  %v127 = vpack.c.b16 %v102, %v101
  %v128 = vpack.c.b16 %v104, %v103
  %v129 = vpack.c.b16 %v106, %v105
  %v130 = vpack.c.b16 %v108, %v107
  %v131 = vpack.c.b16 %v110, %v109
  %v132 = vpack.c.b16 %v112, %v111
  %v133 = vpack.c.b16 %v114, %v113
  %v134 = vpack.c.b16 %v116, %v115
  %v135 = vpack.c.b16 %v118, %v117
  %v136 = vpack.c.b16 %v120, %v119
  %vm137 = vcmask 523264
  %v139 = vsel %vm137, %v55, 0
  %v142 = vsel %vm137, %v56, 0
  %v145 = vsel %vm137, %v121, 0
  %v148 = vsel %vm137, %v122, 0
  %v151 = vsel %vm137, %v123, 0
  %v154 = vsel %vm137, %v124, 0
  %v157 = vsel %vm137, %v125, 0
  %v160 = vsel %vm137, %v126, 0
  %v163 = vsel %vm137, %v127, 0
  %v166 = vsel %vm137, %v128, 0
  %v169 = vsel %vm137, %v129, 0
  %v172 = vsel %vm137, %v130, 0
  %v175 = vsel %vm137, %v131, 0
  %v178 = vsel %vm137, %v132, 0
  %v181 = vsel %vm137, %v133, 0
  %v184 = vsel %vm137, %v134, 0
  %v187 = vsel %vm137, %v135, 0
  %v190 = vsel %vm137, %v136, 0
  %192 = vmatpush.bf16.xpose.msra.mxu0 %v166
  %193 = vmatpush.bf16.xpose.msra.mxu0 %v163
  %194 = vmatpush.bf16.xpose.msra.mxu0 %v160
  %195 = vmatpush.bf16.xpose.msra.mxu0 %v157
  %196 = vmatpush.bf16.xpose.msra.mxu0 %v154
  %197 = vmatpush.bf16.xpose.msra.mxu0 %v151
  %198 = vmatpush.bf16.xpose.msra.mxu0 %v148
  %199 = vmatpush.bf16.xpose.msra.mxu0 %v145
  %200 = vmatmul.bf16.gmra.mxu0 %v139
  %v201 = vpop.f32.mrf.mxu0
  %v202 = vadd.f32 0.0, %v201
  %v203 = vpop.f32.mrf.mxu0
  %v204 = vadd.f32 0.0, %v203
  %205 = vmatmul.bf16.gmra.mxu0 %v142
  %v206 = vpop.f32.mrf.mxu0
  %v207 = vadd.f32 0.0, %v206
  %v208 = vpop.f32.mrf.mxu0
  %v209 = vadd.f32 0.0, %v208
  %210 = vdwg.mxu0
  %211 = vmatpush.bf16.xpose.msra.mxu0 %v190
  %212 = vmatpush.bf16.xpose.msra.mxu0 %v187
  %213 = vmatpush.bf16.xpose.msra.mxu0 %v184
  %214 = vmatpush.bf16.xpose.msra.mxu0 %v181
  %215 = vmatpush.bf16.xpose.msra.mxu0 %v178
  %216 = vmatpush.bf16.xpose.msra.mxu0 %v175
  %217 = vmatpush.bf16.xpose.msra.mxu0 %v172
  %218 = vmatpush.bf16.xpose.msra.mxu0 %v169
  %219 = vmatmul.bf16.gmra.mxu0 %v139
  %v220 = vpop.f32.mrf.mxu0
  %v221 = vadd.f32 0.0, %v220
  %v222 = vpop.f32.mrf.mxu0
  %v223 = vadd.f32 0.0, %v222
  %224 = vmatmul.bf16.gmra.mxu0 %v142
  %v225 = vpop.f32.mrf.mxu0
  %v226 = vadd.f32 0.0, %v225
  %v227 = vpop.f32.mrf.mxu0
  %v228 = vadd.f32 0.0, %v227
  %229 = vdwg.mxu0
  %v230 = vmax.f32 %v202, %v221
  %231 = vmax.xlane.f32.xlu0 %v230
  %v232 = vpop.xlane.xlu0 %231
  %v233 = vmax.f32 %v204, %v223
  %234 = vmax.xlane.f32.xlu0 %v233
  %v235 = vpop.xlane.xlu0 %234
  %v236 = vmax.f32 %v207, %v226
  %237 = vmax.xlane.f32.xlu0 %v236
  %v238 = vpop.xlane.xlu0 %237
  %v239 = vmax.f32 %v209, %v228
  %240 = vmax.xlane.f32.xlu0 %v239
  %v241 = vpop.xlane.xlu0 %240
  %v242 = vsub.f32 %v202, %v232
  %v243 = vsub.f32 %v221, %v232
  %v244 = vsub.f32 %v204, %v235
  %v245 = vsub.f32 %v223, %v235
  %v246 = vsub.f32 %v207, %v238
  %v247 = vsub.f32 %v226, %v238
  %v248 = vsub.f32 %v209, %v241
  %v249 = vsub.f32 %v228, %v241
  %v250 = vmul.f32 %v242, 1.442695
  %v251 = vpow.pop %v250
  %v252 = vmul.f32 %v243, 1.442695
  %v253 = vpow.pop %v252
  %v254 = vmul.f32 %v244, 1.442695
  %v255 = vpow.pop %v254
  %v256 = vmul.f32 %v245, 1.442695
  %v257 = vpow.pop %v256
  %v258 = vmul.f32 %v246, 1.442695
  %v259 = vpow.pop %v258
  %v260 = vmul.f32 %v247, 1.442695
  %v261 = vpow.pop %v260
  %v262 = vmul.f32 %v248, 1.442695
  %v263 = vpow.pop %v262
  %v264 = vmul.f32 %v249, 1.442695
  %v265 = vpow.pop %v264
  %v266 = vadd.f32 %v251, %v253
  %267 = vadd.xlane.f32.xlu0 %v266
  %v268 = vpop.xlane.xlu0 %267
  %v269 = vadd.f32 %v255, %v257
  %270 = vadd.xlane.f32.xlu0 %v269
  %v271 = vpop.xlane.xlu0 %270
  %v272 = vadd.f32 %v259, %v261
  %273 = vadd.xlane.f32.xlu0 %v272
  %v274 = vpop.xlane.xlu0 %273
  %v275 = vadd.f32 %v263, %v265
  %276 = vadd.xlane.f32.xlu0 %v275
  %v277 = vpop.xlane.xlu0 %276
  %v278 = vrcp.pop %v268
  %v279 = vmul.f32 %v268, %v278
  %v280 = vsub.f32 1.0, %v279
  %v281 = vmul.f32 %v278, %v280
  %v282 = vadd.f32 %v278, %v281
  %vm283 = vweird.f32 %v268
  %vm284 = vweird.f32 %v278
  %vm285 = vmor %vm283, %vm284
  %v286 = vsel %vm285, %v278, %v282
  %v287 = vand.u32 2147483647, %v268
  %vm288 = vcmp.eq.f32.partialorder %v287, 8.507059e+37
  %v289 = vand.u32 %v268, 2147483648
  %v290 = vor.u32 1.1754944e-38, %v289
  %v291 = vsel %vm288, %v290, %v286
  %v292 = vrcp.pop %v271
  %v293 = vmul.f32 %v271, %v292
  %v294 = vsub.f32 1.0, %v293
  %v295 = vmul.f32 %v292, %v294
  %v296 = vadd.f32 %v292, %v295
  %vm297 = vweird.f32 %v271
  %vm298 = vweird.f32 %v292
  %vm299 = vmor %vm297, %vm298
  %v300 = vsel %vm299, %v292, %v296
  %v301 = vand.u32 2147483647, %v271
  %vm302 = vcmp.eq.f32.partialorder %v301, 8.507059e+37
  %v303 = vand.u32 %v271, 2147483648
  %v304 = vor.u32 1.1754944e-38, %v303
  %v305 = vsel %vm302, %v304, %v300
  %v306 = vrcp.pop %v274
  %v307 = vmul.f32 %v274, %v306
  %v308 = vsub.f32 1.0, %v307
  %v309 = vmul.f32 %v306, %v308
  %v310 = vadd.f32 %v306, %v309
  %vm311 = vweird.f32 %v274
  %vm312 = vweird.f32 %v306
  %vm313 = vmor %vm311, %vm312
  %v314 = vsel %vm313, %v306, %v310
  %v315 = vand.u32 2147483647, %v274
  %vm316 = vcmp.eq.f32.partialorder %v315, 8.507059e+37
  %v317 = vand.u32 %v274, 2147483648
  %v318 = vor.u32 1.1754944e-38, %v317
  %v319 = vsel %vm316, %v318, %v314
  %v320 = vrcp.pop %v277
  %v321 = vmul.f32 %v277, %v320
  %v322 = vsub.f32 1.0, %v321
  %v323 = vmul.f32 %v320, %v322
  %v324 = vadd.f32 %v320, %v323
  %vm325 = vweird.f32 %v277
  %vm326 = vweird.f32 %v320
  %vm327 = vmor %vm325, %vm326
  %v328 = vsel %vm327, %v320, %v324
  %v329 = vand.u32 2147483647, %v277
  %vm330 = vcmp.eq.f32.partialorder %v329, 8.507059e+37
  %v331 = vand.u32 %v277, 2147483648
  %v332 = vor.u32 1.1754944e-38, %v331
  %v333 = vsel %vm330, %v332, %v328
  %v334 = vmul.f32 %v251, %v291
  %v335 = vmul.f32 %v253, %v291
  %v336 = vmul.f32 %v255, %v305
  %v337 = vmul.f32 %v257, %v305
  %v338 = vmul.f32 %v259, %v319
  %v339 = vmul.f32 %v261, %v319
  %v340 = vmul.f32 %v263, %v333
  %v341 = vmul.f32 %v265, %v333
  %v342 = vpack.c.bf16 %v335, %v334
  %v343 = vpack.c.bf16 %v337, %v336
  %v344 = vpack.c.bf16 %v339, %v338
  %v345 = vpack.c.bf16 %v341, %v340
  %346 = vst [vmem:[%s2] sm:$0xff] %v342
  %347 = vst [vmem:[%s2 + $0x8] sm:$0xff] %v343
  %348 = vst [vmem:[%s2 + $0x10] sm:$0xff] %v344
  %349 = vst [vmem:[%s2 + $0x18] sm:$0xff] %v345
  // Predicated region
  $region10: #{etm_forward.2} parent=0 // pred_check
    _
  $region11: #{etm_forward.2} parent=0 // pred_check_branch
    %351 = sbr.rel (0) target = $region13
  $region12: #{etm_forward.2} parent=0 // pred_region
    _
  $region13: #{etm_forward.2} parent=0 // pred_fallthru
    _
  // Predicated region
  $region14: #{etm_forward.2} parent=0 // pred_check
    _
  $region15: #{etm_forward.2} parent=0 // pred_check_branch
    %353 = sbr.rel (0) target = $region17
  $region16: #{etm_forward.2} parent=0 // pred_region
    _
  $region17: #{etm_forward.2} parent=0 // pred_fallthru
    _

// kernel: custom-call.5
$region0: #{custom-call.5}
  %s0 = inlined_call_operand.hbm [shape: f32[256], index: 0, kind: output, shape index: {}]

// kernel: etm_forward.3
$region0: #{etm_forward.3}
  #allocation0 [shape = 'u32[]', space=smem, size = 0x4, offset = 0x4, fixed_abs, tag = 'smem constant byte address 0x4 - core index']
  #allocation1 [shape = 'u32[72,128]{1,0:T(1,128)}', space=vmem, size = 0x9000, scoped, tag = 'internal scratch']
  %s0 = inlined_call_operand.vmem [shape: f32[256,256], index: 0, kind: input, shape index: {}]
  %s1 = inlined_call_operand.vmem [shape: bf16[256,128], index: 1, kind: input, shape index: {}]
  %s2 = inlined_call_operand.vmem [shape: f32[1,128], index: 2, kind: input, shape index: {}]
  %s3 = inlined_call_operand.vmem [shape: bf16[128,128], index: 3, kind: input, shape index: {}]
  %s4 = inlined_call_operand.vmem [shape: f32[1,128], index: 4, kind: input, shape index: {}]
  %s5 = inlined_call_operand.vmem [shape: bf16[128,64], index: 5, kind: input, shape index: {}]
  %s6 = inlined_call_operand.vmem [shape: f32[1,64], index: 6, kind: input, shape index: {}]
  %s7 = inlined_call_operand.vmem [shape: bf16[32,64], index: 7, kind: input, shape index: {}]
  %s8 = inlined_call_operand.vmem [shape: bf16[32,256], index: 8, kind: input, shape index: {}]
  %s9 = inlined_call_operand.vmem [shape: f32[256,32], index: 9, kind: input, shape index: {}]
  %s10 = inlined_call_operand.vmem [shape: f32[256,128], index: 10, kind: output, shape index: {0}]
  %s11 = inlined_call_operand.vmem [shape: f32[256,128], index: 11, kind: output, shape index: {1}]
  %s12 = inlined_call_operand.vmem [shape: f32[256,128], index: 12, kind: output, shape index: {2}]
  %13 = xla_tuple %s10, %s11, %s12
  %s14 = sld [smem:[#allocation0]]
  $region89: #{etm_forward.3} parent=0
    _
  %s16 = ssub.s32 1, %s14
  %s17 = scalar_select 0, %s16, %s14
  loop: start=0, step=1, limit=4
  $region2: #{etm_forward.3} parent=0 // loop_pre_header
    _
  $region3: #{etm_forward.3} parent=0 // loop_header
    %s19 = sphi 0, %s23
    %p20 = scmp.ge.s32.totalorder %s19, 4
    %s29 = sphi 0, %s31
    %s32 = sphi 0, %s29
    %s33 = sphi 0, %s32
    %s49 = sphi 0, %s33
    %s53 = sphi 0, %s53
    %s55 = sphi 0, %s53
    %s56 = sphi 0, %s55
    %s70 = sphi 0, %s56
    %s74 = sphi 0, %s74
    %s76 = sphi 0, %s74
    %s77 = sphi 0, %s76
    %s91 = sphi 0, %s77
    %s95 = sphi 0, %s95
    %s97 = sphi 0, %s95
    %s98 = sphi 0, %s97
    %s112 = sphi 0, %s98
    %s116 = sphi 0, %s116
    %s118 = sphi 0, %s116
    %s119 = sphi 0, %s118
    %s133 = sphi 0, %s119
    %s137 = sphi 0, %s137
    %s139 = sphi 0, %s137
    %s140 = sphi 0, %s139
    %s154 = sphi 0, %s140
    %s158 = sphi 0, %s158
    %s160 = sphi 0, %s158
    %s161 = sphi 0, %s160
    %s175 = sphi 0, %s161
    %s179 = sphi 0, %s179
    %s181 = sphi 0, %s179
    %s182 = sphi 0, %s181
    %s196 = sphi 0, %s182
    %s200 = sphi 0, %s200
    %s202 = sphi 0, %s200
    %s203 = sphi 0, %s202
    %s217 = sphi 0, %s203
    %s223 = sphi 0, %s225
    %s226 = sphi 0, %s223
    %s227 = sphi 0, %s226
    %s243 = sphi 0, %s227
    %s249 = sphi 0, %s251
    %s252 = sphi 0, %s249
    %s253 = sphi 0, %s252
    %s269 = sphi 0, %s253
    %s275 = sphi 0, %s277
    %s278 = sphi 0, %s275
    %s279 = sphi 0, %s278
    %s295 = sphi 0, %s279
    %s301 = sphi 0, %s303
    %s304 = sphi 0, %s301
    %s305 = sphi 0, %s304
    %s321 = sphi 0, %s305
  $region4: #{etm_forward.3} parent=0 // loop_header_branch
    %22 = sbr.rel (%p20) target = $region8
  $region5: #{etm_forward.3} parent=0 // loop_body
    %s24 = ssub.s32 %s19, 1
    %s25 = ssub.s32 %s19, 2
    %s26 = sadd.s32 %s19, 1
    %s27 = ssub.s32 %s19, %s26
    %p28 = scmp.eq.s32.totalorder %s27, 0
    %s30 = sadd.s32 %s29, 1
    %s31 = scalar_select %p28, %s29, %s30
    %p34 = pneg %p28
    %p35 = scmp.eq.s32.totalorder %s19, 1
    %p36 = por %p34, %p35
    %p37 = scmp.ne.s32.totalorder %s29, %s32
    %p38 = scmp.eq.s32.totalorder %s19, 0
    %p39 = por %p37, %p38
    %p40 = scmp.ne.s32.totalorder %s29, %s32
    %p41 = scmp.eq.s32.totalorder %s24, 1
    %p42 = por %p40, %p41
    %p43 = scmp.ne.s32.totalorder %s32, %s33
    %p44 = scmp.eq.s32.totalorder %s24, 0
    %p45 = por %p43, %p44
    %p46 = scmp.ne.s32.totalorder %s32, %s33
    %p47 = scmp.eq.s32.totalorder %s25, 1
    %p48 = por %p46, %p47
    %p50 = scmp.ne.s32.totalorder %s33, %s49
    %p51 = scmp.eq.s32.totalorder %s25, 0
    %p52 = por %p50, %p51
    %s54 = sadd.s32 %s53, 1
    %p57 = scmp.eq.s32.totalorder %s19, 1
    %p58 = scmp.ne.s32.totalorder %s53, %s55
    %p59 = scmp.eq.s32.totalorder %s19, 0
    %p60 = por %p58, %p59
    %p61 = scmp.ne.s32.totalorder %s53, %s55
    %p62 = scmp.eq.s32.totalorder %s24, 1
    %p63 = por %p61, %p62
    %p64 = scmp.ne.s32.totalorder %s55, %s56
    %p65 = scmp.eq.s32.totalorder %s24, 0
    %p66 = por %p64, %p65
    %p67 = scmp.ne.s32.totalorder %s55, %s56
    %p68 = scmp.eq.s32.totalorder %s25, 1
    %p69 = por %p67, %p68
    %p71 = scmp.ne.s32.totalorder %s56, %s70
    %p72 = scmp.eq.s32.totalorder %s25, 0
    %p73 = por %p71, %p72
    %s75 = sadd.s32 %s74, 1
    %p78 = scmp.eq.s32.totalorder %s19, 1
    %p79 = scmp.ne.s32.totalorder %s74, %s76
    %p80 = scmp.eq.s32.totalorder %s19, 0
    %p81 = por %p79, %p80
    %p82 = scmp.ne.s32.totalorder %s74, %s76
    %p83 = scmp.eq.s32.totalorder %s24, 1
    %p84 = por %p82, %p83
    %p85 = scmp.ne.s32.totalorder %s76, %s77
    %p86 = scmp.eq.s32.totalorder %s24, 0
    %p87 = por %p85, %p86
    %p88 = scmp.ne.s32.totalorder %s76, %s77
    %p89 = scmp.eq.s32.totalorder %s25, 1
    %p90 = por %p88, %p89
    %p92 = scmp.ne.s32.totalorder %s77, %s91
    %p93 = scmp.eq.s32.totalorder %s25, 0
    %p94 = por %p92, %p93
    %s96 = sadd.s32 %s95, 1
    %p99 = scmp.eq.s32.totalorder %s19, 1
    %p100 = scmp.ne.s32.totalorder %s95, %s97
    %p101 = scmp.eq.s32.totalorder %s19, 0
    %p102 = por %p100, %p101
    %p103 = scmp.ne.s32.totalorder %s95, %s97
    %p104 = scmp.eq.s32.totalorder %s24, 1
    %p105 = por %p103, %p104
    %p106 = scmp.ne.s32.totalorder %s97, %s98
    %p107 = scmp.eq.s32.totalorder %s24, 0
    %p108 = por %p106, %p107
    %p109 = scmp.ne.s32.totalorder %s97, %s98
    %p110 = scmp.eq.s32.totalorder %s25, 1
    %p111 = por %p109, %p110
    %p113 = scmp.ne.s32.totalorder %s98, %s112
    %p114 = scmp.eq.s32.totalorder %s25, 0
    %p115 = por %p113, %p114
    %s117 = sadd.s32 %s116, 1
    %p120 = scmp.eq.s32.totalorder %s19, 1
    %p121 = scmp.ne.s32.totalorder %s116, %s118
    %p122 = scmp.eq.s32.totalorder %s19, 0
    %p123 = por %p121, %p122
    %p124 = scmp.ne.s32.totalorder %s116, %s118
    %p125 = scmp.eq.s32.totalorder %s24, 1
    %p126 = por %p124, %p125
    %p127 = scmp.ne.s32.totalorder %s118, %s119
    %p128 = scmp.eq.s32.totalorder %s24, 0
    %p129 = por %p127, %p128
    %p130 = scmp.ne.s32.totalorder %s118, %s119
    %p131 = scmp.eq.s32.totalorder %s25, 1
    %p132 = por %p130, %p131
    %p134 = scmp.ne.s32.totalorder %s119, %s133
    %p135 = scmp.eq.s32.totalorder %s25, 0
    %p136 = por %p134, %p135
    %s138 = sadd.s32 %s137, 1
    %p141 = scmp.eq.s32.totalorder %s19, 1
    %p142 = scmp.ne.s32.totalorder %s137, %s139
    %p143 = scmp.eq.s32.totalorder %s19, 0
    %p144 = por %p142, %p143
    %p145 = scmp.ne.s32.totalorder %s137, %s139
    %p146 = scmp.eq.s32.totalorder %s24, 1
    %p147 = por %p145, %p146
    %p148 = scmp.ne.s32.totalorder %s139, %s140
    %p149 = scmp.eq.s32.totalorder %s24, 0
    %p150 = por %p148, %p149
    %p151 = scmp.ne.s32.totalorder %s139, %s140
    %p152 = scmp.eq.s32.totalorder %s25, 1
    %p153 = por %p151, %p152
    %p155 = scmp.ne.s32.totalorder %s140, %s154
    %p156 = scmp.eq.s32.totalorder %s25, 0
    %p157 = por %p155, %p156
    %s159 = sadd.s32 %s158, 1
    %p162 = scmp.eq.s32.totalorder %s19, 1
    %p163 = scmp.ne.s32.totalorder %s158, %s160
    %p164 = scmp.eq.s32.totalorder %s19, 0
    %p165 = por %p163, %p164
    %p166 = scmp.ne.s32.totalorder %s158, %s160
    %p167 = scmp.eq.s32.totalorder %s24, 1
    %p168 = por %p166, %p167
    %p169 = scmp.ne.s32.totalorder %s160, %s161
    %p170 = scmp.eq.s32.totalorder %s24, 0
    %p171 = por %p169, %p170
    %p172 = scmp.ne.s32.totalorder %s160, %s161
    %p173 = scmp.eq.s32.totalorder %s25, 1
    %p174 = por %p172, %p173
    %p176 = scmp.ne.s32.totalorder %s161, %s175
    %p177 = scmp.eq.s32.totalorder %s25, 0
    %p178 = por %p176, %p177
    %s180 = sadd.s32 %s179, 1
    %p183 = scmp.eq.s32.totalorder %s19, 1
    %p184 = scmp.ne.s32.totalorder %s179, %s181
    %p185 = scmp.eq.s32.totalorder %s19, 0
    %p186 = por %p184, %p185
    %p187 = scmp.ne.s32.totalorder %s179, %s181
    %p188 = scmp.eq.s32.totalorder %s24, 1
    %p189 = por %p187, %p188
    %p190 = scmp.ne.s32.totalorder %s181, %s182
    %p191 = scmp.eq.s32.totalorder %s24, 0
    %p192 = por %p190, %p191
    %p193 = scmp.ne.s32.totalorder %s181, %s182
    %p194 = scmp.eq.s32.totalorder %s25, 1
    %p195 = por %p193, %p194
    %p197 = scmp.ne.s32.totalorder %s182, %s196
    %p198 = scmp.eq.s32.totalorder %s25, 0
    %p199 = por %p197, %p198
    %s201 = sadd.s32 %s200, 1
    %p204 = scmp.eq.s32.totalorder %s19, 1
    %p205 = scmp.ne.s32.totalorder %s200, %s202
    %p206 = scmp.eq.s32.totalorder %s19, 0
    %p207 = por %p205, %p206
    %p208 = scmp.ne.s32.totalorder %s200, %s202
    %p209 = scmp.eq.s32.totalorder %s24, 1
    %p210 = por %p208, %p209
    %p211 = scmp.ne.s32.totalorder %s202, %s203
    %p212 = scmp.eq.s32.totalorder %s24, 0
    %p213 = por %p211, %p212
    %p214 = scmp.ne.s32.totalorder %s202, %s203
    %p215 = scmp.eq.s32.totalorder %s25, 1
    %p216 = por %p214, %p215
    %p218 = scmp.ne.s32.totalorder %s203, %s217
    %p219 = scmp.eq.s32.totalorder %s25, 0
    %p220 = por %p218, %p219
    %s221 = ssub.s32 %s19, %s26
    %p222 = scmp.eq.s32.totalorder %s221, 0
    %s224 = sadd.s32 %s223, 1
    %s225 = scalar_select %p222, %s223, %s224
    %p228 = pneg %p222
    %p229 = scmp.eq.s32.totalorder %s19, 1
    %p230 = por %p228, %p229
    %p231 = scmp.ne.s32.totalorder %s223, %s226
    %p232 = scmp.eq.s32.totalorder %s19, 0
    %p233 = por %p231, %p232
    %p234 = scmp.ne.s32.totalorder %s223, %s226
    %p235 = scmp.eq.s32.totalorder %s24, 1
    %p236 = por %p234, %p235
    %p237 = scmp.ne.s32.totalorder %s226, %s227
    %p238 = scmp.eq.s32.totalorder %s24, 0
    %p239 = por %p237, %p238
    %p240 = scmp.ne.s32.totalorder %s226, %s227
    %p241 = scmp.eq.s32.totalorder %s25, 1
    %p242 = por %p240, %p241
    %p244 = scmp.ne.s32.totalorder %s227, %s243
    %p245 = scmp.eq.s32.totalorder %s25, 0
    %p246 = por %p244, %p245
    %s247 = ssub.s32 %s19, %s26
    %p248 = scmp.eq.s32.totalorder %s247, 0
    %s250 = sadd.s32 %s249, 1
    %s251 = scalar_select %p248, %s249, %s250
    %p254 = pneg %p248
    %p255 = scmp.eq.s32.totalorder %s19, 1
    %p256 = por %p254, %p255
    %p257 = scmp.ne.s32.totalorder %s249, %s252
    %p258 = scmp.eq.s32.totalorder %s19, 0
    %p259 = por %p257, %p258
    %p260 = scmp.ne.s32.totalorder %s249, %s252
    %p261 = scmp.eq.s32.totalorder %s24, 1
    %p262 = por %p260, %p261
    %p263 = scmp.ne.s32.totalorder %s252, %s253
    %p264 = scmp.eq.s32.totalorder %s24, 0
    %p265 = por %p263, %p264
    %p266 = scmp.ne.s32.totalorder %s252, %s253
    %p267 = scmp.eq.s32.totalorder %s25, 1
    %p268 = por %p266, %p267
    %p270 = scmp.ne.s32.totalorder %s253, %s269
    %p271 = scmp.eq.s32.totalorder %s25, 0
    %p272 = por %p270, %p271
    %s273 = ssub.s32 %s19, %s26
    %p274 = scmp.eq.s32.totalorder %s273, 0
    %s276 = sadd.s32 %s275, 1
    %s277 = scalar_select %p274, %s275, %s276
    %p280 = pneg %p274
    %p281 = scmp.eq.s32.totalorder %s19, 1
    %p282 = por %p280, %p281
    %p283 = scmp.ne.s32.totalorder %s275, %s278
    %p284 = scmp.eq.s32.totalorder %s19, 0
    %p285 = por %p283, %p284
    %p286 = scmp.ne.s32.totalorder %s275, %s278
    %p287 = scmp.eq.s32.totalorder %s24, 1
    %p288 = por %p286, %p287
    %p289 = scmp.ne.s32.totalorder %s278, %s279
    %p290 = scmp.eq.s32.totalorder %s24, 0
    %p291 = por %p289, %p290
    %p292 = scmp.ne.s32.totalorder %s278, %s279
    %p293 = scmp.eq.s32.totalorder %s25, 1
    %p294 = por %p292, %p293
    %p296 = scmp.ne.s32.totalorder %s279, %s295
    %p297 = scmp.eq.s32.totalorder %s25, 0
    %p298 = por %p296, %p297
    %s299 = ssub.s32 %s19, %s26
    %p300 = scmp.eq.s32.totalorder %s299, 0
    %s302 = sadd.s32 %s301, 1
    %s303 = scalar_select %p300, %s301, %s302
    %p306 = pneg %p300
    %p307 = scmp.eq.s32.totalorder %s19, 1
    %p308 = por %p306, %p307
    %p309 = scmp.ne.s32.totalorder %s301, %s304
    %p310 = scmp.eq.s32.totalorder %s19, 0
    %p311 = por %p309, %p310
    %p312 = scmp.ne.s32.totalorder %s301, %s304
    %p313 = scmp.eq.s32.totalorder %s24, 1
    %p314 = por %p312, %p313
    %p315 = scmp.ne.s32.totalorder %s304, %s305
    %p316 = scmp.eq.s32.totalorder %s24, 0
    %p317 = por %p315, %p316
    %p318 = scmp.ne.s32.totalorder %s304, %s305
    %p319 = scmp.eq.s32.totalorder %s25, 1
    %p320 = por %p318, %p319
    %p322 = scmp.ne.s32.totalorder %s305, %s321
    %p323 = scmp.eq.s32.totalorder %s25, 0
    %p324 = por %p322, %p323
    %p325 = scmp.le.s32.totalorder 1, %s19
    %p326 = scmp.lt.s32.totalorder %s19, 3
    %p327 = pnand %p325, %p326
    %p328 = pneg %p327
    // Predicated region
    $region9: #{etm_forward.3} parent=5 // pred_check
      _
    $region10: #{etm_forward.3} parent=5 // pred_check_branch
      %330 = sbr.rel (%p327) target = $region12
    $region11: #{etm_forward.3} parent=5 // pred_region
      %s331 = ssub.s32 %s19, 1
      // Predicated region
      $region13: #{etm_forward.3} parent=11 // pred_check
        %p332 = pneg %p66
      $region14: #{etm_forward.3} parent=11 // pred_check_branch
        %334 = sbr.rel (%p332) target = $region16
      $region15: #{etm_forward.3} parent=11 // pred_region
        _
      $region16: #{etm_forward.3} parent=11 // pred_fallthru
        _
      // Predicated region
      $region17: #{etm_forward.3} parent=11 // pred_check
        %p335 = pneg %p87
      $region18: #{etm_forward.3} parent=11 // pred_check_branch
        %337 = sbr.rel (%p335) target = $region20
      $region19: #{etm_forward.3} parent=11 // pred_region
        _
      $region20: #{etm_forward.3} parent=11 // pred_fallthru
        _
      // Predicated region
      $region21: #{etm_forward.3} parent=11 // pred_check
        %p338 = pneg %p108
      $region22: #{etm_forward.3} parent=11 // pred_check_branch
        %340 = sbr.rel (%p338) target = $region24
      $region23: #{etm_forward.3} parent=11 // pred_region
        _
      $region24: #{etm_forward.3} parent=11 // pred_fallthru
        _
      // Predicated region
      $region25: #{etm_forward.3} parent=11 // pred_check
        %p341 = pneg %p129
      $region26: #{etm_forward.3} parent=11 // pred_check_branch
        %343 = sbr.rel (%p341) target = $region28
      $region27: #{etm_forward.3} parent=11 // pred_region
        _
      $region28: #{etm_forward.3} parent=11 // pred_fallthru
        _
      // Predicated region
      $region29: #{etm_forward.3} parent=11 // pred_check
        %p344 = pneg %p150
      $region30: #{etm_forward.3} parent=11 // pred_check_branch
        %346 = sbr.rel (%p344) target = $region32
      $region31: #{etm_forward.3} parent=11 // pred_region
        _
      $region32: #{etm_forward.3} parent=11 // pred_fallthru
        _
      // Predicated region
      $region33: #{etm_forward.3} parent=11 // pred_check
        %p347 = pneg %p171
      $region34: #{etm_forward.3} parent=11 // pred_check_branch
        %349 = sbr.rel (%p347) target = $region36
      $region35: #{etm_forward.3} parent=11 // pred_region
        _
      $region36: #{etm_forward.3} parent=11 // pred_fallthru
        _
      // Predicated region
      $region37: #{etm_forward.3} parent=11 // pred_check
        %p350 = pneg %p192
      $region38: #{etm_forward.3} parent=11 // pred_check_branch
        %352 = sbr.rel (%p350) target = $region40
      $region39: #{etm_forward.3} parent=11 // pred_region
        _
      $region40: #{etm_forward.3} parent=11 // pred_fallthru
        _
      // Predicated region
      $region41: #{etm_forward.3} parent=11 // pred_check
        %p353 = pneg %p213
      $region42: #{etm_forward.3} parent=11 // pred_check_branch
        %355 = sbr.rel (%p353) target = $region44
      $region43: #{etm_forward.3} parent=11 // pred_region
        _
      $region44: #{etm_forward.3} parent=11 // pred_fallthru
        _
    $region12: #{etm_forward.3} parent=5 // pred_fallthru
      _
    %p356 = scmp.lt.s32.totalorder %s19, 2
    // Predicated region
    $region45: #{etm_forward.3} parent=5 // pred_check
      %p357 = pneg %p356
    $region46: #{etm_forward.3} parent=5 // pred_check_branch
      %359 = sbr.rel (%p357) target = $region48
    $region47: #{etm_forward.3} parent=5 // pred_region
      // Predicated region
      $region49: #{etm_forward.3} parent=47 // pred_check
        %p360 = pneg %p39
      $region50: #{etm_forward.3} parent=47 // pred_check_branch
        %362 = sbr.rel (%p360) target = $region52
      $region51: #{etm_forward.3} parent=47 // pred_region
        %s363 = smul.u32 16, %s19
        %p364 = scmp.lt.s32.totalorder %s363, 31
        %s365 = scalar_select %p364, %s363, 31
        %s366 = smul.addr %s365, 2
        %s367 = smul.addr %s366, 8
        %s368 = scalar_lea.vmem %s0, %s367
        %s369 = smul.u32 16, %s19
      $region52: #{etm_forward.3} parent=47 // pred_fallthru
        _
      // Predicated region
      $region53: #{etm_forward.3} parent=47 // pred_check
        %p370 = pneg %p233
      $region54: #{etm_forward.3} parent=47 // pred_check_branch
        %372 = sbr.rel (%p370) target = $region56
      $region55: #{etm_forward.3} parent=47 // pred_region
        %s373 = smul.u32 16, %s19
        %p374 = scmp.lt.s32.totalorder %s373, 31
        %s375 = scalar_select %p374, %s373, 31
        %s376 = smul.addr %s375, 8
        %s377 = scalar_lea.vmem %s9, %s376
        %s378 = smul.u32 16, %s19
      $region56: #{etm_forward.3} parent=47 // pred_fallthru
        _
    $region48: #{etm_forward.3} parent=5 // pred_fallthru
      _
    %p379 = scmp.le.s32.totalorder 1, %s19
    %p380 = scmp.lt.s32.totalorder %s19, 3
    %p381 = pnand %p379, %p380
    %p382 = pneg %p381
    // Predicated region
    $region57: #{etm_forward.3} parent=5 // pred_check
      _
    $region58: #{etm_forward.3} parent=5 // pred_check_branch
      %384 = sbr.rel (%p381) target = $region60
    $region59: #{etm_forward.3} parent=5 // pred_region
      %s385 = ssub.s32 %s19, 1
      %s386 = smul.u32 16, %s24
      %p387 = scmp.lt.s32.totalorder %s386, 31
      %s388 = scalar_select %p387, %s386, 31
      %s389 = smul.addr %s388, 2
      %s390 = smul.addr %s389, 8
      %s391 = scalar_lea.vmem %s0, %s390
      %p392 = pneg %p45
      %p393 = pneg %p42
      %p394 = pneg %p66
      %p395 = pneg %p63
      %p396 = pneg %p87
      %p397 = pneg %p84
      %p398 = pneg %p108
      %p399 = pneg %p105
      %p400 = pneg %p129
      %p401 = pneg %p126
      %p402 = pneg %p150
      %p403 = pneg %p147
      %p404 = pneg %p171
      %p405 = pneg %p168
      %p406 = pneg %p192
      %p407 = pneg %p189
      %p408 = pneg %p213
      %p409 = pneg %p210
      %s410 = smul.u32 16, %s24
      %p411 = scmp.lt.s32.totalorder %s410, 31
      %s412 = scalar_select %p411, %s410, 31
      %s413 = smul.addr %s412, 8
      %s414 = scalar_lea.vmem %s9, %s413
      %p415 = pneg %p239
      %p416 = pneg %p236
      %p417 = pneg %p265
      %p418 = pneg %p262
      %s419 = smul.u32 16, %s24
      %p420 = scmp.lt.s32.totalorder %s419, 31
      %s421 = scalar_select %p420, %s419, 31
      %s422 = smul.addr %s421, 8
      %s423 = scalar_lea.vmem %s10, %s422
      %p424 = pneg %p291
      %p425 = pneg %p288
      %s426 = smul.u32 16, %s24
      %p427 = scmp.lt.s32.totalorder %s426, 31
      %s428 = scalar_select %p427, %s426, 31
      %s429 = smul.addr %s428, 8
      %s430 = scalar_lea.vmem %s11, %s429
      %p431 = pneg %p317
      %p432 = pneg %p314
      %s433 = smul.u32 16, %s24
      %p434 = scmp.lt.s32.totalorder %s433, 31
      %s435 = scalar_select %p434, %s433, 31
      %s436 = smul.addr %s435, 8
      %s437 = scalar_lea.vmem %s12, %s436
      %s438 = smul.u32 16, %s24
      %p439 = scmp.lt.s32.totalorder %s438, 31
      %s440 = scalar_select %p439, %s438, 31
      %s441 = smul.addr %s440, 2
      %s442 = smul.addr %s441, 8
      %s443 = scalar_lea.vmem %s0, %s442
      %s444 = smul.u32 16, %s24
      %s445 = smul.u32 16, %s24
      %p446 = scmp.lt.s32.totalorder %s445, 31
      %s447 = scalar_select %p446, %s445, 31
      %s448 = smul.addr %s447, 8
      %s449 = scalar_lea.vmem %s9, %s448
      %s450 = smul.u32 16, %s24
      %s451 = smul.u32 16, %s24
      %p452 = scmp.lt.s32.totalorder %s451, 31
      %s453 = scalar_select %p452, %s451, 31
      %s454 = smul.addr %s453, 8
      %s455 = scalar_lea.vmem %s10, %s454
      %s456 = smul.u32 16, %s24
      %s457 = smul.u32 16, %s24
      %p458 = scmp.lt.s32.totalorder %s457, 31
      %s459 = scalar_select %p458, %s457, 31
      %s460 = smul.addr %s459, 8
      %s461 = scalar_lea.vmem %s11, %s460
      %s462 = smul.u32 16, %s24
      %s463 = smul.u32 16, %s24
      %p464 = scmp.lt.s32.totalorder %s463, 31
      %s465 = scalar_select %p464, %s463, 31
      %s466 = smul.addr %s465, 8
      %s467 = scalar_lea.vmem %s12, %s466
      %s468 = smul.u32 16, %s24
      %v470 = vld [vmem:[%s443] sm:$0xff]
      %v471 = vld [vmem:[%s443 + $0x8] sm:$0xff]
      %v472 = vld [vmem:[%s443 + $0x10] sm:$0xff]
      %v473 = vld [vmem:[%s443 + $0x18] sm:$0xff]
      %v474 = vld [vmem:[%s443 + $0x20] sm:$0xff]
      %v475 = vld [vmem:[%s443 + $0x28] sm:$0xff]
      %v476 = vld [vmem:[%s443 + $0x30] sm:$0xff]
      %v477 = vld [vmem:[%s443 + $0x38] sm:$0xff]
      %v478 = vld [vmem:[%s443 + $0x40] sm:$0xff]
      %v479 = vld [vmem:[%s443 + $0x48] sm:$0xff]
      %v480 = vld [vmem:[%s443 + $0x50] sm:$0xff]
      %v481 = vld [vmem:[%s443 + $0x58] sm:$0xff]
      %v482 = vld [vmem:[%s443 + $0x60] sm:$0xff]
      %v483 = vld [vmem:[%s443 + $0x68] sm:$0xff]
      %v484 = vld [vmem:[%s443 + $0x70] sm:$0xff]
      %v485 = vld [vmem:[%s443 + $0x78] sm:$0xff]
      %v486 = vld [vmem:[%s443 + $0x80] sm:$0xff]
      %v487 = vld [vmem:[%s443 + $0x88] sm:$0xff]
      %v488 = vld [vmem:[%s443 + $0x90] sm:$0xff]
      %v489 = vld [vmem:[%s443 + $0x98] sm:$0xff]
      %v490 = vld [vmem:[%s443 + $0xa0] sm:$0xff]
      %v491 = vld [vmem:[%s443 + $0xa8] sm:$0xff]
      %v492 = vld [vmem:[%s443 + $0xb0] sm:$0xff]
      %v493 = vld [vmem:[%s443 + $0xb8] sm:$0xff]
      %v494 = vld [vmem:[%s443 + $0xc0] sm:$0xff]
      %v495 = vld [vmem:[%s443 + $0xc8] sm:$0xff]
      %v496 = vld [vmem:[%s443 + $0xd0] sm:$0xff]
      %v497 = vld [vmem:[%s443 + $0xd8] sm:$0xff]
      %v498 = vld [vmem:[%s443 + $0xe0] sm:$0xff]
      %v499 = vld [vmem:[%s443 + $0xe8] sm:$0xff]
      %v500 = vld [vmem:[%s443 + $0xf0] sm:$0xff]
      %v501 = vld [vmem:[%s443 + $0xf8] sm:$0xff]
      %v502 = vadd.f32 %v470, %v471
      %503 = vadd.xlane.f32.xlu0 %v502
      %v504 = vpop.xlane.xlu0 %503
      %v505 = vadd.f32 %v472, %v473
      %506 = vadd.xlane.f32.xlu0 %v505
      %v507 = vpop.xlane.xlu0 %506
      %v508 = vadd.f32 %v474, %v475
      %509 = vadd.xlane.f32.xlu0 %v508
      %v510 = vpop.xlane.xlu0 %509
      %v511 = vadd.f32 %v476, %v477
      %512 = vadd.xlane.f32.xlu0 %v511
      %v513 = vpop.xlane.xlu0 %512
      %v514 = vadd.f32 %v478, %v479
      %515 = vadd.xlane.f32.xlu0 %v514
      %v516 = vpop.xlane.xlu0 %515
      %v517 = vadd.f32 %v480, %v481
      %518 = vadd.xlane.f32.xlu0 %v517
      %v519 = vpop.xlane.xlu0 %518
      %v520 = vadd.f32 %v482, %v483
      %521 = vadd.xlane.f32.xlu0 %v520
      %v522 = vpop.xlane.xlu0 %521
      %v523 = vadd.f32 %v484, %v485
      %524 = vadd.xlane.f32.xlu0 %v523
      %v525 = vpop.xlane.xlu0 %524
      %v526 = vadd.f32 %v486, %v487
      %527 = vadd.xlane.f32.xlu0 %v526
      %v528 = vpop.xlane.xlu0 %527
      %v529 = vadd.f32 %v488, %v489
      %530 = vadd.xlane.f32.xlu0 %v529
      %v531 = vpop.xlane.xlu0 %530
      %v532 = vadd.f32 %v490, %v491
      %533 = vadd.xlane.f32.xlu0 %v532
      %v534 = vpop.xlane.xlu0 %533
      %v535 = vadd.f32 %v492, %v493
      %536 = vadd.xlane.f32.xlu0 %v535
      %v537 = vpop.xlane.xlu0 %536
      %v538 = vadd.f32 %v494, %v495
      %539 = vadd.xlane.f32.xlu0 %v538
      %v540 = vpop.xlane.xlu0 %539
      %v541 = vadd.f32 %v496, %v497
      %542 = vadd.xlane.f32.xlu0 %v541
      %v543 = vpop.xlane.xlu0 %542
      %v544 = vadd.f32 %v498, %v499
      %545 = vadd.xlane.f32.xlu0 %v544
      %v546 = vpop.xlane.xlu0 %545
      %v547 = vadd.f32 %v500, %v501
      %548 = vadd.xlane.f32.xlu0 %v547
      %v549 = vpop.xlane.xlu0 %548
      %vm550 = vcmp.gt.f32.partialorder %v504, 0.0
      %vm551 = vcmp.gt.f32.partialorder %v507, 0.0
      %vm552 = vcmp.gt.f32.partialorder %v510, 0.0
      %vm553 = vcmp.gt.f32.partialorder %v513, 0.0
      %vm554 = vcmp.gt.f32.partialorder %v516, 0.0
      %vm555 = vcmp.gt.f32.partialorder %v519, 0.0
      %vm556 = vcmp.gt.f32.partialorder %v522, 0.0
      %vm557 = vcmp.gt.f32.partialorder %v525, 0.0
      %vm558 = vcmp.gt.f32.partialorder %v528, 0.0
      %vm559 = vcmp.gt.f32.partialorder %v531, 0.0
      %vm560 = vcmp.gt.f32.partialorder %v534, 0.0
      %vm561 = vcmp.gt.f32.partialorder %v537, 0.0
      %vm562 = vcmp.gt.f32.partialorder %v540, 0.0
      %vm563 = vcmp.gt.f32.partialorder %v543, 0.0
      %vm564 = vcmp.gt.f32.partialorder %v546, 0.0
      %vm565 = vcmp.gt.f32.partialorder %v549, 0.0
      %v566 = vsel %vm550, %v504, 1.0
      %v567 = vsel %vm551, %v507, 1.0
      %v568 = vsel %vm552, %v510, 1.0
      %v569 = vsel %vm553, %v513, 1.0
      %v570 = vsel %vm554, %v516, 1.0
      %v571 = vsel %vm555, %v519, 1.0
      %v572 = vsel %vm556, %v522, 1.0
      %v573 = vsel %vm557, %v525, 1.0
      %v574 = vsel %vm558, %v528, 1.0
      %v575 = vsel %vm559, %v531, 1.0
      %v576 = vsel %vm560, %v534, 1.0
      %v577 = vsel %vm561, %v537, 1.0
      %v578 = vsel %vm562, %v540, 1.0
      %v579 = vsel %vm563, %v543, 1.0
      %v580 = vsel %vm564, %v546, 1.0
      %v581 = vsel %vm565, %v549, 1.0
      %v582 = vrcp.pop %v566
      %v583 = vmul.f32 %v566, %v582
      %v584 = vsub.f32 1.0, %v583
      %v585 = vmul.f32 %v582, %v584
      %v586 = vadd.f32 %v582, %v585
      %vm587 = vweird.f32 %v566
      %vm588 = vweird.f32 %v582
      %vm589 = vmor %vm587, %vm588
      %v590 = vsel %vm589, %v582, %v586
      %v591 = vand.u32 2147483647, %v566
      %vm592 = vcmp.eq.f32.partialorder %v591, 8.507059e+37
      %v593 = vand.u32 %v566, 2147483648
      %v594 = vor.u32 1.1754944e-38, %v593
      %v595 = vsel %vm592, %v594, %v590
      %v596 = vrcp.pop %v567
      %v597 = vmul.f32 %v567, %v596
      %v598 = vsub.f32 1.0, %v597
      %v599 = vmul.f32 %v596, %v598
      %v600 = vadd.f32 %v596, %v599
      %vm601 = vweird.f32 %v567
      %vm602 = vweird.f32 %v596
      %vm603 = vmor %vm601, %vm602
      %v604 = vsel %vm603, %v596, %v600
      %v605 = vand.u32 2147483647, %v567
      %vm606 = vcmp.eq.f32.partialorder %v605, 8.507059e+37
      %v607 = vand.u32 %v567, 2147483648
      %v608 = vor.u32 1.1754944e-38, %v607
      %v609 = vsel %vm606, %v608, %v604
      %v610 = vrcp.pop %v568
      %v611 = vmul.f32 %v568, %v610
      %v612 = vsub.f32 1.0, %v611
      %v613 = vmul.f32 %v610, %v612
      %v614 = vadd.f32 %v610, %v613
      %vm615 = vweird.f32 %v568
      %vm616 = vweird.f32 %v610
      %vm617 = vmor %vm615, %vm616
      %v618 = vsel %vm617, %v610, %v614
      %v619 = vand.u32 2147483647, %v568
      %vm620 = vcmp.eq.f32.partialorder %v619, 8.507059e+37
      %v621 = vand.u32 %v568, 2147483648
      %v622 = vor.u32 1.1754944e-38, %v621
      %v623 = vsel %vm620, %v622, %v618
      %v624 = vrcp.pop %v569
      %v625 = vmul.f32 %v569, %v624
      %v626 = vsub.f32 1.0, %v625
      %v627 = vmul.f32 %v624, %v626
      %v628 = vadd.f32 %v624, %v627
      %vm629 = vweird.f32 %v569
      %vm630 = vweird.f32 %v624
      %vm631 = vmor %vm629, %vm630
      %v632 = vsel %vm631, %v624, %v628
      %v633 = vand.u32 2147483647, %v569
      %vm634 = vcmp.eq.f32.partialorder %v633, 8.507059e+37
      %v635 = vand.u32 %v569, 2147483648
      %v636 = vor.u32 1.1754944e-38, %v635
      %v637 = vsel %vm634, %v636, %v632
      %v638 = vrcp.pop %v570
      %v639 = vmul.f32 %v570, %v638
      %v640 = vsub.f32 1.0, %v639
      %v641 = vmul.f32 %v638, %v640
      %v642 = vadd.f32 %v638, %v641
      %vm643 = vweird.f32 %v570
      %vm644 = vweird.f32 %v638
      %vm645 = vmor %vm643, %vm644
      %v646 = vsel %vm645, %v638, %v642
      %v647 = vand.u32 2147483647, %v570
      %vm648 = vcmp.eq.f32.partialorder %v647, 8.507059e+37
      %v649 = vand.u32 %v570, 2147483648
      %v650 = vor.u32 1.1754944e-38, %v649
      %v651 = vsel %vm648, %v650, %v646
      %v652 = vrcp.pop %v571
      %v653 = vmul.f32 %v571, %v652
      %v654 = vsub.f32 1.0, %v653
      %v655 = vmul.f32 %v652, %v654
      %v656 = vadd.f32 %v652, %v655
      %vm657 = vweird.f32 %v571
      %vm658 = vweird.f32 %v652
      %vm659 = vmor %vm657, %vm658
      %v660 = vsel %vm659, %v652, %v656
      %v661 = vand.u32 2147483647, %v571
      %vm662 = vcmp.eq.f32.partialorder %v661, 8.507059e+37
      %v663 = vand.u32 %v571, 2147483648
      %v664 = vor.u32 1.1754944e-38, %v663
      %v665 = vsel %vm662, %v664, %v660
      %v666 = vrcp.pop %v572
      %v667 = vmul.f32 %v572, %v666
      %v668 = vsub.f32 1.0, %v667
      %v669 = vmul.f32 %v666, %v668
      %v670 = vadd.f32 %v666, %v669
      %vm671 = vweird.f32 %v572
      %vm672 = vweird.f32 %v666
      %vm673 = vmor %vm671, %vm672
      %v674 = vsel %vm673, %v666, %v670
      %v675 = vand.u32 2147483647, %v572
      %vm676 = vcmp.eq.f32.partialorder %v675, 8.507059e+37
      %v677 = vand.u32 %v572, 2147483648
      %v678 = vor.u32 1.1754944e-38, %v677
      %v679 = vsel %vm676, %v678, %v674
      %v680 = vrcp.pop %v573
      %v681 = vmul.f32 %v573, %v680
      %v682 = vsub.f32 1.0, %v681
      %v683 = vmul.f32 %v680, %v682
      %v684 = vadd.f32 %v680, %v683
      %vm685 = vweird.f32 %v573
      %vm686 = vweird.f32 %v680
      %vm687 = vmor %vm685, %vm686
      %v688 = vsel %vm687, %v680, %v684
      %v689 = vand.u32 2147483647, %v573
      %vm690 = vcmp.eq.f32.partialorder %v689, 8.507059e+37
      %v691 = vand.u32 %v573, 2147483648
      %v692 = vor.u32 1.1754944e-38, %v691
      %v693 = vsel %vm690, %v692, %v688
      %v694 = vrcp.pop %v574
      %v695 = vmul.f32 %v574, %v694
      %v696 = vsub.f32 1.0, %v695
      %v697 = vmul.f32 %v694, %v696
      %v698 = vadd.f32 %v694, %v697
      %vm699 = vweird.f32 %v574
      %vm700 = vweird.f32 %v694
      %vm701 = vmor %vm699, %vm700
      %v702 = vsel %vm701, %v694, %v698
      %v703 = vand.u32 2147483647, %v574
      %vm704 = vcmp.eq.f32.partialorder %v703, 8.507059e+37
      %v705 = vand.u32 %v574, 2147483648
      %v706 = vor.u32 1.1754944e-38, %v705
      %v707 = vsel %vm704, %v706, %v702
      %v708 = vrcp.pop %v575
      %v709 = vmul.f32 %v575, %v708
      %v710 = vsub.f32 1.0, %v709
      %v711 = vmul.f32 %v708, %v710
      %v712 = vadd.f32 %v708, %v711
      %vm713 = vweird.f32 %v575
      %vm714 = vweird.f32 %v708
      %vm715 = vmor %vm713, %vm714
      %v716 = vsel %vm715, %v708, %v712
      %v717 = vand.u32 2147483647, %v575
      %vm718 = vcmp.eq.f32.partialorder %v717, 8.507059e+37
      %v719 = vand.u32 %v575, 2147483648
      %v720 = vor.u32 1.1754944e-38, %v719
      %v721 = vsel %vm718, %v720, %v716
      %v722 = vrcp.pop %v576
      %v723 = vmul.f32 %v576, %v722
      %v724 = vsub.f32 1.0, %v723
      %v725 = vmul.f32 %v722, %v724
      %v726 = vadd.f32 %v722, %v725
      %vm727 = vweird.f32 %v576
      %vm728 = vweird.f32 %v722
      %vm729 = vmor %vm727, %vm728
      %v730 = vsel %vm729, %v722, %v726
      %v731 = vand.u32 2147483647, %v576
      %vm732 = vcmp.eq.f32.partialorder %v731, 8.507059e+37
      %v733 = vand.u32 %v576, 2147483648
      %v734 = vor.u32 1.1754944e-38, %v733
      %v735 = vsel %vm732, %v734, %v730
      %v736 = vrcp.pop %v577
      %v737 = vmul.f32 %v577, %v736
      %v738 = vsub.f32 1.0, %v737
      %v739 = vmul.f32 %v736, %v738
      %v740 = vadd.f32 %v736, %v739
      %vm741 = vweird.f32 %v577
      %vm742 = vweird.f32 %v736
      %vm743 = vmor %vm741, %vm742
      %v744 = vsel %vm743, %v736, %v740
      %v745 = vand.u32 2147483647, %v577
      %vm746 = vcmp.eq.f32.partialorder %v745, 8.507059e+37
      %v747 = vand.u32 %v577, 2147483648
      %v748 = vor.u32 1.1754944e-38, %v747
      %v749 = vsel %vm746, %v748, %v744
      %v750 = vrcp.pop %v578
      %v751 = vmul.f32 %v578, %v750
      %v752 = vsub.f32 1.0, %v751
      %v753 = vmul.f32 %v750, %v752
      %v754 = vadd.f32 %v750, %v753
      %vm755 = vweird.f32 %v578
      %vm756 = vweird.f32 %v750
      %vm757 = vmor %vm755, %vm756
      %v758 = vsel %vm757, %v750, %v754
      %v759 = vand.u32 2147483647, %v578
      %vm760 = vcmp.eq.f32.partialorder %v759, 8.507059e+37
      %v761 = vand.u32 %v578, 2147483648
      %v762 = vor.u32 1.1754944e-38, %v761
      %v763 = vsel %vm760, %v762, %v758
      %v764 = vrcp.pop %v579
      %v765 = vmul.f32 %v579, %v764
      %v766 = vsub.f32 1.0, %v765
      %v767 = vmul.f32 %v764, %v766
      %v768 = vadd.f32 %v764, %v767
      %vm769 = vweird.f32 %v579
      %vm770 = vweird.f32 %v764
      %vm771 = vmor %vm769, %vm770
      %v772 = vsel %vm771, %v764, %v768
      %v773 = vand.u32 2147483647, %v579
      %vm774 = vcmp.eq.f32.partialorder %v773, 8.507059e+37
      %v775 = vand.u32 %v579, 2147483648
      %v776 = vor.u32 1.1754944e-38, %v775
      %v777 = vsel %vm774, %v776, %v772
      %v778 = vrcp.pop %v580
      %v779 = vmul.f32 %v580, %v778
      %v780 = vsub.f32 1.0, %v779
      %v781 = vmul.f32 %v778, %v780
      %v782 = vadd.f32 %v778, %v781
      %vm783 = vweird.f32 %v580
      %vm784 = vweird.f32 %v778
      %vm785 = vmor %vm783, %vm784
      %v786 = vsel %vm785, %v778, %v782
      %v787 = vand.u32 2147483647, %v580
      %vm788 = vcmp.eq.f32.partialorder %v787, 8.507059e+37
      %v789 = vand.u32 %v580, 2147483648
      %v790 = vor.u32 1.1754944e-38, %v789
      %v791 = vsel %vm788, %v790, %v786
      %v792 = vrcp.pop %v581
      %v793 = vmul.f32 %v581, %v792
      %v794 = vsub.f32 1.0, %v793
      %v795 = vmul.f32 %v792, %v794
      %v796 = vadd.f32 %v792, %v795
      %vm797 = vweird.f32 %v581
      %vm798 = vweird.f32 %v792
      %vm799 = vmor %vm797, %vm798
      %v800 = vsel %vm799, %v792, %v796
      %v801 = vand.u32 2147483647, %v581
      %vm802 = vcmp.eq.f32.partialorder %v801, 8.507059e+37
      %v803 = vand.u32 %v581, 2147483648
      %v804 = vor.u32 1.1754944e-38, %v803
      %v805 = vsel %vm802, %v804, %v800
      %v806 = vmul.f32 %v470, %v595
      %v807 = vmul.f32 %v471, %v595
      %v808 = vmul.f32 %v472, %v609
      %v809 = vmul.f32 %v473, %v609
      %v810 = vmul.f32 %v474, %v623
      %v811 = vmul.f32 %v475, %v623
      %v812 = vmul.f32 %v476, %v637
      %v813 = vmul.f32 %v477, %v637
      %v814 = vmul.f32 %v478, %v651
      %v815 = vmul.f32 %v479, %v651
      %v816 = vmul.f32 %v480, %v665
      %v817 = vmul.f32 %v481, %v665
      %v818 = vmul.f32 %v482, %v679
      %v819 = vmul.f32 %v483, %v679
      %v820 = vmul.f32 %v484, %v693
      %v821 = vmul.f32 %v485, %v693
      %v822 = vmul.f32 %v486, %v707
      %v823 = vmul.f32 %v487, %v707
      %v824 = vmul.f32 %v488, %v721
      %v825 = vmul.f32 %v489, %v721
      %v826 = vmul.f32 %v490, %v735
      %v827 = vmul.f32 %v491, %v735
      %v828 = vmul.f32 %v492, %v749
      %v829 = vmul.f32 %v493, %v749
      %v830 = vmul.f32 %v494, %v763
      %v831 = vmul.f32 %v495, %v763
      %v832 = vmul.f32 %v496, %v777
      %v833 = vmul.f32 %v497, %v777
      %v834 = vmul.f32 %v498, %v791
      %v835 = vmul.f32 %v499, %v791
      %v836 = vmul.f32 %v500, %v805
      %v837 = vmul.f32 %v501, %v805
      %v838 = vpack.c.bf16 %v808, %v806
      %v839 = vpack.c.bf16 %v809, %v807
      %v840 = vpack.c.bf16 %v812, %v810
      %v841 = vpack.c.bf16 %v813, %v811
      %v842 = vpack.c.bf16 %v816, %v814
      %v843 = vpack.c.bf16 %v817, %v815
      %v844 = vpack.c.bf16 %v820, %v818
      %v845 = vpack.c.bf16 %v821, %v819
      %v846 = vpack.c.bf16 %v824, %v822
      %v847 = vpack.c.bf16 %v825, %v823
      %v848 = vpack.c.bf16 %v828, %v826
      %v849 = vpack.c.bf16 %v829, %v827
      %v850 = vpack.c.bf16 %v832, %v830
      %v851 = vpack.c.bf16 %v833, %v831
      %v852 = vpack.c.bf16 %v836, %v834
      %v853 = vpack.c.bf16 %v837, %v835
      %v854 = vld [vmem:[%s1] sm:$0xf]
      %v855 = vld [vmem:[%s1 + $0x4] sm:$0xf]
      %v856 = vld [vmem:[%s1 + $0x8] sm:$0xf]
      %v857 = vld [vmem:[%s1 + $0xc] sm:$0xf]
      %v858 = vld [vmem:[%s1 + $0x10] sm:$0xf]
      %v859 = vld [vmem:[%s1 + $0x14] sm:$0xf]
      %v860 = vld [vmem:[%s1 + $0x18] sm:$0xf]
      %v861 = vld [vmem:[%s1 + $0x1c] sm:$0xf]
      %v862 = vld [vmem:[%s1 + $0x20] sm:$0xf]
      %v863 = vld [vmem:[%s1 + $0x24] sm:$0xf]
      %v864 = vld [vmem:[%s1 + $0x28] sm:$0xf]
      %v865 = vld [vmem:[%s1 + $0x2c] sm:$0xf]
      %v866 = vld [vmem:[%s1 + $0x30] sm:$0xf]
      %v867 = vld [vmem:[%s1 + $0x34] sm:$0xf]
      %v868 = vld [vmem:[%s1 + $0x38] sm:$0xf]
      %v869 = vld [vmem:[%s1 + $0x3c] sm:$0xf]
      %v870 = vld [vmem:[%s1 + $0x40] sm:$0xf]
      %v871 = vld [vmem:[%s1 + $0x44] sm:$0xf]
      %v872 = vld [vmem:[%s1 + $0x48] sm:$0xf]
      %v873 = vld [vmem:[%s1 + $0x4c] sm:$0xf]
      %v874 = vld [vmem:[%s1 + $0x50] sm:$0xf]
      %v875 = vld [vmem:[%s1 + $0x54] sm:$0xf]
      %v876 = vld [vmem:[%s1 + $0x58] sm:$0xf]
      %v877 = vld [vmem:[%s1 + $0x5c] sm:$0xf]
      %v878 = vld [vmem:[%s1 + $0x60] sm:$0xf]
      %v879 = vld [vmem:[%s1 + $0x64] sm:$0xf]
      %v880 = vld [vmem:[%s1 + $0x68] sm:$0xf]
      %v881 = vld [vmem:[%s1 + $0x6c] sm:$0xf]
      %v882 = vld [vmem:[%s1 + $0x70] sm:$0xf]
      %v883 = vld [vmem:[%s1 + $0x74] sm:$0xf]
      %v884 = vld [vmem:[%s1 + $0x78] sm:$0xf]
      %v885 = vld [vmem:[%s1 + $0x7c] sm:$0xf]
      %v886 = vld [vmem:[%s2] sm:$0x1]
      %v888 = vperm.slane %v886, 0
      %v922 = vunpack.c.l.b16 %v854
      %v923 = vunpack.c.l.b16 %v855
      %v924 = vunpack.c.l.b16 %v856
      %v925 = vunpack.c.l.b16 %v857
      %v926 = vunpack.c.l.b16 %v858
      %v927 = vunpack.c.l.b16 %v859
      %v928 = vunpack.c.l.b16 %v860
      %v929 = vunpack.c.l.b16 %v861
      %v930 = vunpack.c.l.b16 %v862
      %v931 = vunpack.c.l.b16 %v863
      %v932 = vunpack.c.l.b16 %v864
      %v933 = vunpack.c.l.b16 %v865
      %v934 = vunpack.c.l.b16 %v866
      %v935 = vunpack.c.l.b16 %v867
      %v936 = vunpack.c.l.b16 %v868
      %v937 = vunpack.c.l.b16 %v869
      %v938 = vunpack.c.l.b16 %v870
      %v939 = vunpack.c.l.b16 %v871
      %v940 = vunpack.c.l.b16 %v872
      %v941 = vunpack.c.l.b16 %v873
      %v942 = vunpack.c.l.b16 %v874
      %v943 = vunpack.c.l.b16 %v875
      %v944 = vunpack.c.l.b16 %v876
      %v945 = vunpack.c.l.b16 %v877
      %v946 = vunpack.c.l.b16 %v878
      %v947 = vunpack.c.l.b16 %v879
      %v948 = vunpack.c.l.b16 %v880
      %v949 = vunpack.c.l.b16 %v881
      %v950 = vunpack.c.l.b16 %v882
      %v951 = vunpack.c.l.b16 %v883
      %v952 = vunpack.c.l.b16 %v884
      %v953 = vunpack.c.l.b16 %v885
      %v954 = vpack.c.b16 %v923, %v922
      %v955 = vpack.c.b16 %v925, %v924
      %v956 = vpack.c.b16 %v927, %v926
      %v957 = vpack.c.b16 %v929, %v928
      %v958 = vpack.c.b16 %v931, %v930
      %v959 = vpack.c.b16 %v933, %v932
      %v960 = vpack.c.b16 %v935, %v934
      %v961 = vpack.c.b16 %v937, %v936
      %v962 = vpack.c.b16 %v939, %v938
      %v963 = vpack.c.b16 %v941, %v940
      %v964 = vpack.c.b16 %v943, %v942
      %v965 = vpack.c.b16 %v945, %v944
      %v966 = vpack.c.b16 %v947, %v946
      %v967 = vpack.c.b16 %v949, %v948
      %v968 = vpack.c.b16 %v951, %v950
      %v969 = vpack.c.b16 %v953, %v952
      %986 = vmatpush.bf16.msra.mxu0 %v961
      %987 = vmatpush.bf16.msra.mxu0 %v960
      %988 = vmatpush.bf16.msra.mxu0 %v959
      %989 = vmatpush.bf16.msra.mxu0 %v958
      %990 = vmatpush.bf16.msra.mxu0 %v957
      %991 = vmatpush.bf16.msra.mxu0 %v956
      %992 = vmatpush.bf16.msra.mxu0 %v955
      %993 = vmatpush.bf16.msra.mxu0 %v954
      %994 = vmatmul.bf16.gmra.mxu0 %v838
      %v995 = vpop.f32.mrf.mxu0
      %v996 = vadd.f32 %v888, %v995
      %v997 = vpop.f32.mrf.mxu0
      %v998 = vadd.f32 %v888, %v997
      %999 = vmatmul.bf16.gmra.mxu0 %v840
      %v1000 = vpop.f32.mrf.mxu0
      %v1001 = vadd.f32 %v888, %v1000
      %v1002 = vpop.f32.mrf.mxu0
      %v1003 = vadd.f32 %v888, %v1002
      %1004 = vmatmul.bf16.gmra.mxu0 %v842
      %v1005 = vpop.f32.mrf.mxu0
      %v1006 = vadd.f32 %v888, %v1005
      %v1007 = vpop.f32.mrf.mxu0
      %v1008 = vadd.f32 %v888, %v1007
      %1009 = vmatmul.bf16.gmra.mxu0 %v844
      %v1010 = vpop.f32.mrf.mxu0
      %v1011 = vadd.f32 %v888, %v1010
      %v1012 = vpop.f32.mrf.mxu0
      %v1013 = vadd.f32 %v888, %v1012
      %1014 = vmatmul.bf16.gmra.mxu0 %v846
      %v1015 = vpop.f32.mrf.mxu0
      %v1016 = vadd.f32 %v888, %v1015
      %v1017 = vpop.f32.mrf.mxu0
      %v1018 = vadd.f32 %v888, %v1017
      %1019 = vmatmul.bf16.gmra.mxu0 %v848
      %v1020 = vpop.f32.mrf.mxu0
      %v1021 = vadd.f32 %v888, %v1020
      %v1022 = vpop.f32.mrf.mxu0
      %v1023 = vadd.f32 %v888, %v1022
      %1024 = vmatmul.bf16.gmra.mxu0 %v850
      %v1025 = vpop.f32.mrf.mxu0
      %v1026 = vadd.f32 %v888, %v1025
      %v1027 = vpop.f32.mrf.mxu0
      %v1028 = vadd.f32 %v888, %v1027
      %1029 = vmatmul.bf16.gmra.mxu0 %v852
      %v1030 = vpop.f32.mrf.mxu0
      %v1031 = vadd.f32 %v888, %v1030
      %v1032 = vpop.f32.mrf.mxu0
      %v1033 = vadd.f32 %v888, %v1032
      %1034 = vdwg.mxu0
      %1035 = vmatpush.bf16.msra.mxu0 %v969
      %1036 = vmatpush.bf16.msra.mxu0 %v968
      %1037 = vmatpush.bf16.msra.mxu0 %v967
      %1038 = vmatpush.bf16.msra.mxu0 %v966
      %1039 = vmatpush.bf16.msra.mxu0 %v965
      %1040 = vmatpush.bf16.msra.mxu0 %v964
      %1041 = vmatpush.bf16.msra.mxu0 %v963
      %1042 = vmatpush.bf16.msra.mxu0 %v962
      %1043 = vmatmul.bf16.gmra.mxu0 %v839
      %v1044 = vpop.f32.mrf.mxu0
      %v1045 = vadd.f32 %v996, %v1044
      %v1046 = vpop.f32.mrf.mxu0
      %v1047 = vadd.f32 %v998, %v1046
      %1048 = vmatmul.bf16.gmra.mxu0 %v841
      %v1049 = vpop.f32.mrf.mxu0
      %v1050 = vadd.f32 %v1001, %v1049
      %v1051 = vpop.f32.mrf.mxu0
      %v1052 = vadd.f32 %v1003, %v1051
      %1053 = vmatmul.bf16.gmra.mxu0 %v843
      %v1054 = vpop.f32.mrf.mxu0
      %v1055 = vadd.f32 %v1006, %v1054
      %v1056 = vpop.f32.mrf.mxu0
      %v1057 = vadd.f32 %v1008, %v1056
      %1058 = vmatmul.bf16.gmra.mxu0 %v845
      %v1059 = vpop.f32.mrf.mxu0
      %v1060 = vadd.f32 %v1011, %v1059
      %v1061 = vpop.f32.mrf.mxu0
      %v1062 = vadd.f32 %v1013, %v1061
      %1063 = vmatmul.bf16.gmra.mxu0 %v847
      %v1064 = vpop.f32.mrf.mxu0
      %v1065 = vadd.f32 %v1016, %v1064
      %v1066 = vpop.f32.mrf.mxu0
      %v1067 = vadd.f32 %v1018, %v1066
      %1068 = vmatmul.bf16.gmra.mxu0 %v849
      %v1069 = vpop.f32.mrf.mxu0
      %v1070 = vadd.f32 %v1021, %v1069
      %v1071 = vpop.f32.mrf.mxu0
      %v1072 = vadd.f32 %v1023, %v1071
      %1073 = vmatmul.bf16.gmra.mxu0 %v851
      %v1074 = vpop.f32.mrf.mxu0
      %v1075 = vadd.f32 %v1026, %v1074
      %v1076 = vpop.f32.mrf.mxu0
      %v1077 = vadd.f32 %v1028, %v1076
      %1078 = vmatmul.bf16.gmra.mxu0 %v853
      %v1079 = vpop.f32.mrf.mxu0
      %v1080 = vadd.f32 %v1031, %v1079
      %v1081 = vpop.f32.mrf.mxu0
      %v1082 = vadd.f32 %v1033, %v1081
      %1083 = vdwg.mxu0
      %v1084 = vmax.f32 %v1045, 0.0
      %v1085 = vmax.f32 %v1047, 0.0
      %v1086 = vmax.f32 %v1050, 0.0
      %v1087 = vmax.f32 %v1052, 0.0
      %v1088 = vmax.f32 %v1055, 0.0
      %v1089 = vmax.f32 %v1057, 0.0
      %v1090 = vmax.f32 %v1060, 0.0
      %v1091 = vmax.f32 %v1062, 0.0
      %v1092 = vmax.f32 %v1065, 0.0
      %v1093 = vmax.f32 %v1067, 0.0
      %v1094 = vmax.f32 %v1070, 0.0
      %v1095 = vmax.f32 %v1072, 0.0
      %v1096 = vmax.f32 %v1075, 0.0
      %v1097 = vmax.f32 %v1077, 0.0
      %v1098 = vmax.f32 %v1080, 0.0
      %v1099 = vmax.f32 %v1082, 0.0
      %v1100 = vpack.c.bf16 %v1085, %v1084
      %v1101 = vpack.c.bf16 %v1087, %v1086
      %v1102 = vpack.c.bf16 %v1089, %v1088
      %v1103 = vpack.c.bf16 %v1091, %v1090
      %v1104 = vpack.c.bf16 %v1093, %v1092
      %v1105 = vpack.c.bf16 %v1095, %v1094
      %v1106 = vpack.c.bf16 %v1097, %v1096
      %v1107 = vpack.c.bf16 %v1099, %v1098
      %v1108 = vld [vmem:[%s3] sm:$0xf]
      %v1109 = vld [vmem:[%s3 + $0x4] sm:$0xf]
      %v1110 = vld [vmem:[%s3 + $0x8] sm:$0xf]
      %v1111 = vld [vmem:[%s3 + $0xc] sm:$0xf]
      %v1112 = vld [vmem:[%s3 + $0x10] sm:$0xf]
      %v1113 = vld [vmem:[%s3 + $0x14] sm:$0xf]
      %v1114 = vld [vmem:[%s3 + $0x18] sm:$0xf]
      %v1115 = vld [vmem:[%s3 + $0x1c] sm:$0xf]
      %v1116 = vld [vmem:[%s3 + $0x20] sm:$0xf]
      %v1117 = vld [vmem:[%s3 + $0x24] sm:$0xf]
      %v1118 = vld [vmem:[%s3 + $0x28] sm:$0xf]
      %v1119 = vld [vmem:[%s3 + $0x2c] sm:$0xf]
      %v1120 = vld [vmem:[%s3 + $0x30] sm:$0xf]
      %v1121 = vld [vmem:[%s3 + $0x34] sm:$0xf]
      %v1122 = vld [vmem:[%s3 + $0x38] sm:$0xf]
      %v1123 = vld [vmem:[%s3 + $0x3c] sm:$0xf]
      %v1124 = vld [vmem:[%s4] sm:$0x1]
      %v1126 = vperm.slane %v1124, 0
      %v1144 = vunpack.c.l.b16 %v1108
      %v1145 = vunpack.c.l.b16 %v1109
      %v1146 = vunpack.c.l.b16 %v1110
      %v1147 = vunpack.c.l.b16 %v1111
      %v1148 = vunpack.c.l.b16 %v1112
      %v1149 = vunpack.c.l.b16 %v1113
      %v1150 = vunpack.c.l.b16 %v1114
      %v1151 = vunpack.c.l.b16 %v1115
      %v1152 = vunpack.c.l.b16 %v1116
      %v1153 = vunpack.c.l.b16 %v1117
      %v1154 = vunpack.c.l.b16 %v1118
      %v1155 = vunpack.c.l.b16 %v1119
      %v1156 = vunpack.c.l.b16 %v1120
      %v1157 = vunpack.c.l.b16 %v1121
      %v1158 = vunpack.c.l.b16 %v1122
      %v1159 = vunpack.c.l.b16 %v1123
      %v1160 = vpack.c.b16 %v1145, %v1144
      %v1161 = vpack.c.b16 %v1147, %v1146
      %v1162 = vpack.c.b16 %v1149, %v1148
      %v1163 = vpack.c.b16 %v1151, %v1150
      %v1164 = vpack.c.b16 %v1153, %v1152
      %v1165 = vpack.c.b16 %v1155, %v1154
      %v1166 = vpack.c.b16 %v1157, %v1156
      %v1167 = vpack.c.b16 %v1159, %v1158
      %1176 = vmatpush.bf16.msra.mxu0 %v1167
      %1177 = vmatpush.bf16.msra.mxu0 %v1166
      %1178 = vmatpush.bf16.msra.mxu0 %v1165
      %1179 = vmatpush.bf16.msra.mxu0 %v1164
      %1180 = vmatpush.bf16.msra.mxu0 %v1163
      %1181 = vmatpush.bf16.msra.mxu0 %v1162
      %1182 = vmatpush.bf16.msra.mxu0 %v1161
      %1183 = vmatpush.bf16.msra.mxu0 %v1160
      %1184 = vmatmul.bf16.gmra.mxu0 %v1100
      %v1185 = vpop.f32.mrf.mxu0
      %v1186 = vadd.f32 %v1126, %v1185
      %v1187 = vpop.f32.mrf.mxu0
      %v1188 = vadd.f32 %v1126, %v1187
      %1189 = vmatmul.bf16.gmra.mxu0 %v1101
      %v1190 = vpop.f32.mrf.mxu0
      %v1191 = vadd.f32 %v1126, %v1190
      %v1192 = vpop.f32.mrf.mxu0
      %v1193 = vadd.f32 %v1126, %v1192
      %1194 = vmatmul.bf16.gmra.mxu0 %v1102
      %v1195 = vpop.f32.mrf.mxu0
      %v1196 = vadd.f32 %v1126, %v1195
      %v1197 = vpop.f32.mrf.mxu0
      %v1198 = vadd.f32 %v1126, %v1197
      %1199 = vmatmul.bf16.gmra.mxu0 %v1103
      %v1200 = vpop.f32.mrf.mxu0
      %v1201 = vadd.f32 %v1126, %v1200
      %v1202 = vpop.f32.mrf.mxu0
      %v1203 = vadd.f32 %v1126, %v1202
      %1204 = vmatmul.bf16.gmra.mxu0 %v1104
      %v1205 = vpop.f32.mrf.mxu0
      %v1206 = vadd.f32 %v1126, %v1205
      %v1207 = vpop.f32.mrf.mxu0
      %v1208 = vadd.f32 %v1126, %v1207
      %1209 = vmatmul.bf16.gmra.mxu0 %v1105
      %v1210 = vpop.f32.mrf.mxu0
      %v1211 = vadd.f32 %v1126, %v1210
      %v1212 = vpop.f32.mrf.mxu0
      %v1213 = vadd.f32 %v1126, %v1212
      %1214 = vmatmul.bf16.gmra.mxu0 %v1106
      %v1215 = vpop.f32.mrf.mxu0
      %v1216 = vadd.f32 %v1126, %v1215
      %v1217 = vpop.f32.mrf.mxu0
      %v1218 = vadd.f32 %v1126, %v1217
      %1219 = vmatmul.bf16.gmra.mxu0 %v1107
      %v1220 = vpop.f32.mrf.mxu0
      %v1221 = vadd.f32 %v1126, %v1220
      %v1222 = vpop.f32.mrf.mxu0
      %v1223 = vadd.f32 %v1126, %v1222
      %1224 = vdwg.mxu0
      %v1225 = vmax.f32 %v1186, 0.0
      %v1226 = vmax.f32 %v1188, 0.0
      %v1227 = vmax.f32 %v1191, 0.0
      %v1228 = vmax.f32 %v1193, 0.0
      %v1229 = vmax.f32 %v1196, 0.0
      %v1230 = vmax.f32 %v1198, 0.0
      %v1231 = vmax.f32 %v1201, 0.0
      %v1232 = vmax.f32 %v1203, 0.0
      %v1233 = vmax.f32 %v1206, 0.0
      %v1234 = vmax.f32 %v1208, 0.0
      %v1235 = vmax.f32 %v1211, 0.0
      %v1236 = vmax.f32 %v1213, 0.0
      %v1237 = vmax.f32 %v1216, 0.0
      %v1238 = vmax.f32 %v1218, 0.0
      %v1239 = vmax.f32 %v1221, 0.0
      %v1240 = vmax.f32 %v1223, 0.0
      %v1241 = vpack.c.bf16 %v1226, %v1225
      %v1242 = vpack.c.bf16 %v1228, %v1227
      %v1243 = vpack.c.bf16 %v1230, %v1229
      %v1244 = vpack.c.bf16 %v1232, %v1231
      %v1245 = vpack.c.bf16 %v1234, %v1233
      %v1246 = vpack.c.bf16 %v1236, %v1235
      %v1247 = vpack.c.bf16 %v1238, %v1237
      %v1248 = vpack.c.bf16 %v1240, %v1239
      %v1249 = vld [vmem:[%s5] sm:$0xf]
      %v1250 = vld [vmem:[%s5 + $0x4] sm:$0xf]
      %v1251 = vld [vmem:[%s5 + $0x8] sm:$0xf]
      %v1252 = vld [vmem:[%s5 + $0xc] sm:$0xf]
      %v1253 = vld [vmem:[%s5 + $0x10] sm:$0xf]
      %v1254 = vld [vmem:[%s5 + $0x14] sm:$0xf]
      %v1255 = vld [vmem:[%s5 + $0x18] sm:$0xf]
      %v1256 = vld [vmem:[%s5 + $0x1c] sm:$0xf]
      %v1257 = vld [vmem:[%s5 + $0x20] sm:$0xf]
      %v1258 = vld [vmem:[%s5 + $0x24] sm:$0xf]
      %v1259 = vld [vmem:[%s5 + $0x28] sm:$0xf]
      %v1260 = vld [vmem:[%s5 + $0x2c] sm:$0xf]
      %v1261 = vld [vmem:[%s5 + $0x30] sm:$0xf]
      %v1262 = vld [vmem:[%s5 + $0x34] sm:$0xf]
      %v1263 = vld [vmem:[%s5 + $0x38] sm:$0xf]
      %v1264 = vld [vmem:[%s5 + $0x3c] sm:$0xf]
      %v1265 = vld [vmem:[%s6] sm:$0x1]
      %v1267 = vperm.slane %v1265, 0
      %v1285 = vunpack.c.l.b16 %v1249
      %v1286 = vunpack.c.l.b16 %v1250
      %v1287 = vunpack.c.l.b16 %v1251
      %v1288 = vunpack.c.l.b16 %v1252
      %v1289 = vunpack.c.l.b16 %v1253
      %v1290 = vunpack.c.l.b16 %v1254
      %v1291 = vunpack.c.l.b16 %v1255
      %v1292 = vunpack.c.l.b16 %v1256
      %v1293 = vunpack.c.l.b16 %v1257
      %v1294 = vunpack.c.l.b16 %v1258
      %v1295 = vunpack.c.l.b16 %v1259
      %v1296 = vunpack.c.l.b16 %v1260
      %v1297 = vunpack.c.l.b16 %v1261
      %v1298 = vunpack.c.l.b16 %v1262
      %v1299 = vunpack.c.l.b16 %v1263
      %v1300 = vunpack.c.l.b16 %v1264
      %v1301 = vpack.c.b16 %v1286, %v1285
      %v1302 = vpack.c.b16 %v1288, %v1287
      %v1303 = vpack.c.b16 %v1290, %v1289
      %v1304 = vpack.c.b16 %v1292, %v1291
      %v1305 = vpack.c.b16 %v1294, %v1293
      %v1306 = vpack.c.b16 %v1296, %v1295
      %v1307 = vpack.c.b16 %v1298, %v1297
      %v1308 = vpack.c.b16 %v1300, %v1299
      %1317 = vmatpush.bf16.msra.mxu0 %v1308
      %1318 = vmatpush.bf16.msra.mxu0 %v1307
      %1319 = vmatpush.bf16.msra.mxu0 %v1306
      %1320 = vmatpush.bf16.msra.mxu0 %v1305
      %1321 = vmatpush.bf16.msra.mxu0 %v1304
      %1322 = vmatpush.bf16.msra.mxu0 %v1303
      %1323 = vmatpush.bf16.msra.mxu0 %v1302
      %1324 = vmatpush.bf16.msra.mxu0 %v1301
      %1325 = vmatmul.bf16.gmra.mxu0 %v1241
      %v1326 = vpop.f32.mrf.mxu0
      %v1327 = vadd.f32 %v1267, %v1326
      %v1328 = vpop.f32.mrf.mxu0
      %v1329 = vadd.f32 %v1267, %v1328
      %1330 = vmatmul.bf16.gmra.mxu0 %v1242
      %v1331 = vpop.f32.mrf.mxu0
      %v1332 = vadd.f32 %v1267, %v1331
      %v1333 = vpop.f32.mrf.mxu0
      %v1334 = vadd.f32 %v1267, %v1333
      %1335 = vmatmul.bf16.gmra.mxu0 %v1243
      %v1336 = vpop.f32.mrf.mxu0
      %v1337 = vadd.f32 %v1267, %v1336
      %v1338 = vpop.f32.mrf.mxu0
      %v1339 = vadd.f32 %v1267, %v1338
      %1340 = vmatmul.bf16.gmra.mxu0 %v1244
      %v1341 = vpop.f32.mrf.mxu0
      %v1342 = vadd.f32 %v1267, %v1341
      %v1343 = vpop.f32.mrf.mxu0
      %v1344 = vadd.f32 %v1267, %v1343
      %1345 = vmatmul.bf16.gmra.mxu0 %v1245
      %v1346 = vpop.f32.mrf.mxu0
      %v1347 = vadd.f32 %v1267, %v1346
      %v1348 = vpop.f32.mrf.mxu0
      %v1349 = vadd.f32 %v1267, %v1348
      %1350 = vmatmul.bf16.gmra.mxu0 %v1246
      %v1351 = vpop.f32.mrf.mxu0
      %v1352 = vadd.f32 %v1267, %v1351
      %v1353 = vpop.f32.mrf.mxu0
      %v1354 = vadd.f32 %v1267, %v1353
      %1355 = vmatmul.bf16.gmra.mxu0 %v1247
      %v1356 = vpop.f32.mrf.mxu0
      %v1357 = vadd.f32 %v1267, %v1356
      %v1358 = vpop.f32.mrf.mxu0
      %v1359 = vadd.f32 %v1267, %v1358
      %1360 = vmatmul.bf16.gmra.mxu0 %v1248
      %v1361 = vpop.f32.mrf.mxu0
      %v1362 = vadd.f32 %v1267, %v1361
      %v1363 = vpop.f32.mrf.mxu0
      %v1364 = vadd.f32 %v1267, %v1363
      %1365 = vdwg.mxu0
      %v1366 = vmul.f32 %v1327, 0.5
      %v1367 = vmul.f32 %v1329, 0.5
      %v1368 = vmul.f32 %v1332, 0.5
      %v1369 = vmul.f32 %v1334, 0.5
      %v1370 = vmul.f32 %v1337, 0.5
      %v1371 = vmul.f32 %v1339, 0.5
      %v1372 = vmul.f32 %v1342, 0.5
      %v1373 = vmul.f32 %v1344, 0.5
      %v1374 = vmul.f32 %v1347, 0.5
      %v1375 = vmul.f32 %v1349, 0.5
      %v1376 = vmul.f32 %v1352, 0.5
      %v1377 = vmul.f32 %v1354, 0.5
      %v1378 = vmul.f32 %v1357, 0.5
      %v1379 = vmul.f32 %v1359, 0.5
      %v1380 = vmul.f32 %v1362, 0.5
      %v1381 = vmul.f32 %v1364, 0.5
      %v1382 = vmul.f32 %v1366, 1.442695
      %v1383 = vpow.pop %v1382
      %v1384 = vmul.f32 %v1367, 1.442695
      %v1385 = vpow.pop %v1384
      %v1386 = vmul.f32 %v1368, 1.442695
      %v1387 = vpow.pop %v1386
      %v1388 = vmul.f32 %v1369, 1.442695
      %v1389 = vpow.pop %v1388
      %v1390 = vmul.f32 %v1370, 1.442695
      %v1391 = vpow.pop %v1390
      %v1392 = vmul.f32 %v1371, 1.442695
      %v1393 = vpow.pop %v1392
      %v1394 = vmul.f32 %v1372, 1.442695
      %v1395 = vpow.pop %v1394
      %v1396 = vmul.f32 %v1373, 1.442695
      %v1397 = vpow.pop %v1396
      %v1398 = vmul.f32 %v1374, 1.442695
      %v1399 = vpow.pop %v1398
      %v1400 = vmul.f32 %v1375, 1.442695
      %v1401 = vpow.pop %v1400
      %v1402 = vmul.f32 %v1376, 1.442695
      %v1403 = vpow.pop %v1402
      %v1404 = vmul.f32 %v1377, 1.442695
      %v1405 = vpow.pop %v1404
      %v1406 = vmul.f32 %v1378, 1.442695
      %v1407 = vpow.pop %v1406
      %v1408 = vmul.f32 %v1379, 1.442695
      %v1409 = vpow.pop %v1408
      %v1410 = vmul.f32 %v1380, 1.442695
      %v1411 = vpow.pop %v1410
      %v1412 = vmul.f32 %v1381, 1.442695
      %v1413 = vpow.pop %v1412
      %v1414 = vld [vmem:[%s449] sm:$0xff]
      %v1415 = vld [vmem:[%s449 + $0x8] sm:$0xff]
      %v1416 = vld [vmem:[%s449 + $0x10] sm:$0xff]
      %v1417 = vld [vmem:[%s449 + $0x18] sm:$0xff]
      %v1418 = vld [vmem:[%s449 + $0x20] sm:$0xff]
      %v1419 = vld [vmem:[%s449 + $0x28] sm:$0xff]
      %v1420 = vld [vmem:[%s449 + $0x30] sm:$0xff]
      %v1421 = vld [vmem:[%s449 + $0x38] sm:$0xff]
      %v1422 = vld [vmem:[%s449 + $0x40] sm:$0xff]
      %v1423 = vld [vmem:[%s449 + $0x48] sm:$0xff]
      %v1424 = vld [vmem:[%s449 + $0x50] sm:$0xff]
      %v1425 = vld [vmem:[%s449 + $0x58] sm:$0xff]
      %v1426 = vld [vmem:[%s449 + $0x60] sm:$0xff]
      %v1427 = vld [vmem:[%s449 + $0x68] sm:$0xff]
      %v1428 = vld [vmem:[%s449 + $0x70] sm:$0xff]
      %v1429 = vld [vmem:[%s449 + $0x78] sm:$0xff]
      %1446 = vrot.lane.b32.xlu0 %v1383, 96
      %v1447 = vpop.permute.xlu0 %1446
      %1448 = vrot.lane.b32.xlu0 %v1385, 96
      %v1449 = vpop.permute.xlu0 %1448
      %1450 = vrot.lane.b32.xlu0 %v1387, 96
      %v1451 = vpop.permute.xlu0 %1450
      %1452 = vrot.lane.b32.xlu0 %v1389, 96
      %v1453 = vpop.permute.xlu0 %1452
      %1454 = vrot.lane.b32.xlu0 %v1391, 96
      %v1455 = vpop.permute.xlu0 %1454
      %1456 = vrot.lane.b32.xlu0 %v1393, 96
      %v1457 = vpop.permute.xlu0 %1456
      %1458 = vrot.lane.b32.xlu0 %v1395, 96
      %v1459 = vpop.permute.xlu0 %1458
      %1460 = vrot.lane.b32.xlu0 %v1397, 96
      %v1461 = vpop.permute.xlu0 %1460
      %1462 = vrot.lane.b32.xlu0 %v1399, 96
      %v1463 = vpop.permute.xlu0 %1462
      %1464 = vrot.lane.b32.xlu0 %v1401, 96
      %v1465 = vpop.permute.xlu0 %1464
      %1466 = vrot.lane.b32.xlu0 %v1403, 96
      %v1467 = vpop.permute.xlu0 %1466
      %1468 = vrot.lane.b32.xlu0 %v1405, 96
      %v1469 = vpop.permute.xlu0 %1468
      %1470 = vrot.lane.b32.xlu0 %v1407, 96
      %v1471 = vpop.permute.xlu0 %1470
      %1472 = vrot.lane.b32.xlu0 %v1409, 96
      %v1473 = vpop.permute.xlu0 %1472
      %1474 = vrot.lane.b32.xlu0 %v1411, 96
      %v1475 = vpop.permute.xlu0 %1474
      %1476 = vrot.lane.b32.xlu0 %v1413, 96
      %v1477 = vpop.permute.xlu0 %1476
      %v1494 = vmul.f32 %v1414, %v1447
      %v1495 = vmul.f32 %v1415, %v1449
      %v1496 = vmul.f32 %v1416, %v1451
      %v1497 = vmul.f32 %v1417, %v1453
      %v1498 = vmul.f32 %v1418, %v1455
      %v1499 = vmul.f32 %v1419, %v1457
      %v1500 = vmul.f32 %v1420, %v1459
      %v1501 = vmul.f32 %v1421, %v1461
      %v1502 = vmul.f32 %v1422, %v1463
      %v1503 = vmul.f32 %v1423, %v1465
      %v1504 = vmul.f32 %v1424, %v1467
      %v1505 = vmul.f32 %v1425, %v1469
      %v1506 = vmul.f32 %v1426, %v1471
      %v1507 = vmul.f32 %v1427, %v1473
      %v1508 = vmul.f32 %v1428, %v1475
      %v1509 = vmul.f32 %v1429, %v1477
      %v1510 = vadd.f32 %v1327, %v1494
      %v1511 = vadd.f32 %v1329, %v1495
      %v1512 = vadd.f32 %v1332, %v1496
      %v1513 = vadd.f32 %v1334, %v1497
      %v1514 = vadd.f32 %v1337, %v1498
      %v1515 = vadd.f32 %v1339, %v1499
      %v1516 = vadd.f32 %v1342, %v1500
      %v1517 = vadd.f32 %v1344, %v1501
      %v1518 = vadd.f32 %v1347, %v1502
      %v1519 = vadd.f32 %v1349, %v1503
      %v1520 = vadd.f32 %v1352, %v1504
      %v1521 = vadd.f32 %v1354, %v1505
      %v1522 = vadd.f32 %v1357, %v1506
      %v1523 = vadd.f32 %v1359, %v1507
      %v1524 = vadd.f32 %v1362, %v1508
      %v1525 = vadd.f32 %v1364, %v1509
      %vm1526 = vcmask 261120
      %v1527 = vsel %vm1526, %v1510, -inf
      %1528 = vmax.xlane.f32.xlu0 %v1527
      %v1529 = vpop.xlane.xlu0 %1528
      %v1530 = vsel %vm1526, %v1511, -inf
      %1531 = vmax.xlane.f32.xlu0 %v1530
      %v1532 = vpop.xlane.xlu0 %1531
      %v1533 = vsel %vm1526, %v1512, -inf
      %1534 = vmax.xlane.f32.xlu0 %v1533
      %v1535 = vpop.xlane.xlu0 %1534
      %v1536 = vsel %vm1526, %v1513, -inf
      %1537 = vmax.xlane.f32.xlu0 %v1536
      %v1538 = vpop.xlane.xlu0 %1537
      %v1539 = vsel %vm1526, %v1514, -inf
      %1540 = vmax.xlane.f32.xlu0 %v1539
      %v1541 = vpop.xlane.xlu0 %1540
      %v1542 = vsel %vm1526, %v1515, -inf
      %1543 = vmax.xlane.f32.xlu0 %v1542
      %v1544 = vpop.xlane.xlu0 %1543
      %v1545 = vsel %vm1526, %v1516, -inf
      %1546 = vmax.xlane.f32.xlu0 %v1545
      %v1547 = vpop.xlane.xlu0 %1546
      %v1548 = vsel %vm1526, %v1517, -inf
      %1549 = vmax.xlane.f32.xlu0 %v1548
      %v1550 = vpop.xlane.xlu0 %1549
      %v1551 = vsel %vm1526, %v1518, -inf
      %1552 = vmax.xlane.f32.xlu0 %v1551
      %v1553 = vpop.xlane.xlu0 %1552
      %v1554 = vsel %vm1526, %v1519, -inf
      %1555 = vmax.xlane.f32.xlu0 %v1554
      %v1556 = vpop.xlane.xlu0 %1555
      %v1557 = vsel %vm1526, %v1520, -inf
      %1558 = vmax.xlane.f32.xlu0 %v1557
      %v1559 = vpop.xlane.xlu0 %1558
      %v1560 = vsel %vm1526, %v1521, -inf
      %1561 = vmax.xlane.f32.xlu0 %v1560
      %v1562 = vpop.xlane.xlu0 %1561
      %v1563 = vsel %vm1526, %v1522, -inf
      %1564 = vmax.xlane.f32.xlu0 %v1563
      %v1565 = vpop.xlane.xlu0 %1564
      %v1566 = vsel %vm1526, %v1523, -inf
      %1567 = vmax.xlane.f32.xlu0 %v1566
      %v1568 = vpop.xlane.xlu0 %1567
      %v1569 = vsel %vm1526, %v1524, -inf
      %1570 = vmax.xlane.f32.xlu0 %v1569
      %v1571 = vpop.xlane.xlu0 %1570
      %v1572 = vsel %vm1526, %v1525, -inf
      %1573 = vmax.xlane.f32.xlu0 %v1572
      %v1574 = vpop.xlane.xlu0 %1573
      %v1575 = vsub.f32 %v1510, %v1529
      %v1576 = vsub.f32 %v1511, %v1532
      %v1577 = vsub.f32 %v1512, %v1535
      %v1578 = vsub.f32 %v1513, %v1538
      %v1579 = vsub.f32 %v1514, %v1541
      %v1580 = vsub.f32 %v1515, %v1544
      %v1581 = vsub.f32 %v1516, %v1547
      %v1582 = vsub.f32 %v1517, %v1550
      %v1583 = vsub.f32 %v1518, %v1553
      %v1584 = vsub.f32 %v1519, %v1556
      %v1585 = vsub.f32 %v1520, %v1559
      %v1586 = vsub.f32 %v1521, %v1562
      %v1587 = vsub.f32 %v1522, %v1565
      %v1588 = vsub.f32 %v1523, %v1568
      %v1589 = vsub.f32 %v1524, %v1571
      %v1590 = vsub.f32 %v1525, %v1574
      %v1591 = vmul.f32 %v1575, 1.442695
      %v1592 = vpow.pop %v1591
      %v1593 = vmul.f32 %v1576, 1.442695
      %v1594 = vpow.pop %v1593
      %v1595 = vmul.f32 %v1577, 1.442695
      %v1596 = vpow.pop %v1595
      %v1597 = vmul.f32 %v1578, 1.442695
      %v1598 = vpow.pop %v1597
      %v1599 = vmul.f32 %v1579, 1.442695
      %v1600 = vpow.pop %v1599
      %v1601 = vmul.f32 %v1580, 1.442695
      %v1602 = vpow.pop %v1601
      %v1603 = vmul.f32 %v1581, 1.442695
      %v1604 = vpow.pop %v1603
      %v1605 = vmul.f32 %v1582, 1.442695
      %v1606 = vpow.pop %v1605
      %v1607 = vmul.f32 %v1583, 1.442695
      %v1608 = vpow.pop %v1607
      %v1609 = vmul.f32 %v1584, 1.442695
      %v1610 = vpow.pop %v1609
      %v1611 = vmul.f32 %v1585, 1.442695
      %v1612 = vpow.pop %v1611
      %v1613 = vmul.f32 %v1586, 1.442695
      %v1614 = vpow.pop %v1613
      %v1615 = vmul.f32 %v1587, 1.442695
      %v1616 = vpow.pop %v1615
      %v1617 = vmul.f32 %v1588, 1.442695
      %v1618 = vpow.pop %v1617
      %v1619 = vmul.f32 %v1589, 1.442695
      %v1620 = vpow.pop %v1619
      %v1621 = vmul.f32 %v1590, 1.442695
      %v1622 = vpow.pop %v1621
      %v1623 = vsel %vm1526, %v1592, 0.0
      %1624 = vadd.xlane.f32.xlu0 %v1623
      %v1625 = vpop.xlane.xlu0 %1624
      %v1626 = vsel %vm1526, %v1594, 0.0
      %1627 = vadd.xlane.f32.xlu0 %v1626
      %v1628 = vpop.xlane.xlu0 %1627
      %v1629 = vsel %vm1526, %v1596, 0.0
      %1630 = vadd.xlane.f32.xlu0 %v1629
      %v1631 = vpop.xlane.xlu0 %1630
      %v1632 = vsel %vm1526, %v1598, 0.0
      %1633 = vadd.xlane.f32.xlu0 %v1632
      %v1634 = vpop.xlane.xlu0 %1633
      %v1635 = vsel %vm1526, %v1600, 0.0
      %1636 = vadd.xlane.f32.xlu0 %v1635
      %v1637 = vpop.xlane.xlu0 %1636
      %v1638 = vsel %vm1526, %v1602, 0.0
      %1639 = vadd.xlane.f32.xlu0 %v1638
      %v1640 = vpop.xlane.xlu0 %1639
      %v1641 = vsel %vm1526, %v1604, 0.0
      %1642 = vadd.xlane.f32.xlu0 %v1641
      %v1643 = vpop.xlane.xlu0 %1642
      %v1644 = vsel %vm1526, %v1606, 0.0
      %1645 = vadd.xlane.f32.xlu0 %v1644
      %v1646 = vpop.xlane.xlu0 %1645
      %v1647 = vsel %vm1526, %v1608, 0.0
      %1648 = vadd.xlane.f32.xlu0 %v1647
      %v1649 = vpop.xlane.xlu0 %1648
      %v1650 = vsel %vm1526, %v1610, 0.0
      %1651 = vadd.xlane.f32.xlu0 %v1650
      %v1652 = vpop.xlane.xlu0 %1651
      %v1653 = vsel %vm1526, %v1612, 0.0
      %1654 = vadd.xlane.f32.xlu0 %v1653
      %v1655 = vpop.xlane.xlu0 %1654
      %v1656 = vsel %vm1526, %v1614, 0.0
      %1657 = vadd.xlane.f32.xlu0 %v1656
      %v1658 = vpop.xlane.xlu0 %1657
      %v1659 = vsel %vm1526, %v1616, 0.0
      %1660 = vadd.xlane.f32.xlu0 %v1659
      %v1661 = vpop.xlane.xlu0 %1660
      %v1662 = vsel %vm1526, %v1618, 0.0
      %1663 = vadd.xlane.f32.xlu0 %v1662
      %v1664 = vpop.xlane.xlu0 %1663
      %v1665 = vsel %vm1526, %v1620, 0.0
      %1666 = vadd.xlane.f32.xlu0 %v1665
      %v1667 = vpop.xlane.xlu0 %1666
      %v1668 = vsel %vm1526, %v1622, 0.0
      %1669 = vadd.xlane.f32.xlu0 %v1668
      %v1670 = vpop.xlane.xlu0 %1669
      %v1671 = vrcp.pop %v1625
      %v1672 = vmul.f32 %v1625, %v1671
      %v1673 = vsub.f32 1.0, %v1672
      %v1674 = vmul.f32 %v1671, %v1673
      %v1675 = vadd.f32 %v1671, %v1674
      %vm1676 = vweird.f32 %v1625
      %vm1677 = vweird.f32 %v1671
      %vm1678 = vmor %vm1676, %vm1677
      %v1679 = vsel %vm1678, %v1671, %v1675
      %v1680 = vand.u32 2147483647, %v1625
      %vm1681 = vcmp.eq.f32.partialorder %v1680, 8.507059e+37
      %v1682 = vand.u32 %v1625, 2147483648
      %v1683 = vor.u32 1.1754944e-38, %v1682
      %v1684 = vsel %vm1681, %v1683, %v1679
      %v1685 = vrcp.pop %v1628
      %v1686 = vmul.f32 %v1628, %v1685
      %v1687 = vsub.f32 1.0, %v1686
      %v1688 = vmul.f32 %v1685, %v1687
      %v1689 = vadd.f32 %v1685, %v1688
      %vm1690 = vweird.f32 %v1628
      %vm1691 = vweird.f32 %v1685
      %vm1692 = vmor %vm1690, %vm1691
      %v1693 = vsel %vm1692, %v1685, %v1689
      %v1694 = vand.u32 2147483647, %v1628
      %vm1695 = vcmp.eq.f32.partialorder %v1694, 8.507059e+37
      %v1696 = vand.u32 %v1628, 2147483648
      %v1697 = vor.u32 1.1754944e-38, %v1696
      %v1698 = vsel %vm1695, %v1697, %v1693
      %v1699 = vrcp.pop %v1631
      %v1700 = vmul.f32 %v1631, %v1699
      %v1701 = vsub.f32 1.0, %v1700
      %v1702 = vmul.f32 %v1699, %v1701
      %v1703 = vadd.f32 %v1699, %v1702
      %vm1704 = vweird.f32 %v1631
      %vm1705 = vweird.f32 %v1699
      %vm1706 = vmor %vm1704, %vm1705
      %v1707 = vsel %vm1706, %v1699, %v1703
      %v1708 = vand.u32 2147483647, %v1631
      %vm1709 = vcmp.eq.f32.partialorder %v1708, 8.507059e+37
      %v1710 = vand.u32 %v1631, 2147483648
      %v1711 = vor.u32 1.1754944e-38, %v1710
      %v1712 = vsel %vm1709, %v1711, %v1707
      %v1713 = vrcp.pop %v1634
      %v1714 = vmul.f32 %v1634, %v1713
      %v1715 = vsub.f32 1.0, %v1714
      %v1716 = vmul.f32 %v1713, %v1715
      %v1717 = vadd.f32 %v1713, %v1716
      %vm1718 = vweird.f32 %v1634
      %vm1719 = vweird.f32 %v1713
      %vm1720 = vmor %vm1718, %vm1719
      %v1721 = vsel %vm1720, %v1713, %v1717
      %v1722 = vand.u32 2147483647, %v1634
      %vm1723 = vcmp.eq.f32.partialorder %v1722, 8.507059e+37
      %v1724 = vand.u32 %v1634, 2147483648
      %v1725 = vor.u32 1.1754944e-38, %v1724
      %v1726 = vsel %vm1723, %v1725, %v1721
      %v1727 = vrcp.pop %v1637
      %v1728 = vmul.f32 %v1637, %v1727
      %v1729 = vsub.f32 1.0, %v1728
      %v1730 = vmul.f32 %v1727, %v1729
      %v1731 = vadd.f32 %v1727, %v1730
      %vm1732 = vweird.f32 %v1637
      %vm1733 = vweird.f32 %v1727
      %vm1734 = vmor %vm1732, %vm1733
      %v1735 = vsel %vm1734, %v1727, %v1731
      %v1736 = vand.u32 2147483647, %v1637
      %vm1737 = vcmp.eq.f32.partialorder %v1736, 8.507059e+37
      %v1738 = vand.u32 %v1637, 2147483648
      %v1739 = vor.u32 1.1754944e-38, %v1738
      %v1740 = vsel %vm1737, %v1739, %v1735
      %v1741 = vrcp.pop %v1640
      %v1742 = vmul.f32 %v1640, %v1741
      %v1743 = vsub.f32 1.0, %v1742
      %v1744 = vmul.f32 %v1741, %v1743
      %v1745 = vadd.f32 %v1741, %v1744
      %vm1746 = vweird.f32 %v1640
      %vm1747 = vweird.f32 %v1741
      %vm1748 = vmor %vm1746, %vm1747
      %v1749 = vsel %vm1748, %v1741, %v1745
      %v1750 = vand.u32 2147483647, %v1640
      %vm1751 = vcmp.eq.f32.partialorder %v1750, 8.507059e+37
      %v1752 = vand.u32 %v1640, 2147483648
      %v1753 = vor.u32 1.1754944e-38, %v1752
      %v1754 = vsel %vm1751, %v1753, %v1749
      %v1755 = vrcp.pop %v1643
      %v1756 = vmul.f32 %v1643, %v1755
      %v1757 = vsub.f32 1.0, %v1756
      %v1758 = vmul.f32 %v1755, %v1757
      %v1759 = vadd.f32 %v1755, %v1758
      %vm1760 = vweird.f32 %v1643
      %vm1761 = vweird.f32 %v1755
      %vm1762 = vmor %vm1760, %vm1761
      %v1763 = vsel %vm1762, %v1755, %v1759
      %v1764 = vand.u32 2147483647, %v1643
      %vm1765 = vcmp.eq.f32.partialorder %v1764, 8.507059e+37
      %v1766 = vand.u32 %v1643, 2147483648
      %v1767 = vor.u32 1.1754944e-38, %v1766
      %v1768 = vsel %vm1765, %v1767, %v1763
      %v1769 = vrcp.pop %v1646
      %v1770 = vmul.f32 %v1646, %v1769
      %v1771 = vsub.f32 1.0, %v1770
      %v1772 = vmul.f32 %v1769, %v1771
      %v1773 = vadd.f32 %v1769, %v1772
      %vm1774 = vweird.f32 %v1646
      %vm1775 = vweird.f32 %v1769
      %vm1776 = vmor %vm1774, %vm1775
      %v1777 = vsel %vm1776, %v1769, %v1773
      %v1778 = vand.u32 2147483647, %v1646
      %vm1779 = vcmp.eq.f32.partialorder %v1778, 8.507059e+37
      %v1780 = vand.u32 %v1646, 2147483648
      %v1781 = vor.u32 1.1754944e-38, %v1780
      %v1782 = vsel %vm1779, %v1781, %v1777
      %v1783 = vrcp.pop %v1649
      %v1784 = vmul.f32 %v1649, %v1783
      %v1785 = vsub.f32 1.0, %v1784
      %v1786 = vmul.f32 %v1783, %v1785
      %v1787 = vadd.f32 %v1783, %v1786
      %vm1788 = vweird.f32 %v1649
      %vm1789 = vweird.f32 %v1783
      %vm1790 = vmor %vm1788, %vm1789
      %v1791 = vsel %vm1790, %v1783, %v1787
      %v1792 = vand.u32 2147483647, %v1649
      %vm1793 = vcmp.eq.f32.partialorder %v1792, 8.507059e+37
      %v1794 = vand.u32 %v1649, 2147483648
      %v1795 = vor.u32 1.1754944e-38, %v1794
      %v1796 = vsel %vm1793, %v1795, %v1791
      %v1797 = vrcp.pop %v1652
      %v1798 = vmul.f32 %v1652, %v1797
      %v1799 = vsub.f32 1.0, %v1798
      %v1800 = vmul.f32 %v1797, %v1799
      %v1801 = vadd.f32 %v1797, %v1800
      %vm1802 = vweird.f32 %v1652
      %vm1803 = vweird.f32 %v1797
      %vm1804 = vmor %vm1802, %vm1803
      %v1805 = vsel %vm1804, %v1797, %v1801
      %v1806 = vand.u32 2147483647, %v1652
      %vm1807 = vcmp.eq.f32.partialorder %v1806, 8.507059e+37
      %v1808 = vand.u32 %v1652, 2147483648
      %v1809 = vor.u32 1.1754944e-38, %v1808
      %v1810 = vsel %vm1807, %v1809, %v1805
      %v1811 = vrcp.pop %v1655
      %v1812 = vmul.f32 %v1655, %v1811
      %v1813 = vsub.f32 1.0, %v1812
      %v1814 = vmul.f32 %v1811, %v1813
      %v1815 = vadd.f32 %v1811, %v1814
      %vm1816 = vweird.f32 %v1655
      %vm1817 = vweird.f32 %v1811
      %vm1818 = vmor %vm1816, %vm1817
      %v1819 = vsel %vm1818, %v1811, %v1815
      %v1820 = vand.u32 2147483647, %v1655
      %vm1821 = vcmp.eq.f32.partialorder %v1820, 8.507059e+37
      %v1822 = vand.u32 %v1655, 2147483648
      %v1823 = vor.u32 1.1754944e-38, %v1822
      %v1824 = vsel %vm1821, %v1823, %v1819
      %v1825 = vrcp.pop %v1658
      %v1826 = vmul.f32 %v1658, %v1825
      %v1827 = vsub.f32 1.0, %v1826
      %v1828 = vmul.f32 %v1825, %v1827
      %v1829 = vadd.f32 %v1825, %v1828
      %vm1830 = vweird.f32 %v1658
      %vm1831 = vweird.f32 %v1825
      %vm1832 = vmor %vm1830, %vm1831
      %v1833 = vsel %vm1832, %v1825, %v1829
      %v1834 = vand.u32 2147483647, %v1658
      %vm1835 = vcmp.eq.f32.partialorder %v1834, 8.507059e+37
      %v1836 = vand.u32 %v1658, 2147483648
      %v1837 = vor.u32 1.1754944e-38, %v1836
      %v1838 = vsel %vm1835, %v1837, %v1833
      %v1839 = vrcp.pop %v1661
      %v1840 = vmul.f32 %v1661, %v1839
      %v1841 = vsub.f32 1.0, %v1840
      %v1842 = vmul.f32 %v1839, %v1841
      %v1843 = vadd.f32 %v1839, %v1842
      %vm1844 = vweird.f32 %v1661
      %vm1845 = vweird.f32 %v1839
      %vm1846 = vmor %vm1844, %vm1845
      %v1847 = vsel %vm1846, %v1839, %v1843
      %v1848 = vand.u32 2147483647, %v1661
      %vm1849 = vcmp.eq.f32.partialorder %v1848, 8.507059e+37
      %v1850 = vand.u32 %v1661, 2147483648
      %v1851 = vor.u32 1.1754944e-38, %v1850
      %v1852 = vsel %vm1849, %v1851, %v1847
      %v1853 = vrcp.pop %v1664
      %v1854 = vmul.f32 %v1664, %v1853
      %v1855 = vsub.f32 1.0, %v1854
      %v1856 = vmul.f32 %v1853, %v1855
      %v1857 = vadd.f32 %v1853, %v1856
      %vm1858 = vweird.f32 %v1664
      %vm1859 = vweird.f32 %v1853
      %vm1860 = vmor %vm1858, %vm1859
      %v1861 = vsel %vm1860, %v1853, %v1857
      %v1862 = vand.u32 2147483647, %v1664
      %vm1863 = vcmp.eq.f32.partialorder %v1862, 8.507059e+37
      %v1864 = vand.u32 %v1664, 2147483648
      %v1865 = vor.u32 1.1754944e-38, %v1864
      %v1866 = vsel %vm1863, %v1865, %v1861
      %v1867 = vrcp.pop %v1667
      %v1868 = vmul.f32 %v1667, %v1867
      %v1869 = vsub.f32 1.0, %v1868
      %v1870 = vmul.f32 %v1867, %v1869
      %v1871 = vadd.f32 %v1867, %v1870
      %vm1872 = vweird.f32 %v1667
      %vm1873 = vweird.f32 %v1867
      %vm1874 = vmor %vm1872, %vm1873
      %v1875 = vsel %vm1874, %v1867, %v1871
      %v1876 = vand.u32 2147483647, %v1667
      %vm1877 = vcmp.eq.f32.partialorder %v1876, 8.507059e+37
      %v1878 = vand.u32 %v1667, 2147483648
      %v1879 = vor.u32 1.1754944e-38, %v1878
      %v1880 = vsel %vm1877, %v1879, %v1875
      %v1881 = vrcp.pop %v1670
      %v1882 = vmul.f32 %v1670, %v1881
      %v1883 = vsub.f32 1.0, %v1882
      %v1884 = vmul.f32 %v1881, %v1883
      %v1885 = vadd.f32 %v1881, %v1884
      %vm1886 = vweird.f32 %v1670
      %vm1887 = vweird.f32 %v1881
      %vm1888 = vmor %vm1886, %vm1887
      %v1889 = vsel %vm1888, %v1881, %v1885
      %v1890 = vand.u32 2147483647, %v1670
      %vm1891 = vcmp.eq.f32.partialorder %v1890, 8.507059e+37
      %v1892 = vand.u32 %v1670, 2147483648
      %v1893 = vor.u32 1.1754944e-38, %v1892
      %v1894 = vsel %vm1891, %v1893, %v1889
      %v1895 = vmul.f32 %v1592, %v1684
      %v1896 = vmul.f32 %v1594, %v1698
      %v1897 = vmul.f32 %v1596, %v1712
      %v1898 = vmul.f32 %v1598, %v1726
      %v1899 = vmul.f32 %v1600, %v1740
      %v1900 = vmul.f32 %v1602, %v1754
      %v1901 = vmul.f32 %v1604, %v1768
      %v1902 = vmul.f32 %v1606, %v1782
      %v1903 = vmul.f32 %v1608, %v1796
      %v1904 = vmul.f32 %v1610, %v1810
      %v1905 = vmul.f32 %v1612, %v1824
      %v1906 = vmul.f32 %v1614, %v1838
      %v1907 = vmul.f32 %v1616, %v1852
      %v1908 = vmul.f32 %v1618, %v1866
      %v1909 = vmul.f32 %v1620, %v1880
      %v1910 = vmul.f32 %v1622, %v1894
      %v1911 = vpack.c.bf16 %v1896, %v1895
      %v1912 = vpack.c.bf16 %v1898, %v1897
      %v1913 = vpack.c.bf16 %v1900, %v1899
      %v1914 = vpack.c.bf16 %v1902, %v1901
      %v1915 = vpack.c.bf16 %v1904, %v1903
      %v1916 = vpack.c.bf16 %v1906, %v1905
      %v1917 = vpack.c.bf16 %v1908, %v1907
      %v1918 = vpack.c.bf16 %v1910, %v1909
      %v1919 = vld [vmem:[%s8] sm:$0xff]
      %v1920 = vld [vmem:[%s8 + $0x8] sm:$0xff]
      %v1921 = vld [vmem:[%s8 + $0x10] sm:$0xff]
      %v1922 = vld [vmem:[%s8 + $0x18] sm:$0xff]
      %v1927 = vunpack.c.l.b16 %v1919
      %v1928 = vunpack.c.h.b16 %v1919
      %v1929 = vunpack.c.l.b16 %v1920
      %v1930 = vunpack.c.h.b16 %v1920
      %v1931 = vunpack.c.l.b16 %v1921
      %v1932 = vunpack.c.h.b16 %v1921
      %v1933 = vunpack.c.l.b16 %v1922
      %v1934 = vunpack.c.h.b16 %v1922
      %v1935 = vpack.c.b16 %v1929, %v1927
      %v1936 = vpack.c.b16 %v1930, %v1928
      %v1937 = vpack.c.b16 %v1933, %v1931
      %v1938 = vpack.c.b16 %v1934, %v1932
      %v1944 = vsel %vm1526, %v1911, 0
      %v1947 = vsel %vm1526, %v1912, 0
      %v1950 = vsel %vm1526, %v1913, 0
      %v1953 = vsel %vm1526, %v1914, 0
      %v1956 = vsel %vm1526, %v1915, 0
      %v1959 = vsel %vm1526, %v1916, 0
      %v1962 = vsel %vm1526, %v1917, 0
      %v1965 = vsel %vm1526, %v1918, 0
      %1967 = vmatpush.bf16.msra.mxu0 0
      %1968 = vmatpush.bf16.msra.mxu0 0
      %1969 = vmatpush.bf16.msra.mxu0 0
      %1970 = vmatpush.bf16.msra.mxu0 0
      %1971 = vmatpush.bf16.msra.mxu0 0
      %1972 = vmatpush.bf16.msra.mxu0 0
      %1973 = vmatpush.bf16.msra.mxu0 %v1937
      %1974 = vmatpush.bf16.msra.mxu0 %v1935
      %1975 = vmatmul.bf16.gmra.mxu0 %v1944
      %v1976 = vpop.f32.mrf.mxu0
      %v1977 = vadd.f32 1e-12, %v1976
      %v1978 = vpop.f32.mrf.mxu0
      %v1979 = vadd.f32 1e-12, %v1978
      %1980 = vmatmul.bf16.gmra.mxu0 %v1947
      %v1981 = vpop.f32.mrf.mxu0
      %v1982 = vadd.f32 1e-12, %v1981
      %v1983 = vpop.f32.mrf.mxu0
      %v1984 = vadd.f32 1e-12, %v1983
      %1985 = vmatmul.bf16.gmra.mxu0 %v1950
      %v1986 = vpop.f32.mrf.mxu0
      %v1987 = vadd.f32 1e-12, %v1986
      %v1988 = vpop.f32.mrf.mxu0
      %v1989 = vadd.f32 1e-12, %v1988
      %1990 = vmatmul.bf16.gmra.mxu0 %v1953
      %v1991 = vpop.f32.mrf.mxu0
      %v1992 = vadd.f32 1e-12, %v1991
      %v1993 = vpop.f32.mrf.mxu0
      %v1994 = vadd.f32 1e-12, %v1993
      %1995 = vmatmul.bf16.gmra.mxu0 %v1956
      %v1996 = vpop.f32.mrf.mxu0
      %v1997 = vadd.f32 1e-12, %v1996
      %v1998 = vpop.f32.mrf.mxu0
      %v1999 = vadd.f32 1e-12, %v1998
      %2000 = vmatmul.bf16.gmra.mxu0 %v1959
      %v2001 = vpop.f32.mrf.mxu0
      %v2002 = vadd.f32 1e-12, %v2001
      %v2003 = vpop.f32.mrf.mxu0
      %v2004 = vadd.f32 1e-12, %v2003
      %2005 = vmatmul.bf16.gmra.mxu0 %v1962
      %v2006 = vpop.f32.mrf.mxu0
      %v2007 = vadd.f32 1e-12, %v2006
      %v2008 = vpop.f32.mrf.mxu0
      %v2009 = vadd.f32 1e-12, %v2008
      %2010 = vmatmul.bf16.gmra.mxu0 %v1965
      %v2011 = vpop.f32.mrf.mxu0
      %v2012 = vadd.f32 1e-12, %v2011
      %v2013 = vpop.f32.mrf.mxu0
      %v2014 = vadd.f32 1e-12, %v2013
      %2015 = vdwg.mxu0
      %2016 = vmatpush.bf16.msra.mxu0 0
      %2017 = vmatpush.bf16.msra.mxu0 0
      %2018 = vmatpush.bf16.msra.mxu0 0
      %2019 = vmatpush.bf16.msra.mxu0 0
      %2020 = vmatpush.bf16.msra.mxu0 0
      %2021 = vmatpush.bf16.msra.mxu0 0
      %2022 = vmatpush.bf16.msra.mxu0 %v1938
      %2023 = vmatpush.bf16.msra.mxu0 %v1936
      %2024 = vmatmul.bf16.gmra.mxu0 %v1944
      %v2025 = vpop.f32.mrf.mxu0
      %v2026 = vadd.f32 1e-12, %v2025
      %v2027 = vpop.f32.mrf.mxu0
      %v2028 = vadd.f32 1e-12, %v2027
      %2029 = vmatmul.bf16.gmra.mxu0 %v1947
      %v2030 = vpop.f32.mrf.mxu0
      %v2031 = vadd.f32 1e-12, %v2030
      %v2032 = vpop.f32.mrf.mxu0
      %v2033 = vadd.f32 1e-12, %v2032
      %2034 = vmatmul.bf16.gmra.mxu0 %v1950
      %v2035 = vpop.f32.mrf.mxu0
      %v2036 = vadd.f32 1e-12, %v2035
      %v2037 = vpop.f32.mrf.mxu0
      %v2038 = vadd.f32 1e-12, %v2037
      %2039 = vmatmul.bf16.gmra.mxu0 %v1953
      %v2040 = vpop.f32.mrf.mxu0
      %v2041 = vadd.f32 1e-12, %v2040
      %v2042 = vpop.f32.mrf.mxu0
      %v2043 = vadd.f32 1e-12, %v2042
      %2044 = vmatmul.bf16.gmra.mxu0 %v1956
      %v2045 = vpop.f32.mrf.mxu0
      %v2046 = vadd.f32 1e-12, %v2045
      %v2047 = vpop.f32.mrf.mxu0
      %v2048 = vadd.f32 1e-12, %v2047
      %2049 = vmatmul.bf16.gmra.mxu0 %v1959
      %v2050 = vpop.f32.mrf.mxu0
      %v2051 = vadd.f32 1e-12, %v2050
      %v2052 = vpop.f32.mrf.mxu0
      %v2053 = vadd.f32 1e-12, %v2052
      %2054 = vmatmul.bf16.gmra.mxu0 %v1962
      %v2055 = vpop.f32.mrf.mxu0
      %v2056 = vadd.f32 1e-12, %v2055
      %v2057 = vpop.f32.mrf.mxu0
      %v2058 = vadd.f32 1e-12, %v2057
      %2059 = vmatmul.bf16.gmra.mxu0 %v1965
      %v2060 = vpop.f32.mrf.mxu0
      %v2061 = vadd.f32 1e-12, %v2060
      %v2062 = vpop.f32.mrf.mxu0
      %v2063 = vadd.f32 1e-12, %v2062
      %2064 = vdwg.mxu0
      %v2065 = vlog2.pop %v1977
      %v2066 = vmul.f32 %v2065, 0.6931472
      %v2067 = vlog2.pop %v2026
      %v2068 = vmul.f32 %v2067, 0.6931472
      %v2069 = vlog2.pop %v1979
      %v2070 = vmul.f32 %v2069, 0.6931472
      %v2071 = vlog2.pop %v2028
      %v2072 = vmul.f32 %v2071, 0.6931472
      %v2073 = vlog2.pop %v1982
      %v2074 = vmul.f32 %v2073, 0.6931472
      %v2075 = vlog2.pop %v2031
      %v2076 = vmul.f32 %v2075, 0.6931472
      %v2077 = vlog2.pop %v1984
      %v2078 = vmul.f32 %v2077, 0.6931472
      %v2079 = vlog2.pop %v2033
      %v2080 = vmul.f32 %v2079, 0.6931472
      %v2081 = vlog2.pop %v1987
      %v2082 = vmul.f32 %v2081, 0.6931472
      %v2083 = vlog2.pop %v2036
      %v2084 = vmul.f32 %v2083, 0.6931472
      %v2085 = vlog2.pop %v1989
      %v2086 = vmul.f32 %v2085, 0.6931472
      %v2087 = vlog2.pop %v2038
      %v2088 = vmul.f32 %v2087, 0.6931472
      %v2089 = vlog2.pop %v1992
      %v2090 = vmul.f32 %v2089, 0.6931472
      %v2091 = vlog2.pop %v2041
      %v2092 = vmul.f32 %v2091, 0.6931472
      %v2093 = vlog2.pop %v1994
      %v2094 = vmul.f32 %v2093, 0.6931472
      %v2095 = vlog2.pop %v2043
      %v2096 = vmul.f32 %v2095, 0.6931472
      %v2097 = vlog2.pop %v1997
      %v2098 = vmul.f32 %v2097, 0.6931472
      %v2099 = vlog2.pop %v2046
      %v2100 = vmul.f32 %v2099, 0.6931472
      %v2101 = vlog2.pop %v1999
      %v2102 = vmul.f32 %v2101, 0.6931472
      %v2103 = vlog2.pop %v2048
      %v2104 = vmul.f32 %v2103, 0.6931472
      %v2105 = vlog2.pop %v2002
      %v2106 = vmul.f32 %v2105, 0.6931472
      %v2107 = vlog2.pop %v2051
      %v2108 = vmul.f32 %v2107, 0.6931472
      %v2109 = vlog2.pop %v2004
      %v2110 = vmul.f32 %v2109, 0.6931472
      %v2111 = vlog2.pop %v2053
      %v2112 = vmul.f32 %v2111, 0.6931472
      %v2113 = vlog2.pop %v2007
      %v2114 = vmul.f32 %v2113, 0.6931472
      %v2115 = vlog2.pop %v2056
      %v2116 = vmul.f32 %v2115, 0.6931472
      %v2117 = vlog2.pop %v2009
      %v2118 = vmul.f32 %v2117, 0.6931472
      %v2119 = vlog2.pop %v2058
      %v2120 = vmul.f32 %v2119, 0.6931472
      %v2121 = vlog2.pop %v2012
      %v2122 = vmul.f32 %v2121, 0.6931472
      %v2123 = vlog2.pop %v2061
      %v2124 = vmul.f32 %v2123, 0.6931472
      %v2125 = vlog2.pop %v2014
      %v2126 = vmul.f32 %v2125, 0.6931472
      %v2127 = vlog2.pop %v2063
      %v2128 = vmul.f32 %v2127, 0.6931472
      %v2129 = vmul.f32 %v470, %v2066
      %v2130 = vmul.f32 %v471, %v2068
      %v2131 = vmul.f32 %v472, %v2070
      %v2132 = vmul.f32 %v473, %v2072
      %v2133 = vmul.f32 %v474, %v2074
      %v2134 = vmul.f32 %v475, %v2076
      %v2135 = vmul.f32 %v476, %v2078
      %v2136 = vmul.f32 %v477, %v2080
      %v2137 = vmul.f32 %v478, %v2082
      %v2138 = vmul.f32 %v479, %v2084
      %v2139 = vmul.f32 %v480, %v2086
      %v2140 = vmul.f32 %v481, %v2088
      %v2141 = vmul.f32 %v482, %v2090
      %v2142 = vmul.f32 %v483, %v2092
      %v2143 = vmul.f32 %v484, %v2094
      %v2144 = vmul.f32 %v485, %v2096
      %v2145 = vmul.f32 %v486, %v2098
      %v2146 = vmul.f32 %v487, %v2100
      %v2147 = vmul.f32 %v488, %v2102
      %v2148 = vmul.f32 %v489, %v2104
      %v2149 = vmul.f32 %v490, %v2106
      %v2150 = vmul.f32 %v491, %v2108
      %v2151 = vmul.f32 %v492, %v2110
      %v2152 = vmul.f32 %v493, %v2112
      %v2153 = vmul.f32 %v494, %v2114
      %v2154 = vmul.f32 %v495, %v2116
      %v2155 = vmul.f32 %v496, %v2118
      %v2156 = vmul.f32 %v497, %v2120
      %v2157 = vmul.f32 %v498, %v2122
      %v2158 = vmul.f32 %v499, %v2124
      %v2159 = vmul.f32 %v500, %v2126
      %v2160 = vmul.f32 %v501, %v2128
      %v2161 = vadd.f32 %v2129, %v2130
      %2162 = vadd.xlane.f32.xlu0 %v2161
      %v2163 = vpop.xlane.xlu0 %2162
      %v2164 = vadd.f32 %v2131, %v2132
      %2165 = vadd.xlane.f32.xlu0 %v2164
      %v2166 = vpop.xlane.xlu0 %2165
      %v2167 = vadd.f32 %v2133, %v2134
      %2168 = vadd.xlane.f32.xlu0 %v2167
      %v2169 = vpop.xlane.xlu0 %2168
      %v2170 = vadd.f32 %v2135, %v2136
      %2171 = vadd.xlane.f32.xlu0 %v2170
      %v2172 = vpop.xlane.xlu0 %2171
      %v2173 = vadd.f32 %v2137, %v2138
      %2174 = vadd.xlane.f32.xlu0 %v2173
      %v2175 = vpop.xlane.xlu0 %2174
      %v2176 = vadd.f32 %v2139, %v2140
      %2177 = vadd.xlane.f32.xlu0 %v2176
      %v2178 = vpop.xlane.xlu0 %2177
      %v2179 = vadd.f32 %v2141, %v2142
      %2180 = vadd.xlane.f32.xlu0 %v2179
      %v2181 = vpop.xlane.xlu0 %2180
      %v2182 = vadd.f32 %v2143, %v2144
      %2183 = vadd.xlane.f32.xlu0 %v2182
      %v2184 = vpop.xlane.xlu0 %2183
      %v2185 = vadd.f32 %v2145, %v2146
      %2186 = vadd.xlane.f32.xlu0 %v2185
      %v2187 = vpop.xlane.xlu0 %2186
      %v2188 = vadd.f32 %v2147, %v2148
      %2189 = vadd.xlane.f32.xlu0 %v2188
      %v2190 = vpop.xlane.xlu0 %2189
      %v2191 = vadd.f32 %v2149, %v2150
      %2192 = vadd.xlane.f32.xlu0 %v2191
      %v2193 = vpop.xlane.xlu0 %2192
      %v2194 = vadd.f32 %v2151, %v2152
      %2195 = vadd.xlane.f32.xlu0 %v2194
      %v2196 = vpop.xlane.xlu0 %2195
      %v2197 = vadd.f32 %v2153, %v2154
      %2198 = vadd.xlane.f32.xlu0 %v2197
      %v2199 = vpop.xlane.xlu0 %2198
      %v2200 = vadd.f32 %v2155, %v2156
      %2201 = vadd.xlane.f32.xlu0 %v2200
      %v2202 = vpop.xlane.xlu0 %2201
      %v2203 = vadd.f32 %v2157, %v2158
      %2204 = vadd.xlane.f32.xlu0 %v2203
      %v2205 = vpop.xlane.xlu0 %2204
      %v2206 = vadd.f32 %v2159, %v2160
      %2207 = vadd.xlane.f32.xlu0 %v2206
      %v2208 = vpop.xlane.xlu0 %2207
      %v2209 = vsub.f32 0.0, %v2163
      %v2210 = vsub.f32 0.0, %v2166
      %v2211 = vsub.f32 0.0, %v2169
      %v2212 = vsub.f32 0.0, %v2172
      %v2213 = vsub.f32 0.0, %v2175
      %v2214 = vsub.f32 0.0, %v2178
      %v2215 = vsub.f32 0.0, %v2181
      %v2216 = vsub.f32 0.0, %v2184
      %v2217 = vsub.f32 0.0, %v2187
      %v2218 = vsub.f32 0.0, %v2190
      %v2219 = vsub.f32 0.0, %v2193
      %v2220 = vsub.f32 0.0, %v2196
      %v2221 = vsub.f32 0.0, %v2199
      %v2222 = vsub.f32 0.0, %v2202
      %v2223 = vsub.f32 0.0, %v2205
      %v2224 = vsub.f32 0.0, %v2208
      %v2225 = vadd.f32 %v1327, 1.0
      %v2226 = vadd.f32 %v1329, 1.0
      %v2227 = vadd.f32 %v1332, 1.0
      %v2228 = vadd.f32 %v1334, 1.0
      %v2229 = vadd.f32 %v1337, 1.0
      %v2230 = vadd.f32 %v1339, 1.0
      %v2231 = vadd.f32 %v1342, 1.0
      %v2232 = vadd.f32 %v1344, 1.0
      %v2233 = vadd.f32 %v1347, 1.0
      %v2234 = vadd.f32 %v1349, 1.0
      %v2235 = vadd.f32 %v1352, 1.0
      %v2236 = vadd.f32 %v1354, 1.0
      %v2237 = vadd.f32 %v1357, 1.0
      %v2238 = vadd.f32 %v1359, 1.0
      %v2239 = vadd.f32 %v1362, 1.0
      %v2240 = vadd.f32 %v1364, 1.0
      %v2241 = vmul.f32 %v1327, %v1327
      %v2242 = vmul.f32 %v1329, %v1329
      %v2243 = vmul.f32 %v1332, %v1332
      %v2244 = vmul.f32 %v1334, %v1334
      %v2245 = vmul.f32 %v1337, %v1337
      %v2246 = vmul.f32 %v1339, %v1339
      %v2247 = vmul.f32 %v1342, %v1342
      %v2248 = vmul.f32 %v1344, %v1344
      %v2249 = vmul.f32 %v1347, %v1347
      %v2250 = vmul.f32 %v1349, %v1349
      %v2251 = vmul.f32 %v1352, %v1352
      %v2252 = vmul.f32 %v1354, %v1354
      %v2253 = vmul.f32 %v1357, %v1357
      %v2254 = vmul.f32 %v1359, %v1359
      %v2255 = vmul.f32 %v1362, %v1362
      %v2256 = vmul.f32 %v1364, %v1364
      %2273 = vrot.lane.b32.xlu0 %v2241, 32
      %v2274 = vpop.permute.xlu0 %2273
      %2275 = vrot.lane.b32.xlu0 %v2242, 32
      %v2276 = vpop.permute.xlu0 %2275
      %2277 = vrot.lane.b32.xlu0 %v2243, 32
      %v2278 = vpop.permute.xlu0 %2277
      %2279 = vrot.lane.b32.xlu0 %v2244, 32
      %v2280 = vpop.permute.xlu0 %2279
      %2281 = vrot.lane.b32.xlu0 %v2245, 32
      %v2282 = vpop.permute.xlu0 %2281
      %2283 = vrot.lane.b32.xlu0 %v2246, 32
      %v2284 = vpop.permute.xlu0 %2283
      %2285 = vrot.lane.b32.xlu0 %v2247, 32
      %v2286 = vpop.permute.xlu0 %2285
      %2287 = vrot.lane.b32.xlu0 %v2248, 32
      %v2288 = vpop.permute.xlu0 %2287
      %2289 = vrot.lane.b32.xlu0 %v2249, 32
      %v2290 = vpop.permute.xlu0 %2289
      %2291 = vrot.lane.b32.xlu0 %v2250, 32
      %v2292 = vpop.permute.xlu0 %2291
      %2293 = vrot.lane.b32.xlu0 %v2251, 32
      %v2294 = vpop.permute.xlu0 %2293
      %2295 = vrot.lane.b32.xlu0 %v2252, 32
      %v2296 = vpop.permute.xlu0 %2295
      %2297 = vrot.lane.b32.xlu0 %v2253, 32
      %v2298 = vpop.permute.xlu0 %2297
      %2299 = vrot.lane.b32.xlu0 %v2254, 32
      %v2300 = vpop.permute.xlu0 %2299
      %2301 = vrot.lane.b32.xlu0 %v2255, 32
      %v2302 = vpop.permute.xlu0 %2301
      %2303 = vrot.lane.b32.xlu0 %v2256, 32
      %v2304 = vpop.permute.xlu0 %2303
      %v2321 = vsub.f32 %v2225, %v2274
      %v2322 = vsub.f32 %v2226, %v2276
      %v2323 = vsub.f32 %v2227, %v2278
      %v2324 = vsub.f32 %v2228, %v2280
      %v2325 = vsub.f32 %v2229, %v2282
      %v2326 = vsub.f32 %v2230, %v2284
      %v2327 = vsub.f32 %v2231, %v2286
      %v2328 = vsub.f32 %v2232, %v2288
      %v2329 = vsub.f32 %v2233, %v2290
      %v2330 = vsub.f32 %v2234, %v2292
      %v2331 = vsub.f32 %v2235, %v2294
      %v2332 = vsub.f32 %v2236, %v2296
      %v2333 = vsub.f32 %v2237, %v2298
      %v2334 = vsub.f32 %v2238, %v2300
      %v2335 = vsub.f32 %v2239, %v2302
      %v2336 = vsub.f32 %v2240, %v2304
      %v2337 = vmul.f32 %v1383, %v1383
      %v2338 = vmul.f32 %v1385, %v1385
      %v2339 = vmul.f32 %v1387, %v1387
      %v2340 = vmul.f32 %v1389, %v1389
      %v2341 = vmul.f32 %v1391, %v1391
      %v2342 = vmul.f32 %v1393, %v1393
      %v2343 = vmul.f32 %v1395, %v1395
      %v2344 = vmul.f32 %v1397, %v1397
      %v2345 = vmul.f32 %v1399, %v1399
      %v2346 = vmul.f32 %v1401, %v1401
      %v2347 = vmul.f32 %v1403, %v1403
      %v2348 = vmul.f32 %v1405, %v1405
      %v2349 = vmul.f32 %v1407, %v1407
      %v2350 = vmul.f32 %v1409, %v1409
      %v2351 = vmul.f32 %v1411, %v1411
      %v2352 = vmul.f32 %v1413, %v1413
      %v2353 = vsub.f32 %v2321, %v2337
      %v2354 = vsub.f32 %v2322, %v2338
      %v2355 = vsub.f32 %v2323, %v2339
      %v2356 = vsub.f32 %v2324, %v2340
      %v2357 = vsub.f32 %v2325, %v2341
      %v2358 = vsub.f32 %v2326, %v2342
      %v2359 = vsub.f32 %v2327, %v2343
      %v2360 = vsub.f32 %v2328, %v2344
      %v2361 = vsub.f32 %v2329, %v2345
      %v2362 = vsub.f32 %v2330, %v2346
      %v2363 = vsub.f32 %v2331, %v2347
      %v2364 = vsub.f32 %v2332, %v2348
      %v2365 = vsub.f32 %v2333, %v2349
      %v2366 = vsub.f32 %v2334, %v2350
      %v2367 = vsub.f32 %v2335, %v2351
      %v2368 = vsub.f32 %v2336, %v2352
      %2385 = vrot.lane.b32.xlu0 %v2353, 96
      %v2386 = vpop.permute.xlu0 %2385
      %2387 = vrot.lane.b32.xlu0 %v2354, 96
      %v2388 = vpop.permute.xlu0 %2387
      %2389 = vrot.lane.b32.xlu0 %v2355, 96
      %v2390 = vpop.permute.xlu0 %2389
      %2391 = vrot.lane.b32.xlu0 %v2356, 96
      %v2392 = vpop.permute.xlu0 %2391
      %2393 = vrot.lane.b32.xlu0 %v2357, 96
      %v2394 = vpop.permute.xlu0 %2393
      %2395 = vrot.lane.b32.xlu0 %v2358, 96
      %v2396 = vpop.permute.xlu0 %2395
      %2397 = vrot.lane.b32.xlu0 %v2359, 96
      %v2398 = vpop.permute.xlu0 %2397
      %2399 = vrot.lane.b32.xlu0 %v2360, 96
      %v2400 = vpop.permute.xlu0 %2399
      %2401 = vrot.lane.b32.xlu0 %v2361, 96
      %v2402 = vpop.permute.xlu0 %2401
      %2403 = vrot.lane.b32.xlu0 %v2362, 96
      %v2404 = vpop.permute.xlu0 %2403
      %2405 = vrot.lane.b32.xlu0 %v2363, 96
      %v2406 = vpop.permute.xlu0 %2405
      %2407 = vrot.lane.b32.xlu0 %v2364, 96
      %v2408 = vpop.permute.xlu0 %2407
      %2409 = vrot.lane.b32.xlu0 %v2365, 96
      %v2410 = vpop.permute.xlu0 %2409
      %2411 = vrot.lane.b32.xlu0 %v2366, 96
      %v2412 = vpop.permute.xlu0 %2411
      %2413 = vrot.lane.b32.xlu0 %v2367, 96
      %v2414 = vpop.permute.xlu0 %2413
      %2415 = vrot.lane.b32.xlu0 %v2368, 96
      %v2416 = vpop.permute.xlu0 %2415
      %v2433 = vsel %vm1526, %v2386, 0.0
      %2434 = vadd.xlane.f32.xlu0 %v2433
      %v2435 = vpop.xlane.xlu0 %2434
      %v2436 = vsel %vm1526, %v2388, 0.0
      %2437 = vadd.xlane.f32.xlu0 %v2436
      %v2438 = vpop.xlane.xlu0 %2437
      %v2439 = vsel %vm1526, %v2390, 0.0
      %2440 = vadd.xlane.f32.xlu0 %v2439
      %v2441 = vpop.xlane.xlu0 %2440
      %v2442 = vsel %vm1526, %v2392, 0.0
      %2443 = vadd.xlane.f32.xlu0 %v2442
      %v2444 = vpop.xlane.xlu0 %2443
      %v2445 = vsel %vm1526, %v2394, 0.0
      %2446 = vadd.xlane.f32.xlu0 %v2445
      %v2447 = vpop.xlane.xlu0 %2446
      %v2448 = vsel %vm1526, %v2396, 0.0
      %2449 = vadd.xlane.f32.xlu0 %v2448
      %v2450 = vpop.xlane.xlu0 %2449
      %v2451 = vsel %vm1526, %v2398, 0.0
      %2452 = vadd.xlane.f32.xlu0 %v2451
      %v2453 = vpop.xlane.xlu0 %2452
      %v2454 = vsel %vm1526, %v2400, 0.0
      %2455 = vadd.xlane.f32.xlu0 %v2454
      %v2456 = vpop.xlane.xlu0 %2455
      %v2457 = vsel %vm1526, %v2402, 0.0
      %2458 = vadd.xlane.f32.xlu0 %v2457
      %v2459 = vpop.xlane.xlu0 %2458
      %v2460 = vsel %vm1526, %v2404, 0.0
      %2461 = vadd.xlane.f32.xlu0 %v2460
      %v2462 = vpop.xlane.xlu0 %2461
      %v2463 = vsel %vm1526, %v2406, 0.0
      %2464 = vadd.xlane.f32.xlu0 %v2463
      %v2465 = vpop.xlane.xlu0 %2464
      %v2466 = vsel %vm1526, %v2408, 0.0
      %2467 = vadd.xlane.f32.xlu0 %v2466
      %v2468 = vpop.xlane.xlu0 %2467
      %v2469 = vsel %vm1526, %v2410, 0.0
      %2470 = vadd.xlane.f32.xlu0 %v2469
      %v2471 = vpop.xlane.xlu0 %2470
      %v2472 = vsel %vm1526, %v2412, 0.0
      %2473 = vadd.xlane.f32.xlu0 %v2472
      %v2474 = vpop.xlane.xlu0 %2473
      %v2475 = vsel %vm1526, %v2414, 0.0
      %2476 = vadd.xlane.f32.xlu0 %v2475
      %v2477 = vpop.xlane.xlu0 %2476
      %v2478 = vsel %vm1526, %v2416, 0.0
      %2479 = vadd.xlane.f32.xlu0 %v2478
      %v2480 = vpop.xlane.xlu0 %2479
      %v2481 = vmul.f32 %v2435, -0.5
      %v2482 = vmul.f32 %v2438, -0.5
      %v2483 = vmul.f32 %v2441, -0.5
      %v2484 = vmul.f32 %v2444, -0.5
      %v2485 = vmul.f32 %v2447, -0.5
      %v2486 = vmul.f32 %v2450, -0.5
      %v2487 = vmul.f32 %v2453, -0.5
      %v2488 = vmul.f32 %v2456, -0.5
      %v2489 = vmul.f32 %v2459, -0.5
      %v2490 = vmul.f32 %v2462, -0.5
      %v2491 = vmul.f32 %v2465, -0.5
      %v2492 = vmul.f32 %v2468, -0.5
      %v2493 = vmul.f32 %v2471, -0.5
      %v2494 = vmul.f32 %v2474, -0.5
      %v2495 = vmul.f32 %v2477, -0.5
      %v2496 = vmul.f32 %v2480, -0.5
      %v2497 = vadd.f32 %v2209, %v2481
      %v2498 = vadd.f32 %v2210, %v2482
      %v2499 = vadd.f32 %v2211, %v2483
      %v2500 = vadd.f32 %v2212, %v2484
      %v2501 = vadd.f32 %v2213, %v2485
      %v2502 = vadd.f32 %v2214, %v2486
      %v2503 = vadd.f32 %v2215, %v2487
      %v2504 = vadd.f32 %v2216, %v2488
      %v2505 = vadd.f32 %v2217, %v2489
      %v2506 = vadd.f32 %v2218, %v2490
      %v2507 = vadd.f32 %v2219, %v2491
      %v2508 = vadd.f32 %v2220, %v2492
      %v2509 = vadd.f32 %v2221, %v2493
      %v2510 = vadd.f32 %v2222, %v2494
      %v2511 = vadd.f32 %v2223, %v2495
      %v2512 = vadd.f32 %v2224, %v2496
      %v2513 = vld [vmem:[%s7] sm:$0xf]
      %v2514 = vld [vmem:[%s7 + $0x4] sm:$0xf]
      %v2515 = vld [vmem:[%s7 + $0x8] sm:$0xf]
      %v2516 = vld [vmem:[%s7 + $0xc] sm:$0xf]
      %v2521 = vunpack.c.l.b16 %v2513
      %v2522 = vunpack.c.l.b16 %v2514
      %v2523 = vunpack.c.l.b16 %v2515
      %v2524 = vunpack.c.l.b16 %v2516
      %v2525 = vpack.c.b16 %v2522, %v2521
      %v2526 = vpack.c.b16 %v2524, %v2523
      %2529 = vmatpush.bf16.msra.mxu0 0
      %2530 = vmatpush.bf16.msra.mxu0 0
      %2531 = vmatpush.bf16.msra.mxu0 0
      %2532 = vmatpush.bf16.msra.mxu0 0
      %2533 = vmatpush.bf16.msra.mxu0 0
      %2534 = vmatpush.bf16.msra.mxu0 0
      %2535 = vmatpush.bf16.msra.mxu0 %v2526
      %2536 = vmatpush.bf16.msra.mxu0 %v2525
      %2537 = vmatmul.bf16.gmra.mxu0 %v1944
      %v2538 = vpop.f32.mrf.mxu0
      %v2539 = vadd.f32 0.0, %v2538
      %v2540 = vpop.f32.mrf.mxu0
      %v2541 = vadd.f32 0.0, %v2540
      %2542 = vmatmul.bf16.gmra.mxu0 %v1947
      %v2543 = vpop.f32.mrf.mxu0
      %v2544 = vadd.f32 0.0, %v2543
      %v2545 = vpop.f32.mrf.mxu0
      %v2546 = vadd.f32 0.0, %v2545
      %2547 = vmatmul.bf16.gmra.mxu0 %v1950
      %v2548 = vpop.f32.mrf.mxu0
      %v2549 = vadd.f32 0.0, %v2548
      %v2550 = vpop.f32.mrf.mxu0
      %v2551 = vadd.f32 0.0, %v2550
      %2552 = vmatmul.bf16.gmra.mxu0 %v1953
      %v2553 = vpop.f32.mrf.mxu0
      %v2554 = vadd.f32 0.0, %v2553
      %v2555 = vpop.f32.mrf.mxu0
      %v2556 = vadd.f32 0.0, %v2555
      %2557 = vmatmul.bf16.gmra.mxu0 %v1956
      %v2558 = vpop.f32.mrf.mxu0
      %v2559 = vadd.f32 0.0, %v2558
      %v2560 = vpop.f32.mrf.mxu0
      %v2561 = vadd.f32 0.0, %v2560
      %2562 = vmatmul.bf16.gmra.mxu0 %v1959
      %v2563 = vpop.f32.mrf.mxu0
      %v2564 = vadd.f32 0.0, %v2563
      %v2565 = vpop.f32.mrf.mxu0
      %v2566 = vadd.f32 0.0, %v2565
      %2567 = vmatmul.bf16.gmra.mxu0 %v1962
      %v2568 = vpop.f32.mrf.mxu0
      %v2569 = vadd.f32 0.0, %v2568
      %v2570 = vpop.f32.mrf.mxu0
      %v2571 = vadd.f32 0.0, %v2570
      %2572 = vmatmul.bf16.gmra.mxu0 %v1965
      %v2573 = vpop.f32.mrf.mxu0
      %v2574 = vadd.f32 0.0, %v2573
      %v2575 = vpop.f32.mrf.mxu0
      %v2576 = vadd.f32 0.0, %v2575
      %2577 = vdwg.mxu0
      %2578 = vst [vmem:[%s455] sm:$0xff] %v2497
      %2579 = vst [vmem:[%s455 + $0x8] sm:$0xff] %v2498
      %2580 = vst [vmem:[%s455 + $0x10] sm:$0xff] %v2499
      %2581 = vst [vmem:[%s455 + $0x18] sm:$0xff] %v2500
      %2582 = vst [vmem:[%s455 + $0x20] sm:$0xff] %v2501
      %2583 = vst [vmem:[%s455 + $0x28] sm:$0xff] %v2502
      %2584 = vst [vmem:[%s455 + $0x30] sm:$0xff] %v2503
      %2585 = vst [vmem:[%s455 + $0x38] sm:$0xff] %v2504
      %2586 = vst [vmem:[%s455 + $0x40] sm:$0xff] %v2505
      %2587 = vst [vmem:[%s455 + $0x48] sm:$0xff] %v2506
      %2588 = vst [vmem:[%s455 + $0x50] sm:$0xff] %v2507
      %2589 = vst [vmem:[%s455 + $0x58] sm:$0xff] %v2508
      %2590 = vst [vmem:[%s455 + $0x60] sm:$0xff] %v2509
      %2591 = vst [vmem:[%s455 + $0x68] sm:$0xff] %v2510
      %2592 = vst [vmem:[%s455 + $0x70] sm:$0xff] %v2511
      %2593 = vst [vmem:[%s455 + $0x78] sm:$0xff] %v2512
      %v2594 = vsel %vm1526, %v1895, 0.0
      %v2595 = vsel %vm1526, %v1896, 0.0
      %v2596 = vsel %vm1526, %v1897, 0.0
      %v2597 = vsel %vm1526, %v1898, 0.0
      %v2598 = vsel %vm1526, %v1899, 0.0
      %v2599 = vsel %vm1526, %v1900, 0.0
      %v2600 = vsel %vm1526, %v1901, 0.0
      %v2601 = vsel %vm1526, %v1902, 0.0
      %v2602 = vsel %vm1526, %v1903, 0.0
      %v2603 = vsel %vm1526, %v1904, 0.0
      %v2604 = vsel %vm1526, %v1905, 0.0
      %v2605 = vsel %vm1526, %v1906, 0.0
      %v2606 = vsel %vm1526, %v1907, 0.0
      %v2607 = vsel %vm1526, %v1908, 0.0
      %v2608 = vsel %vm1526, %v1909, 0.0
      %v2609 = vsel %vm1526, %v1910, 0.0
      %2610 = vst [vmem:[%s461] sm:$0xff] %v2594
      %2611 = vst [vmem:[%s461 + $0x8] sm:$0xff] %v2595
      %2612 = vst [vmem:[%s461 + $0x10] sm:$0xff] %v2596
      %2613 = vst [vmem:[%s461 + $0x18] sm:$0xff] %v2597
      %2614 = vst [vmem:[%s461 + $0x20] sm:$0xff] %v2598
      %2615 = vst [vmem:[%s461 + $0x28] sm:$0xff] %v2599
      %2616 = vst [vmem:[%s461 + $0x30] sm:$0xff] %v2600
      %2617 = vst [vmem:[%s461 + $0x38] sm:$0xff] %v2601
      %2618 = vst [vmem:[%s461 + $0x40] sm:$0xff] %v2602
      %2619 = vst [vmem:[%s461 + $0x48] sm:$0xff] %v2603
      %2620 = vst [vmem:[%s461 + $0x50] sm:$0xff] %v2604
      %2621 = vst [vmem:[%s461 + $0x58] sm:$0xff] %v2605
      %2622 = vst [vmem:[%s461 + $0x60] sm:$0xff] %v2606
      %2623 = vst [vmem:[%s461 + $0x68] sm:$0xff] %v2607
      %2624 = vst [vmem:[%s461 + $0x70] sm:$0xff] %v2608
      %2625 = vst [vmem:[%s461 + $0x78] sm:$0xff] %v2609
      %vm2626 = vcmask 523264
      %v2627 = vsel %vm2626, %v2539, 0.0
      %v2628 = vsel %vm2626, %v2541, 0.0
      %v2629 = vsel %vm2626, %v2544, 0.0
      %v2630 = vsel %vm2626, %v2546, 0.0
      %v2631 = vsel %vm2626, %v2549, 0.0
      %v2632 = vsel %vm2626, %v2551, 0.0
      %v2633 = vsel %vm2626, %v2554, 0.0
      %v2634 = vsel %vm2626, %v2556, 0.0
      %v2635 = vsel %vm2626, %v2559, 0.0
      %v2636 = vsel %vm2626, %v2561, 0.0
      %v2637 = vsel %vm2626, %v2564, 0.0
      %v2638 = vsel %vm2626, %v2566, 0.0
      %v2639 = vsel %vm2626, %v2569, 0.0
      %v2640 = vsel %vm2626, %v2571, 0.0
      %v2641 = vsel %vm2626, %v2574, 0.0
      %v2642 = vsel %vm2626, %v2576, 0.0
      %2643 = vst [vmem:[%s467] sm:$0xff] %v2627
      %2644 = vst [vmem:[%s467 + $0x8] sm:$0xff] %v2628
      %2645 = vst [vmem:[%s467 + $0x10] sm:$0xff] %v2629
      %2646 = vst [vmem:[%s467 + $0x18] sm:$0xff] %v2630
      %2647 = vst [vmem:[%s467 + $0x20] sm:$0xff] %v2631
      %2648 = vst [vmem:[%s467 + $0x28] sm:$0xff] %v2632
      %2649 = vst [vmem:[%s467 + $0x30] sm:$0xff] %v2633
      %2650 = vst [vmem:[%s467 + $0x38] sm:$0xff] %v2634
      %2651 = vst [vmem:[%s467 + $0x40] sm:$0xff] %v2635
      %2652 = vst [vmem:[%s467 + $0x48] sm:$0xff] %v2636
      %2653 = vst [vmem:[%s467 + $0x50] sm:$0xff] %v2637
      %2654 = vst [vmem:[%s467 + $0x58] sm:$0xff] %v2638
      %2655 = vst [vmem:[%s467 + $0x60] sm:$0xff] %v2639
      %2656 = vst [vmem:[%s467 + $0x68] sm:$0xff] %v2640
      %2657 = vst [vmem:[%s467 + $0x70] sm:$0xff] %v2641
      %2658 = vst [vmem:[%s467 + $0x78] sm:$0xff] %v2642
      %s2659 = smul.u32 16, %s24
      %p2660 = scmp.lt.s32.totalorder %s2659, 31
      %s2661 = scalar_select %p2660, %s2659, 31
      %s2662 = smul.addr %s2661, 8
      %s2663 = scalar_lea.vmem %s10, %s2662
      %s2664 = smul.u32 16, %s24
      %p2665 = scmp.lt.s32.totalorder %s2664, 31
      %s2666 = scalar_select %p2665, %s2664, 31
      %s2667 = smul.addr %s2666, 8
      %s2668 = scalar_lea.vmem %s11, %s2667
      %s2669 = smul.u32 16, %s24
      %p2670 = scmp.lt.s32.totalorder %s2669, 31
      %s2671 = scalar_select %p2670, %s2669, 31
      %s2672 = smul.addr %s2671, 8
      %s2673 = scalar_lea.vmem %s12, %s2672
      // Predicated region
      $region61: #{etm_forward.3} parent=59 // pred_check
        %p2674 = pneg %p262
      $region62: #{etm_forward.3} parent=59 // pred_check_branch
        %2676 = sbr.rel (%p2674) target = $region64
      $region63: #{etm_forward.3} parent=59 // pred_region
        %s2677 = smul.u32 16, %s24
      $region64: #{etm_forward.3} parent=59 // pred_fallthru
        _
      // Predicated region
      $region65: #{etm_forward.3} parent=59 // pred_check
        %p2678 = pneg %p288
      $region66: #{etm_forward.3} parent=59 // pred_check_branch
        %2680 = sbr.rel (%p2678) target = $region68
      $region67: #{etm_forward.3} parent=59 // pred_region
        %s2681 = smul.u32 16, %s24
      $region68: #{etm_forward.3} parent=59 // pred_fallthru
        _
      // Predicated region
      $region69: #{etm_forward.3} parent=59 // pred_check
        %p2682 = pneg %p314
      $region70: #{etm_forward.3} parent=59 // pred_check_branch
        %2684 = sbr.rel (%p2682) target = $region72
      $region71: #{etm_forward.3} parent=59 // pred_region
        %s2685 = smul.u32 16, %s24
      $region72: #{etm_forward.3} parent=59 // pred_fallthru
        _
    $region60: #{etm_forward.3} parent=5 // pred_fallthru
      _
    %p2686 = scmp.le.s32.totalorder 2, %s19
    // Predicated region
    $region73: #{etm_forward.3} parent=5 // pred_check
      %p2687 = pneg %p2686
    $region74: #{etm_forward.3} parent=5 // pred_check_branch
      %2689 = sbr.rel (%p2687) target = $region76
    $region75: #{etm_forward.3} parent=5 // pred_region
      %s2690 = ssub.s32 %s19, 2
      // Predicated region
      $region77: #{etm_forward.3} parent=75 // pred_check
        %p2691 = pneg %p268
      $region78: #{etm_forward.3} parent=75 // pred_check_branch
        %2693 = sbr.rel (%p2691) target = $region80
      $region79: #{etm_forward.3} parent=75 // pred_region
        %s2694 = smul.u32 16, %s25
        %p2695 = scmp.lt.s32.totalorder %s2694, 31
        %s2696 = scalar_select %p2695, %s2694, 31
        %s2697 = smul.addr %s2696, 8
        %s2698 = scalar_lea.vmem %s10, %s2697
      $region80: #{etm_forward.3} parent=75 // pred_fallthru
        _
      // Predicated region
      $region81: #{etm_forward.3} parent=75 // pred_check
        %p2699 = pneg %p294
      $region82: #{etm_forward.3} parent=75 // pred_check_branch
        %2701 = sbr.rel (%p2699) target = $region84
      $region83: #{etm_forward.3} parent=75 // pred_region
        %s2702 = smul.u32 16, %s25
        %p2703 = scmp.lt.s32.totalorder %s2702, 31
        %s2704 = scalar_select %p2703, %s2702, 31
        %s2705 = smul.addr %s2704, 8
        %s2706 = scalar_lea.vmem %s11, %s2705
      $region84: #{etm_forward.3} parent=75 // pred_fallthru
        _
      // Predicated region
      $region85: #{etm_forward.3} parent=75 // pred_check
        %p2707 = pneg %p320
      $region86: #{etm_forward.3} parent=75 // pred_check_branch
        %2709 = sbr.rel (%p2707) target = $region88
      $region87: #{etm_forward.3} parent=75 // pred_region
        %s2710 = smul.u32 16, %s25
        %p2711 = scmp.lt.s32.totalorder %s2710, 31
        %s2712 = scalar_select %p2711, %s2710, 31
        %s2713 = smul.addr %s2712, 8
        %s2714 = scalar_lea.vmem %s12, %s2713
      $region88: #{etm_forward.3} parent=75 // pred_fallthru
        _
    $region76: #{etm_forward.3} parent=5 // pred_fallthru
      _
  $region6: #{etm_forward.3} parent=0 // loop_footer
    %s23 = sadd.s32 1, %s19
  $region7: #{etm_forward.3} parent=0 // loop_footer_branch
    %18 = sbr.rel target = $region3
  $region8: #{etm_forward.3} parent=0 // loop_exit
    _

// kernel: custom-call.2
$region0: #{custom-call.2}
  %s0 = inlined_call_operand.vmem [shape: f32[16], index: 0, kind: output, shape index: {}]

// kernel: custom-call.3
$region0: #{custom-call.3}
  %s0 = inlined_call_operand.vmem [shape: f32[32], index: 0, kind: output, shape index: {}]

// kernel: custom-call.6
$region0: #{custom-call.6}
  %s0 = inlined_call_operand.hbm [shape: f32[32], index: 0, kind: output, shape index: {}]

</llo_original>
